<compile_context>
chip_gen: v7x
topology: tpu7x:2x2x1
jax: 0.10.0
libtpu: 0.0.40
codegen_flags: <defaults>
</compile_context>

<pallas_src>
import functools

import jax
import jax.numpy as jnp
from jax.experimental import pallas as pl
from jax.experimental.pallas import tpu as pltpu


def _round_up(n, m):
    return ((n + m - 1) // m) * m


# ----------------------------------------------------------------------------
# Fused Pallas kernel: input Linear + L stacked LSTM layers + output Linear
# ----------------------------------------------------------------------------

def _fused_lstm_kernel(x_ref, w_in_ref, b_in_ref,
                       wih_ref, whh_ref, b_ref,
                       w_out_ref, b_out_ref,
                       h0_ref, c0_ref,
                       y_ref, hN_ref, cN_ref,
                       act_sc, gx_sc,
                       *, T, Bp, Hp, L):
    """Everything VMEM-resident.

    x_ref    : (T*Bp, Dp)          padded one-hot inputs (row = t*Bp + b)
    w_in_ref : (Dp, Hp),  b_in_ref : (1, Hp)
    wih_ref  : (L, Hp, 4*Hp)       gate blocks at column offsets k*Hp, k=0..3 (i,f,g,o)
    whh_ref  : (L, Hp, 4*Hp)
    b_ref    : (L, 1, 4*Hp)        b_ih + b_hh, padded
    w_out_ref: (Hp, Dp),  b_out_ref: (1, Dp)
    h0/c0    : (L, Bp, Hp)
    y_ref    : (T*Bp, Dp)
    hN/cN    : (L, Bp, Hp)
    act_sc   : (T*Bp, Hp)   VMEM scratch — current layer's activation sequence
    gx_sc    : (T*Bp, 4*Hp) VMEM scratch — precomputed x-projection for a layer
    """
    # --- input projection for the whole sequence (one matmul) ---------------
    act_sc[...] = (
        jnp.dot(x_ref[...], w_in_ref[...], preferred_element_type=jnp.float32)
        + b_in_ref[...]
    )

    # --- stacked LSTM layers -------------------------------------------------
    for l in range(L):
        # Hoist the input projection out of the recurrence and fold the bias in.
        gx_sc[...] = (
            jnp.dot(act_sc[...], wih_ref[l], preferred_element_type=jnp.float32)
            + b_ref[l]
        )
        whh = whh_ref[l]          # (Hp, 4*Hp)
        h = h0_ref[l]             # (Bp, Hp)
        c = c0_ref[l]             # (Bp, Hp)

        # Time recurrence, statically unrolled (T is small); only h @ W_hh on
        # the serial critical path. All slices are (8,128)-aligned.
        for t in range(T):
            row = t * Bp
            g = gx_sc[pl.ds(row, Bp), :] + jnp.dot(
                h, whh, preferred_element_type=jnp.float32)       # (Bp, 4*Hp)
            i_g = jax.nn.sigmoid(g[:, 0 * Hp:1 * Hp])
            f_g = jax.nn.sigmoid(g[:, 1 * Hp:2 * Hp])
            g_g = jnp.tanh(g[:, 2 * Hp:3 * Hp])
            o_g = jax.nn.sigmoid(g[:, 3 * Hp:4 * Hp])
            c = f_g * c + i_g * g_g
            h = o_g * jnp.tanh(c)
            act_sc[pl.ds(row, Bp), :] = h        # becomes next layer's input

        hN_ref[l] = h
        cN_ref[l] = c
        # Inter-layer dropout is identity at inference time.

    # --- output projection for the whole sequence (one matmul, lane-dense) --
    y_ref[...] = (
        jnp.dot(act_sc[...], w_out_ref[...], preferred_element_type=jnp.float32)
        + b_out_ref[...]
    )


# ----------------------------------------------------------------------------
# Model (parameter container + forward, mirroring the PyTorch module)
# ----------------------------------------------------------------------------

class PallasLSTMModel:
    def __init__(self, d_one_hot, d_lstm, num_lstm_layers, key, bias=True):
        self.d_one_hot = d_one_hot
        self.d_lstm = d_lstm
        self.num_layers = num_lstm_layers

        def uniform(key, shape, fan):
            k = 1.0 / jnp.sqrt(jnp.float32(fan))
            return jax.random.uniform(key, shape, jnp.float32, -k, k)

        keys = jax.random.split(key, 4 + 4 * num_lstm_layers)

        # input Linear (stored transposed for x @ W):  (d_one_hot, d_lstm)
        self.w_in = uniform(keys[0], (d_one_hot, d_lstm), d_one_hot)
        self.b_in = (uniform(keys[1], (d_lstm,), d_one_hot) if bias
                     else jnp.zeros((d_lstm,), jnp.float32))

        # output Linear (stored transposed):  (d_lstm, d_one_hot)
        self.w_out = uniform(keys[2], (d_lstm, d_one_hot), d_lstm)
        self.b_out = (uniform(keys[3], (d_one_hot,), d_lstm) if bias
                      else jnp.zeros((d_one_hot,), jnp.float32))

        # LSTM params (transposed, gate order [i|f|g|o]); bias = b_ih + b_hh.
        self.wih, self.whh, self.b = [], [], []
        for l in range(num_lstm_layers):
            k0, k1, k2, k3 = keys[4 + 4 * l: 8 + 4 * l]
            self.wih.append(uniform(k0, (d_lstm, 4 * d_lstm), d_lstm))
            self.whh.append(uniform(k1, (d_lstm, 4 * d_lstm), d_lstm))
            if bias:
                b_ih = uniform(k2, (4 * d_lstm,), d_lstm)
                b_hh = uniform(k3, (4 * d_lstm,), d_lstm)
                self.b.append(b_ih + b_hh)
            else:
                self.b.append(jnp.zeros((4 * d_lstm,), jnp.float32))

        # ------ lane-aligned padded copies (built once) ----------------------
        H, D = d_lstm, d_one_hot
        Hp = _round_up(H, 128)
        Dp = _round_up(D, 128)
        self.Hp, self.Dp = Hp, Dp

        self.w_in_p = jnp.zeros((Dp, Hp), jnp.float32).at[:D, :H].set(self.w_in)
        self.b_in_p = jnp.zeros((1, Hp), jnp.float32).at[0, :H].set(self.b_in)
        self.w_out_p = jnp.zeros((Hp, Dp), jnp.float32).at[:H, :D].set(self.w_out)
        self.b_out_p = jnp.zeros((1, Dp), jnp.float32).at[0, :D].set(self.b_out)

        wih_p, whh_p, b_p = [], [], []
        for l in range(num_lstm_layers):
            wih_pad = jnp.zeros((Hp, 4 * Hp), jnp.float32)
            whh_pad = jnp.zeros((Hp, 4 * Hp), jnp.float32)
            bias_pad = jnp.zeros((1, 4 * Hp), jnp.float32)
            for k in range(4):  # place each gate block at a 128-aligned offset
                wih_pad = wih_pad.at[:H, k * Hp:k * Hp + H].set(
                    self.wih[l][:, k * H:(k + 1) * H])
                whh_pad = whh_pad.at[:H, k * Hp:k * Hp + H].set(
                    self.whh[l][:, k * H:(k + 1) * H])
                bias_pad = bias_pad.at[0, k * Hp:k * Hp + H].set(
                    self.b[l][k * H:(k + 1) * H])
            wih_p.append(wih_pad)
            whh_p.append(whh_pad)
            b_p.append(bias_pad)
        self.wih_p = jnp.stack(wih_p)   # (L, Hp, 4*Hp)
        self.whh_p = jnp.stack(whh_p)   # (L, Hp, 4*Hp)
        self.b_p = jnp.stack(b_p)       # (L, 1, 4*Hp)

    # -------------------------------------------------------------------------
    def __call__(self, x, state=None):
        T, B, D = x.shape
        H, L = self.d_lstm, self.num_layers
        Hp, Dp = self.Hp, self.Dp
        Bp = _round_up(max(B, 1), 8)            # fill f32 sublanes

        # Pad inputs (zero padding is inert for the padded lanes/rows).
        x_p = jnp.zeros((T, Bp, Dp), jnp.float32).at[:, :B, :D].set(
            x.astype(jnp.float32))
        x2d = x_p.reshape(T * Bp, Dp)

        if state is not None:
            h0, c0 = state
            h0_p = jnp.zeros((L, Bp, Hp), jnp.float32).at[:, :B, :H].set(h0)
            c0_p = jnp.zeros((L, Bp, Hp), jnp.float32).at[:, :B, :H].set(c0)
        else:
            h0_p = jnp.zeros((L, Bp, Hp), jnp.float32)
            c0_p = jnp.zeros((L, Bp, Hp), jnp.float32)

        kernel = functools.partial(_fused_lstm_kernel, T=T, Bp=Bp, Hp=Hp, L=L)

        y_p, hN_p, cN_p = pl.pallas_call(
            kernel,
            out_shape=(
                jax.ShapeDtypeStruct((T * Bp, Dp), jnp.float32),
                jax.ShapeDtypeStruct((L, Bp, Hp), jnp.float32),
                jax.ShapeDtypeStruct((L, Bp, Hp), jnp.float32),
            ),
            grid=(1,),
            in_specs=[
                pl.BlockSpec((T * Bp, Dp), lambda i: (0, 0)),        # x
                pl.BlockSpec((Dp, Hp), lambda i: (0, 0)),            # w_in
                pl.BlockSpec((1, Hp), lambda i: (0, 0)),             # b_in
                pl.BlockSpec((L, Hp, 4 * Hp), lambda i: (0, 0, 0)),  # wih
                pl.BlockSpec((L, Hp, 4 * Hp), lambda i: (0, 0, 0)),  # whh
                pl.BlockSpec((L, 1, 4 * Hp), lambda i: (0, 0, 0)),   # b
                pl.BlockSpec((Hp, Dp), lambda i: (0, 0)),            # w_out
                pl.BlockSpec((1, Dp), lambda i: (0, 0)),             # b_out
                pl.BlockSpec((L, Bp, Hp), lambda i: (0, 0, 0)),      # h0
                pl.BlockSpec((L, Bp, Hp), lambda i: (0, 0, 0)),      # c0
            ],
            out_specs=(
                pl.BlockSpec((T * Bp, Dp), lambda i: (0, 0)),        # y
                pl.BlockSpec((L, Bp, Hp), lambda i: (0, 0, 0)),      # hN
                pl.BlockSpec((L, Bp, Hp), lambda i: (0, 0, 0)),      # cN
            ),
            scratch_shapes=[
                pltpu.VMEM((T * Bp, Hp), jnp.float32),       # activations
                pltpu.VMEM((T * Bp, 4 * Hp), jnp.float32),   # x-projection
            ],
            compiler_params=pltpu.CompilerParams(
                dimension_semantics=("arbitrary",)),
        )(x2d, self.w_in_p, self.b_in_p, self.wih_p, self.whh_p, self.b_p,
          self.w_out_p, self.b_out_p, h0_p, c0_p)

        # Strip padding.
        y = y_p.reshape(T, Bp, Dp)[:, :B, :self.d_one_hot]
        h = hN_p[:, :B, :H]
        c = cN_p[:, :B, :H]
        return y, (h, c)


# ----------------------------------------------------------------------------
# Pure-JAX reference (same math, unpadded) for a numerical sanity check
# ----------------------------------------------------------------------------

def _reference_forward(model, x, state=None):
    hi = jax.lax.Precision.HIGHEST

    def dot(a, b):
        return jnp.dot(a, b, precision=hi)

    T, B, D = x.shape
    H, L = model.d_lstm, model.num_layers
    act = (dot(x.reshape(T * B, D), model.w_in) + model.b_in).reshape(T, B, H)
    if state is None:
        h0 = jnp.zeros((L, B, H), jnp.float32)
        c0 = jnp.zeros((L, B, H), jnp.float32)
    else:
        h0, c0 = state
    hs, cs = [], []
    for l in range(L):
        h, c = h0[l], c0[l]
        outs = []
        for t in range(T):
            g = dot(act[t], model.wih[l]) + dot(h, model.whh[l]) + model.b[l]
            i = jax.nn.sigmoid(g[:, 0 * H:1 * H])
            f = jax.nn.sigmoid(g[:, 1 * H:2 * H])
            gg = jnp.tanh(g[:, 2 * H:3 * H])
            o = jax.nn.sigmoid(g[:, 3 * H:4 * H])
            c = f * c + i * gg
            h = o * jnp.tanh(c)
            outs.append(h)
        act = jnp.stack(outs, axis=0)
        hs.append(h)
        cs.append(c)
    y = dot(act.reshape(T * B, H), model.w_out) + model.b_out
    return y.reshape(T, B, model.d_one_hot), (jnp.stack(hs), jnp.stack(cs))


# ----------------------------------------------------------------------------
# Demo
# ----------------------------------------------------------------------------

if __name__ == "__main__":
    d_one_hot = 16
    d_lstm = 32
    num_lstm_layers = 2
    T, B = 8, 2

    key = jax.random.PRNGKey(0)
    k_param, k_x = jax.random.split(key)

    model = PallasLSTMModel(d_one_hot, d_lstm, num_lstm_layers, k_param)
    x = jax.random.normal(k_x, (T, B, d_one_hot), jnp.float32)

    y, (h, c) = model(x)
    jax.block_until_ready((y, h, c))

    assert y.shape == (T, B, d_one_hot)
    assert h.shape == (num_lstm_layers, B, d_lstm)
    assert c.shape == (num_lstm_layers, B, d_lstm)

    # Numerical sanity check against a pure-JAX reference of the same math.
    y_r, (h_r, c_r) = _reference_forward(model, x)
    err = max(float(jnp.max(jnp.abs(y - y_r))),
              float(jnp.max(jnp.abs(h - h_r))),
              float(jnp.max(jnp.abs(c - c_r))))
    assert err < 1e-3, f"mismatch vs reference: {err}"

    print("KERNEL_OK")
</pallas_src>

<mosaic_0001>
module attributes {stable_mosaic.version = 11 : i64} {
  func.func @_fused_lstm_kernel(%arg0: i32, %arg1: memref<64x128xf32, #tpu.memory_space<vmem>>, %arg2: memref<128x128xf32, #tpu.memory_space<vmem>>, %arg3: memref<1x128xf32, #tpu.memory_space<vmem>>, %arg4: memref<2x128x512xf32, #tpu.memory_space<vmem>>, %arg5: memref<2x128x512xf32, #tpu.memory_space<vmem>>, %arg6: memref<2x1x512xf32, #tpu.memory_space<vmem>>, %arg7: memref<128x128xf32, #tpu.memory_space<vmem>>, %arg8: memref<1x128xf32, #tpu.memory_space<vmem>>, %arg9: memref<2x8x128xf32, #tpu.memory_space<vmem>>, %arg10: memref<2x8x128xf32, #tpu.memory_space<vmem>>, %arg11: memref<64x128xf32, #tpu.memory_space<vmem>>, %arg12: memref<2x8x128xf32, #tpu.memory_space<vmem>>, %arg13: memref<2x8x128xf32, #tpu.memory_space<vmem>>, %arg14: memref<64x128xf32, #tpu.memory_space<vmem>>, %arg15: memref<64x512xf32, #tpu.memory_space<vmem>>) attributes {dimension_semantics = [#tpu.dimension_semantics<arbitrary>], iteration_bounds = array<i64: 1>, scalar_prefetch = 0 : i64, scratch_operands = 2 : i64, tpu.core_type = #tpu.core_type<tc>, window_params = [{pipeline_mode = #tpu.pipeline_mode<synchronous>, transform_indices = @transform_0, window_bounds = array<i64: 64, 128>}, {pipeline_mode = #tpu.pipeline_mode<synchronous>, transform_indices = @transform_1, window_bounds = array<i64: 128, 128>}, {pipeline_mode = #tpu.pipeline_mode<synchronous>, transform_indices = @transform_2, window_bounds = array<i64: 1, 128>}, {pipeline_mode = #tpu.pipeline_mode<synchronous>, transform_indices = @transform_3, window_bounds = array<i64: 2, 128, 512>}, {pipeline_mode = #tpu.pipeline_mode<synchronous>, transform_indices = @transform_4, window_bounds = array<i64: 2, 128, 512>}, {pipeline_mode = #tpu.pipeline_mode<synchronous>, transform_indices = @transform_5, window_bounds = array<i64: 2, 1, 512>}, {pipeline_mode = #tpu.pipeline_mode<synchronous>, transform_indices = @transform_6, window_bounds = array<i64: 128, 128>}, {pipeline_mode = #tpu.pipeline_mode<synchronous>, transform_indices = @transform_7, window_bounds = array<i64: 1, 128>}, {pipeline_mode = #tpu.pipeline_mode<synchronous>, transform_indices = @transform_8, window_bounds = array<i64: 2, 8, 128>}, {pipeline_mode = #tpu.pipeline_mode<synchronous>, transform_indices = @transform_9, window_bounds = array<i64: 2, 8, 128>}, {pipeline_mode = #tpu.pipeline_mode<synchronous>, transform_indices = @transform_10, window_bounds = array<i64: 64, 128>}, {pipeline_mode = #tpu.pipeline_mode<synchronous>, transform_indices = @transform_11, window_bounds = array<i64: 2, 8, 128>}, {pipeline_mode = #tpu.pipeline_mode<synchronous>, transform_indices = @transform_12, window_bounds = array<i64: 2, 8, 128>}]} {
    %c0 = arith.constant 0 : index
    %c0_0 = arith.constant 0 : index
    %0 = vector.load %arg1[%c0, %c0_0] : memref<64x128xf32, #tpu.memory_space<vmem>>, vector<64x128xf32>
    %c0_1 = arith.constant 0 : index
    %c0_2 = arith.constant 0 : index
    %1 = vector.load %arg2[%c0_1, %c0_2] : memref<128x128xf32, #tpu.memory_space<vmem>>, vector<128x128xf32>
    %cst = arith.constant dense<0.000000e+00> : vector<64x128xf32>
    %2 = tpu.matmul %0, %1, %cst {dimension_numbers = #tpu.dot_dimension_numbers<[1], [0], [0], [1], [0, 0, 1, 1], [], []>} : vector<64x128xf32>, vector<128x128xf32>, vector<64x128xf32> -> vector<64x128xf32>
    %c0_3 = arith.constant 0 : index
    %c0_4 = arith.constant 0 : index
    %3 = vector.load %arg3[%c0_3, %c0_4] : memref<1x128xf32, #tpu.memory_space<vmem>>, vector<1x128xf32>
    %4 = vector.broadcast %3 : vector<1x128xf32> to vector<64x128xf32>
    %5 = arith.addf %2, %4 : vector<64x128xf32>
    %c0_5 = arith.constant 0 : index
    %c0_6 = arith.constant 0 : index
    %6 = vector.load %arg14[%c0_5, %c0_6] : memref<64x128xf32, #tpu.memory_space<vmem>>, vector<64x128xf32>
    tpu.vector_store %arg14[%c0_5, %c0_6], %5 {strides = array<i32>} : memref<64x128xf32, #tpu.memory_space<vmem>>, vector<64x128xf32>,
    %c0_7 = arith.constant 0 : index
    %c0_8 = arith.constant 0 : index
    %7 = vector.load %arg14[%c0_7, %c0_8] : memref<64x128xf32, #tpu.memory_space<vmem>>, vector<64x128xf32>
    %c0_9 = arith.constant 0 : index
    %c0_10 = arith.constant 0 : index
    %c0_11 = arith.constant 0 : index
    %8 = vector.load %arg4[%c0_9, %c0_10, %c0_11] : memref<2x128x512xf32, #tpu.memory_space<vmem>>, vector<1x128x512xf32>
    %9 = vector.shape_cast %8 : vector<1x128x512xf32> to vector<128x512xf32>
    %cst_12 = arith.constant dense<0.000000e+00> : vector<64x512xf32>
    %10 = tpu.matmul %7, %9, %cst_12 {dimension_numbers = #tpu.dot_dimension_numbers<[1], [0], [0], [1], [0, 0, 1, 1], [], []>} : vector<64x128xf32>, vector<128x512xf32>, vector<64x512xf32> -> vector<64x512xf32>
    %c0_13 = arith.constant 0 : index
    %c0_14 = arith.constant 0 : index
    %c0_15 = arith.constant 0 : index
    %11 = vector.load %arg6[%c0_13, %c0_14, %c0_15] : memref<2x1x512xf32, #tpu.memory_space<vmem>>, vector<1x1x512xf32>
    %12 = vector.shape_cast %11 : vector<1x1x512xf32> to vector<1x512xf32>
    %13 = vector.broadcast %12 : vector<1x512xf32> to vector<64x512xf32>
    %14 = arith.addf %10, %13 : vector<64x512xf32>
    %c0_16 = arith.constant 0 : index
    %c0_17 = arith.constant 0 : index
    %15 = vector.load %arg15[%c0_16, %c0_17] : memref<64x512xf32, #tpu.memory_space<vmem>>, vector<64x512xf32>
    tpu.vector_store %arg15[%c0_16, %c0_17], %14 {strides = array<i32>} : memref<64x512xf32, #tpu.memory_space<vmem>>, vector<64x512xf32>,
    %c0_18 = arith.constant 0 : index
    %c0_19 = arith.constant 0 : index
    %c0_20 = arith.constant 0 : index
    %16 = vector.load %arg5[%c0_18, %c0_19, %c0_20] : memref<2x128x512xf32, #tpu.memory_space<vmem>>, vector<1x128x512xf32>
    %17 = vector.shape_cast %16 : vector<1x128x512xf32> to vector<128x512xf32>
    %c0_21 = arith.constant 0 : index
    %c0_22 = arith.constant 0 : index
    %c0_23 = arith.constant 0 : index
    %18 = vector.load %arg9[%c0_21, %c0_22, %c0_23] : memref<2x8x128xf32, #tpu.memory_space<vmem>>, vector<1x8x128xf32>
    %19 = vector.shape_cast %18 : vector<1x8x128xf32> to vector<8x128xf32>
    %c0_24 = arith.constant 0 : index
    %c0_25 = arith.constant 0 : index
    %c0_26 = arith.constant 0 : index
    %20 = vector.load %arg10[%c0_24, %c0_25, %c0_26] : memref<2x8x128xf32, #tpu.memory_space<vmem>>, vector<1x8x128xf32>
    %21 = vector.shape_cast %20 : vector<1x8x128xf32> to vector<8x128xf32>
    %c0_27 = arith.constant 0 : index
    %c0_28 = arith.constant 0 : index
    %22 = vector.load %arg15[%c0_27, %c0_28] : memref<64x512xf32, #tpu.memory_space<vmem>>, vector<8x512xf32>
    %cst_29 = arith.constant dense<0.000000e+00> : vector<8x512xf32>
    %23 = tpu.matmul %19, %17, %cst_29 {dimension_numbers = #tpu.dot_dimension_numbers<[1], [0], [0], [1], [0, 0, 1, 1], [], []>} : vector<8x128xf32>, vector<128x512xf32>, vector<8x512xf32> -> vector<8x512xf32>
    %24 = arith.addf %22, %23 : vector<8x512xf32>
    %25 = vector.extract_strided_slice %24 {offsets = [0, 0], sizes = [8, 128], strides = [1, 1]} : vector<8x512xf32> to vector<8x128xf32>
    %26 = arith.negf %25 : vector<8x128xf32>
    %27 = math.exp %26 : vector<8x128xf32>
    %cst_30 = arith.constant 1.000000e+00 : f32
    %28 = vector.broadcast %cst_30 : f32 to vector<8x128xf32>
    %29 = arith.addf %28, %27 : vector<8x128xf32>
    %30 = arith.divf %28, %29 : vector<8x128xf32>
    %31 = vector.extract_strided_slice %24 {offsets = [0, 128], sizes = [8, 128], strides = [1, 1]} : vector<8x512xf32> to vector<8x128xf32>
    %32 = arith.negf %31 : vector<8x128xf32>
    %33 = math.exp %32 : vector<8x128xf32>
    %cst_31 = arith.constant 1.000000e+00 : f32
    %34 = vector.broadcast %cst_31 : f32 to vector<8x128xf32>
    %35 = arith.addf %34, %33 : vector<8x128xf32>
    %36 = arith.divf %34, %35 : vector<8x128xf32>
    %37 = vector.extract_strided_slice %24 {offsets = [0, 256], sizes = [8, 128], strides = [1, 1]} : vector<8x512xf32> to vector<8x128xf32>
    %38 = math.tanh %37 : vector<8x128xf32>
    %39 = vector.extract_strided_slice %24 {offsets = [0, 384], sizes = [8, 128], strides = [1, 1]} : vector<8x512xf32> to vector<8x128xf32>
    %40 = arith.negf %39 : vector<8x128xf32>
    %41 = math.exp %40 : vector<8x128xf32>
    %cst_32 = arith.constant 1.000000e+00 : f32
    %42 = vector.broadcast %cst_32 : f32 to vector<8x128xf32>
    %43 = arith.addf %42, %41 : vector<8x128xf32>
    %44 = arith.divf %42, %43 : vector<8x128xf32>
    %45 = arith.mulf %36, %21 : vector<8x128xf32>
    %46 = arith.mulf %30, %38 : vector<8x128xf32>
    %47 = arith.addf %45, %46 : vector<8x128xf32>
    %48 = math.tanh %47 : vector<8x128xf32>
    %49 = arith.mulf %44, %48 : vector<8x128xf32>
    %c0_33 = arith.constant 0 : index
    %c0_34 = arith.constant 0 : index
    %50 = vector.load %arg14[%c0_33, %c0_34] : memref<64x128xf32, #tpu.memory_space<vmem>>, vector<8x128xf32>
    tpu.vector_store %arg14[%c0_33, %c0_34], %49 {strides = array<i32>} : memref<64x128xf32, #tpu.memory_space<vmem>>, vector<8x128xf32>,
    %c8 = arith.constant 8 : index
    %c0_35 = arith.constant 0 : index
    %51 = vector.load %arg15[%c8, %c0_35] : memref<64x512xf32, #tpu.memory_space<vmem>>, vector<8x512xf32>
    %cst_36 = arith.constant dense<0.000000e+00> : vector<8x512xf32>
    %52 = tpu.matmul %49, %17, %cst_36 {dimension_numbers = #tpu.dot_dimension_numbers<[1], [0], [0], [1], [0, 0, 1, 1], [], []>} : vector<8x128xf32>, vector<128x512xf32>, vector<8x512xf32> -> vector<8x512xf32>
    %53 = arith.addf %51, %52 : vector<8x512xf32>
    %54 = vector.extract_strided_slice %53 {offsets = [0, 0], sizes = [8, 128], strides = [1, 1]} : vector<8x512xf32> to vector<8x128xf32>
    %55 = arith.negf %54 : vector<8x128xf32>
    %56 = math.exp %55 : vector<8x128xf32>
    %cst_37 = arith.constant 1.000000e+00 : f32
    %57 = vector.broadcast %cst_37 : f32 to vector<8x128xf32>
    %58 = arith.addf %57, %56 : vector<8x128xf32>
    %59 = arith.divf %57, %58 : vector<8x128xf32>
    %60 = vector.extract_strided_slice %53 {offsets = [0, 128], sizes = [8, 128], strides = [1, 1]} : vector<8x512xf32> to vector<8x128xf32>
    %61 = arith.negf %60 : vector<8x128xf32>
    %62 = math.exp %61 : vector<8x128xf32>
    %cst_38 = arith.constant 1.000000e+00 : f32
    %63 = vector.broadcast %cst_38 : f32 to vector<8x128xf32>
    %64 = arith.addf %63, %62 : vector<8x128xf32>
    %65 = arith.divf %63, %64 : vector<8x128xf32>
    %66 = vector.extract_strided_slice %53 {offsets = [0, 256], sizes = [8, 128], strides = [1, 1]} : vector<8x512xf32> to vector<8x128xf32>
    %67 = math.tanh %66 : vector<8x128xf32>
    %68 = vector.extract_strided_slice %53 {offsets = [0, 384], sizes = [8, 128], strides = [1, 1]} : vector<8x512xf32> to vector<8x128xf32>
    %69 = arith.negf %68 : vector<8x128xf32>
    %70 = math.exp %69 : vector<8x128xf32>
    %cst_39 = arith.constant 1.000000e+00 : f32
    %71 = vector.broadcast %cst_39 : f32 to vector<8x128xf32>
    %72 = arith.addf %71, %70 : vector<8x128xf32>
    %73 = arith.divf %71, %72 : vector<8x128xf32>
    %74 = arith.mulf %65, %47 : vector<8x128xf32>
    %75 = arith.mulf %59, %67 : vector<8x128xf32>
    %76 = arith.addf %74, %75 : vector<8x128xf32>
    %77 = math.tanh %76 : vector<8x128xf32>
    %78 = arith.mulf %73, %77 : vector<8x128xf32>
    %c8_40 = arith.constant 8 : index
    %c0_41 = arith.constant 0 : index
    %79 = vector.load %arg14[%c8_40, %c0_41] : memref<64x128xf32, #tpu.memory_space<vmem>>, vector<8x128xf32>
    tpu.vector_store %arg14[%c8_40, %c0_41], %78 {strides = array<i32>} : memref<64x128xf32, #tpu.memory_space<vmem>>, vector<8x128xf32>,
    %c16 = arith.constant 16 : index
    %c0_42 = arith.constant 0 : index
    %80 = vector.load %arg15[%c16, %c0_42] : memref<64x512xf32, #tpu.memory_space<vmem>>, vector<8x512xf32>
    %cst_43 = arith.constant dense<0.000000e+00> : vector<8x512xf32>
    %81 = tpu.matmul %78, %17, %cst_43 {dimension_numbers = #tpu.dot_dimension_numbers<[1], [0], [0], [1], [0, 0, 1, 1], [], []>} : vector<8x128xf32>, vector<128x512xf32>, vector<8x512xf32> -> vector<8x512xf32>
    %82 = arith.addf %80, %81 : vector<8x512xf32>
    %83 = vector.extract_strided_slice %82 {offsets = [0, 0], sizes = [8, 128], strides = [1, 1]} : vector<8x512xf32> to vector<8x128xf32>
    %84 = arith.negf %83 : vector<8x128xf32>
    %85 = math.exp %84 : vector<8x128xf32>
    %cst_44 = arith.constant 1.000000e+00 : f32
    %86 = vector.broadcast %cst_44 : f32 to vector<8x128xf32>
    %87 = arith.addf %86, %85 : vector<8x128xf32>
    %88 = arith.divf %86, %87 : vector<8x128xf32>
    %89 = vector.extract_strided_slice %82 {offsets = [0, 128], sizes = [8, 128], strides = [1, 1]} : vector<8x512xf32> to vector<8x128xf32>
    %90 = arith.negf %89 : vector<8x128xf32>
    %91 = math.exp %90 : vector<8x128xf32>
    %cst_45 = arith.constant 1.000000e+00 : f32
    %92 = vector.broadcast %cst_45 : f32 to vector<8x128xf32>
    %93 = arith.addf %92, %91 : vector<8x128xf32>
    %94 = arith.divf %92, %93 : vector<8x128xf32>
    %95 = vector.extract_strided_slice %82 {offsets = [0, 256], sizes = [8, 128], strides = [1, 1]} : vector<8x512xf32> to vector<8x128xf32>
    %96 = math.tanh %95 : vector<8x128xf32>
    %97 = vector.extract_strided_slice %82 {offsets = [0, 384], sizes = [8, 128], strides = [1, 1]} : vector<8x512xf32> to vector<8x128xf32>
    %98 = arith.negf %97 : vector<8x128xf32>
    %99 = math.exp %98 : vector<8x128xf32>
    %cst_46 = arith.constant 1.000000e+00 : f32
    %100 = vector.broadcast %cst_46 : f32 to vector<8x128xf32>
    %101 = arith.addf %100, %99 : vector<8x128xf32>
    %102 = arith.divf %100, %101 : vector<8x128xf32>
    %103 = arith.mulf %94, %76 : vector<8x128xf32>
    %104 = arith.mulf %88, %96 : vector<8x128xf32>
    %105 = arith.addf %103, %104 : vector<8x128xf32>
    %106 = math.tanh %105 : vector<8x128xf32>
    %107 = arith.mulf %102, %106 : vector<8x128xf32>
    %c16_47 = arith.constant 16 : index
    %c0_48 = arith.constant 0 : index
    %108 = vector.load %arg14[%c16_47, %c0_48] : memref<64x128xf32, #tpu.memory_space<vmem>>, vector<8x128xf32>
    tpu.vector_store %arg14[%c16_47, %c0_48], %107 {strides = array<i32>} : memref<64x128xf32, #tpu.memory_space<vmem>>, vector<8x128xf32>,
    %c24 = arith.constant 24 : index
    %c0_49 = arith.constant 0 : index
    %109 = vector.load %arg15[%c24, %c0_49] : memref<64x512xf32, #tpu.memory_space<vmem>>, vector<8x512xf32>
    %cst_50 = arith.constant dense<0.000000e+00> : vector<8x512xf32>
    %110 = tpu.matmul %107, %17, %cst_50 {dimension_numbers = #tpu.dot_dimension_numbers<[1], [0], [0], [1], [0, 0, 1, 1], [], []>} : vector<8x128xf32>, vector<128x512xf32>, vector<8x512xf32> -> vector<8x512xf32>
    %111 = arith.addf %109, %110 : vector<8x512xf32>
    %112 = vector.extract_strided_slice %111 {offsets = [0, 0], sizes = [8, 128], strides = [1, 1]} : vector<8x512xf32> to vector<8x128xf32>
    %113 = arith.negf %112 : vector<8x128xf32>
    %114 = math.exp %113 : vector<8x128xf32>
    %cst_51 = arith.constant 1.000000e+00 : f32
    %115 = vector.broadcast %cst_51 : f32 to vector<8x128xf32>
    %116 = arith.addf %115, %114 : vector<8x128xf32>
    %117 = arith.divf %115, %116 : vector<8x128xf32>
    %118 = vector.extract_strided_slice %111 {offsets = [0, 128], sizes = [8, 128], strides = [1, 1]} : vector<8x512xf32> to vector<8x128xf32>
    %119 = arith.negf %118 : vector<8x128xf32>
    %120 = math.exp %119 : vector<8x128xf32>
    %cst_52 = arith.constant 1.000000e+00 : f32
    %121 = vector.broadcast %cst_52 : f32 to vector<8x128xf32>
    %122 = arith.addf %121, %120 : vector<8x128xf32>
    %123 = arith.divf %121, %122 : vector<8x128xf32>
    %124 = vector.extract_strided_slice %111 {offsets = [0, 256], sizes = [8, 128], strides = [1, 1]} : vector<8x512xf32> to vector<8x128xf32>
    %125 = math.tanh %124 : vector<8x128xf32>
    %126 = vector.extract_strided_slice %111 {offsets = [0, 384], sizes = [8, 128], strides = [1, 1]} : vector<8x512xf32> to vector<8x128xf32>
    %127 = arith.negf %126 : vector<8x128xf32>
    %128 = math.exp %127 : vector<8x128xf32>
    %cst_53 = arith.constant 1.000000e+00 : f32
    %129 = vector.broadcast %cst_53 : f32 to vector<8x128xf32>
    %130 = arith.addf %129, %128 : vector<8x128xf32>
    %131 = arith.divf %129, %130 : vector<8x128xf32>
    %132 = arith.mulf %123, %105 : vector<8x128xf32>
    %133 = arith.mulf %117, %125 : vector<8x128xf32>
    %134 = arith.addf %132, %133 : vector<8x128xf32>
    %135 = math.tanh %134 : vector<8x128xf32>
    %136 = arith.mulf %131, %135 : vector<8x128xf32>
    %c24_54 = arith.constant 24 : index
    %c0_55 = arith.constant 0 : index
    %137 = vector.load %arg14[%c24_54, %c0_55] : memref<64x128xf32, #tpu.memory_space<vmem>>, vector<8x128xf32>
    tpu.vector_store %arg14[%c24_54, %c0_55], %136 {strides = array<i32>} : memref<64x128xf32, #tpu.memory_space<vmem>>, vector<8x128xf32>,
    %c32 = arith.constant 32 : index
    %c0_56 = arith.constant 0 : index
    %138 = vector.load %arg15[%c32, %c0_56] : memref<64x512xf32, #tpu.memory_space<vmem>>, vector<8x512xf32>
    %cst_57 = arith.constant dense<0.000000e+00> : vector<8x512xf32>
    %139 = tpu.matmul %136, %17, %cst_57 {dimension_numbers = #tpu.dot_dimension_numbers<[1], [0], [0], [1], [0, 0, 1, 1], [], []>} : vector<8x128xf32>, vector<128x512xf32>, vector<8x512xf32> -> vector<8x512xf32>
    %140 = arith.addf %138, %139 : vector<8x512xf32>
    %141 = vector.extract_strided_slice %140 {offsets = [0, 0], sizes = [8, 128], strides = [1, 1]} : vector<8x512xf32> to vector<8x128xf32>
    %142 = arith.negf %141 : vector<8x128xf32>
    %143 = math.exp %142 : vector<8x128xf32>
    %cst_58 = arith.constant 1.000000e+00 : f32
    %144 = vector.broadcast %cst_58 : f32 to vector<8x128xf32>
    %145 = arith.addf %144, %143 : vector<8x128xf32>
    %146 = arith.divf %144, %145 : vector<8x128xf32>
    %147 = vector.extract_strided_slice %140 {offsets = [0, 128], sizes = [8, 128], strides = [1, 1]} : vector<8x512xf32> to vector<8x128xf32>
    %148 = arith.negf %147 : vector<8x128xf32>
    %149 = math.exp %148 : vector<8x128xf32>
    %cst_59 = arith.constant 1.000000e+00 : f32
    %150 = vector.broadcast %cst_59 : f32 to vector<8x128xf32>
    %151 = arith.addf %150, %149 : vector<8x128xf32>
    %152 = arith.divf %150, %151 : vector<8x128xf32>
    %153 = vector.extract_strided_slice %140 {offsets = [0, 256], sizes = [8, 128], strides = [1, 1]} : vector<8x512xf32> to vector<8x128xf32>
    %154 = math.tanh %153 : vector<8x128xf32>
    %155 = vector.extract_strided_slice %140 {offsets = [0, 384], sizes = [8, 128], strides = [1, 1]} : vector<8x512xf32> to vector<8x128xf32>
    %156 = arith.negf %155 : vector<8x128xf32>
    %157 = math.exp %156 : vector<8x128xf32>
    %cst_60 = arith.constant 1.000000e+00 : f32
    %158 = vector.broadcast %cst_60 : f32 to vector<8x128xf32>
    %159 = arith.addf %158, %157 : vector<8x128xf32>
    %160 = arith.divf %158, %159 : vector<8x128xf32>
    %161 = arith.mulf %152, %134 : vector<8x128xf32>
    %162 = arith.mulf %146, %154 : vector<8x128xf32>
    %163 = arith.addf %161, %162 : vector<8x128xf32>
    %164 = math.tanh %163 : vector<8x128xf32>
    %165 = arith.mulf %160, %164 : vector<8x128xf32>
    %c32_61 = arith.constant 32 : index
    %c0_62 = arith.constant 0 : index
    %166 = vector.load %arg14[%c32_61, %c0_62] : memref<64x128xf32, #tpu.memory_space<vmem>>, vector<8x128xf32>
    tpu.vector_store %arg14[%c32_61, %c0_62], %165 {strides = array<i32>} : memref<64x128xf32, #tpu.memory_space<vmem>>, vector<8x128xf32>,
    %c40 = arith.constant 40 : index
    %c0_63 = arith.constant 0 : index
    %167 = vector.load %arg15[%c40, %c0_63] : memref<64x512xf32, #tpu.memory_space<vmem>>, vector<8x512xf32>
    %cst_64 = arith.constant dense<0.000000e+00> : vector<8x512xf32>
    %168 = tpu.matmul %165, %17, %cst_64 {dimension_numbers = #tpu.dot_dimension_numbers<[1], [0], [0], [1], [0, 0, 1, 1], [], []>} : vector<8x128xf32>, vector<128x512xf32>, vector<8x512xf32> -> vector<8x512xf32>
    %169 = arith.addf %167, %168 : vector<8x512xf32>
    %170 = vector.extract_strided_slice %169 {offsets = [0, 0], sizes = [8, 128], strides = [1, 1]} : vector<8x512xf32> to vector<8x128xf32>
    %171 = arith.negf %170 : vector<8x128xf32>
    %172 = math.exp %171 : vector<8x128xf32>
    %cst_65 = arith.constant 1.000000e+00 : f32
    %173 = vector.broadcast %cst_65 : f32 to vector<8x128xf32>
    %174 = arith.addf %173, %172 : vector<8x128xf32>
    %175 = arith.divf %173, %174 : vector<8x128xf32>
    %176 = vector.extract_strided_slice %169 {offsets = [0, 128], sizes = [8, 128], strides = [1, 1]} : vector<8x512xf32> to vector<8x128xf32>
    %177 = arith.negf %176 : vector<8x128xf32>
    %178 = math.exp %177 : vector<8x128xf32>
    %cst_66 = arith.constant 1.000000e+00 : f32
    %179 = vector.broadcast %cst_66 : f32 to vector<8x128xf32>
    %180 = arith.addf %179, %178 : vector<8x128xf32>
    %181 = arith.divf %179, %180 : vector<8x128xf32>
    %182 = vector.extract_strided_slice %169 {offsets = [0, 256], sizes = [8, 128], strides = [1, 1]} : vector<8x512xf32> to vector<8x128xf32>
    %183 = math.tanh %182 : vector<8x128xf32>
    %184 = vector.extract_strided_slice %169 {offsets = [0, 384], sizes = [8, 128], strides = [1, 1]} : vector<8x512xf32> to vector<8x128xf32>
    %185 = arith.negf %184 : vector<8x128xf32>
    %186 = math.exp %185 : vector<8x128xf32>
    %cst_67 = arith.constant 1.000000e+00 : f32
    %187 = vector.broadcast %cst_67 : f32 to vector<8x128xf32>
    %188 = arith.addf %187, %186 : vector<8x128xf32>
    %189 = arith.divf %187, %188 : vector<8x128xf32>
    %190 = arith.mulf %181, %163 : vector<8x128xf32>
    %191 = arith.mulf %175, %183 : vector<8x128xf32>
    %192 = arith.addf %190, %191 : vector<8x128xf32>
    %193 = math.tanh %192 : vector<8x128xf32>
    %194 = arith.mulf %189, %193 : vector<8x128xf32>
    %c40_68 = arith.constant 40 : index
    %c0_69 = arith.constant 0 : index
    %195 = vector.load %arg14[%c40_68, %c0_69] : memref<64x128xf32, #tpu.memory_space<vmem>>, vector<8x128xf32>
    tpu.vector_store %arg14[%c40_68, %c0_69], %194 {strides = array<i32>} : memref<64x128xf32, #tpu.memory_space<vmem>>, vector<8x128xf32>,
    %c48 = arith.constant 48 : index
    %c0_70 = arith.constant 0 : index
    %196 = vector.load %arg15[%c48, %c0_70] : memref<64x512xf32, #tpu.memory_space<vmem>>, vector<8x512xf32>
    %cst_71 = arith.constant dense<0.000000e+00> : vector<8x512xf32>
    %197 = tpu.matmul %194, %17, %cst_71 {dimension_numbers = #tpu.dot_dimension_numbers<[1], [0], [0], [1], [0, 0, 1, 1], [], []>} : vector<8x128xf32>, vector<128x512xf32>, vector<8x512xf32> -> vector<8x512xf32>
    %198 = arith.addf %196, %197 : vector<8x512xf32>
    %199 = vector.extract_strided_slice %198 {offsets = [0, 0], sizes = [8, 128], strides = [1, 1]} : vector<8x512xf32> to vector<8x128xf32>
    %200 = arith.negf %199 : vector<8x128xf32>
    %201 = math.exp %200 : vector<8x128xf32>
    %cst_72 = arith.constant 1.000000e+00 : f32
    %202 = vector.broadcast %cst_72 : f32 to vector<8x128xf32>
    %203 = arith.addf %202, %201 : vector<8x128xf32>
    %204 = arith.divf %202, %203 : vector<8x128xf32>
    %205 = vector.extract_strided_slice %198 {offsets = [0, 128], sizes = [8, 128], strides = [1, 1]} : vector<8x512xf32> to vector<8x128xf32>
    %206 = arith.negf %205 : vector<8x128xf32>
    %207 = math.exp %206 : vector<8x128xf32>
    %cst_73 = arith.constant 1.000000e+00 : f32
    %208 = vector.broadcast %cst_73 : f32 to vector<8x128xf32>
    %209 = arith.addf %208, %207 : vector<8x128xf32>
    %210 = arith.divf %208, %209 : vector<8x128xf32>
    %211 = vector.extract_strided_slice %198 {offsets = [0, 256], sizes = [8, 128], strides = [1, 1]} : vector<8x512xf32> to vector<8x128xf32>
    %212 = math.tanh %211 : vector<8x128xf32>
    %213 = vector.extract_strided_slice %198 {offsets = [0, 384], sizes = [8, 128], strides = [1, 1]} : vector<8x512xf32> to vector<8x128xf32>
    %214 = arith.negf %213 : vector<8x128xf32>
    %215 = math.exp %214 : vector<8x128xf32>
    %cst_74 = arith.constant 1.000000e+00 : f32
    %216 = vector.broadcast %cst_74 : f32 to vector<8x128xf32>
    %217 = arith.addf %216, %215 : vector<8x128xf32>
    %218 = arith.divf %216, %217 : vector<8x128xf32>
    %219 = arith.mulf %210, %192 : vector<8x128xf32>
    %220 = arith.mulf %204, %212 : vector<8x128xf32>
    %221 = arith.addf %219, %220 : vector<8x128xf32>
    %222 = math.tanh %221 : vector<8x128xf32>
    %223 = arith.mulf %218, %222 : vector<8x128xf32>
    %c48_75 = arith.constant 48 : index
    %c0_76 = arith.constant 0 : index
    %224 = vector.load %arg14[%c48_75, %c0_76] : memref<64x128xf32, #tpu.memory_space<vmem>>, vector<8x128xf32>
    tpu.vector_store %arg14[%c48_75, %c0_76], %223 {strides = array<i32>} : memref<64x128xf32, #tpu.memory_space<vmem>>, vector<8x128xf32>,
    %c56 = arith.constant 56 : index
    %c0_77 = arith.constant 0 : index
    %225 = vector.load %arg15[%c56, %c0_77] : memref<64x512xf32, #tpu.memory_space<vmem>>, vector<8x512xf32>
    %cst_78 = arith.constant dense<0.000000e+00> : vector<8x512xf32>
    %226 = tpu.matmul %223, %17, %cst_78 {dimension_numbers = #tpu.dot_dimension_numbers<[1], [0], [0], [1], [0, 0, 1, 1], [], []>} : vector<8x128xf32>, vector<128x512xf32>, vector<8x512xf32> -> vector<8x512xf32>
    %227 = arith.addf %225, %226 : vector<8x512xf32>
    %228 = vector.extract_strided_slice %227 {offsets = [0, 0], sizes = [8, 128], strides = [1, 1]} : vector<8x512xf32> to vector<8x128xf32>
    %229 = arith.negf %228 : vector<8x128xf32>
    %230 = math.exp %229 : vector<8x128xf32>
    %cst_79 = arith.constant 1.000000e+00 : f32
    %231 = vector.broadcast %cst_79 : f32 to vector<8x128xf32>
    %232 = arith.addf %231, %230 : vector<8x128xf32>
    %233 = arith.divf %231, %232 : vector<8x128xf32>
    %234 = vector.extract_strided_slice %227 {offsets = [0, 128], sizes = [8, 128], strides = [1, 1]} : vector<8x512xf32> to vector<8x128xf32>
    %235 = arith.negf %234 : vector<8x128xf32>
    %236 = math.exp %235 : vector<8x128xf32>
    %cst_80 = arith.constant 1.000000e+00 : f32
    %237 = vector.broadcast %cst_80 : f32 to vector<8x128xf32>
    %238 = arith.addf %237, %236 : vector<8x128xf32>
    %239 = arith.divf %237, %238 : vector<8x128xf32>
    %240 = vector.extract_strided_slice %227 {offsets = [0, 256], sizes = [8, 128], strides = [1, 1]} : vector<8x512xf32> to vector<8x128xf32>
    %241 = math.tanh %240 : vector<8x128xf32>
    %242 = vector.extract_strided_slice %227 {offsets = [0, 384], sizes = [8, 128], strides = [1, 1]} : vector<8x512xf32> to vector<8x128xf32>
    %243 = arith.negf %242 : vector<8x128xf32>
    %244 = math.exp %243 : vector<8x128xf32>
    %cst_81 = arith.constant 1.000000e+00 : f32
    %245 = vector.broadcast %cst_81 : f32 to vector<8x128xf32>
    %246 = arith.addf %245, %244 : vector<8x128xf32>
    %247 = arith.divf %245, %246 : vector<8x128xf32>
    %248 = arith.mulf %239, %221 : vector<8x128xf32>
    %249 = arith.mulf %233, %241 : vector<8x128xf32>
    %250 = arith.addf %248, %249 : vector<8x128xf32>
    %251 = math.tanh %250 : vector<8x128xf32>
    %252 = arith.mulf %247, %251 : vector<8x128xf32>
    %c56_82 = arith.constant 56 : index
    %c0_83 = arith.constant 0 : index
    %253 = vector.load %arg14[%c56_82, %c0_83] : memref<64x128xf32, #tpu.memory_space<vmem>>, vector<8x128xf32>
    tpu.vector_store %arg14[%c56_82, %c0_83], %252 {strides = array<i32>} : memref<64x128xf32, #tpu.memory_space<vmem>>, vector<8x128xf32>,
    %c0_84 = arith.constant 0 : index
    %c0_85 = arith.constant 0 : index
    %c0_86 = arith.constant 0 : index
    %254 = vector.load %arg12[%c0_84, %c0_85, %c0_86] : memref<2x8x128xf32, #tpu.memory_space<vmem>>, vector<1x8x128xf32>
    %255 = vector.shape_cast %254 : vector<1x8x128xf32> to vector<8x128xf32>
    %256 = vector.shape_cast %252 : vector<8x128xf32> to vector<1x8x128xf32>
    tpu.vector_store %arg12[%c0_84, %c0_85, %c0_86], %256 {strides = array<i32>} : memref<2x8x128xf32, #tpu.memory_space<vmem>>, vector<1x8x128xf32>,
    %c0_87 = arith.constant 0 : index
    %c0_88 = arith.constant 0 : index
    %c0_89 = arith.constant 0 : index
    %257 = vector.load %arg13[%c0_87, %c0_88, %c0_89] : memref<2x8x128xf32, #tpu.memory_space<vmem>>, vector<1x8x128xf32>
    %258 = vector.shape_cast %257 : vector<1x8x128xf32> to vector<8x128xf32>
    %259 = vector.shape_cast %250 : vector<8x128xf32> to vector<1x8x128xf32>
    tpu.vector_store %arg13[%c0_87, %c0_88, %c0_89], %259 {strides = array<i32>} : memref<2x8x128xf32, #tpu.memory_space<vmem>>, vector<1x8x128xf32>,
    %c0_90 = arith.constant 0 : index
    %c0_91 = arith.constant 0 : index
    %260 = vector.load %arg14[%c0_90, %c0_91] : memref<64x128xf32, #tpu.memory_space<vmem>>, vector<64x128xf32>
    %c1 = arith.constant 1 : index
    %c0_92 = arith.constant 0 : index
    %c0_93 = arith.constant 0 : index
    %261 = vector.load %arg4[%c1, %c0_92, %c0_93] : memref<2x128x512xf32, #tpu.memory_space<vmem>>, vector<1x128x512xf32>
    %262 = vector.shape_cast %261 : vector<1x128x512xf32> to vector<128x512xf32>
    %cst_94 = arith.constant dense<0.000000e+00> : vector<64x512xf32>
    %263 = tpu.matmul %260, %262, %cst_94 {dimension_numbers = #tpu.dot_dimension_numbers<[1], [0], [0], [1], [0, 0, 1, 1], [], []>} : vector<64x128xf32>, vector<128x512xf32>, vector<64x512xf32> -> vector<64x512xf32>
    %c1_95 = arith.constant 1 : index
    %c0_96 = arith.constant 0 : index
    %c0_97 = arith.constant 0 : index
    %264 = vector.load %arg6[%c1_95, %c0_96, %c0_97] : memref<2x1x512xf32, #tpu.memory_space<vmem>>, vector<1x1x512xf32>
    %265 = vector.shape_cast %264 : vector<1x1x512xf32> to vector<1x512xf32>
    %266 = vector.broadcast %265 : vector<1x512xf32> to vector<64x512xf32>
    %267 = arith.addf %263, %266 : vector<64x512xf32>
    %c0_98 = arith.constant 0 : index
    %c0_99 = arith.constant 0 : index
    %268 = vector.load %arg15[%c0_98, %c0_99] : memref<64x512xf32, #tpu.memory_space<vmem>>, vector<64x512xf32>
    tpu.vector_store %arg15[%c0_98, %c0_99], %267 {strides = array<i32>} : memref<64x512xf32, #tpu.memory_space<vmem>>, vector<64x512xf32>,
    %c1_100 = arith.constant 1 : index
    %c0_101 = arith.constant 0 : index
    %c0_102 = arith.constant 0 : index
    %269 = vector.load %arg5[%c1_100, %c0_101, %c0_102] : memref<2x128x512xf32, #tpu.memory_space<vmem>>, vector<1x128x512xf32>
    %270 = vector.shape_cast %269 : vector<1x128x512xf32> to vector<128x512xf32>
    %c1_103 = arith.constant 1 : index
    %c0_104 = arith.constant 0 : index
    %c0_105 = arith.constant 0 : index
    %271 = vector.load %arg9[%c1_103, %c0_104, %c0_105] : memref<2x8x128xf32, #tpu.memory_space<vmem>>, vector<1x8x128xf32>
    %272 = vector.shape_cast %271 : vector<1x8x128xf32> to vector<8x128xf32>
    %c1_106 = arith.constant 1 : index
    %c0_107 = arith.constant 0 : index
    %c0_108 = arith.constant 0 : index
    %273 = vector.load %arg10[%c1_106, %c0_107, %c0_108] : memref<2x8x128xf32, #tpu.memory_space<vmem>>, vector<1x8x128xf32>
    %274 = vector.shape_cast %273 : vector<1x8x128xf32> to vector<8x128xf32>
    %c0_109 = arith.constant 0 : index
    %c0_110 = arith.constant 0 : index
    %275 = vector.load %arg15[%c0_109, %c0_110] : memref<64x512xf32, #tpu.memory_space<vmem>>, vector<8x512xf32>
    %cst_111 = arith.constant dense<0.000000e+00> : vector<8x512xf32>
    %276 = tpu.matmul %272, %270, %cst_111 {dimension_numbers = #tpu.dot_dimension_numbers<[1], [0], [0], [1], [0, 0, 1, 1], [], []>} : vector<8x128xf32>, vector<128x512xf32>, vector<8x512xf32> -> vector<8x512xf32>
    %277 = arith.addf %275, %276 : vector<8x512xf32>
    %278 = vector.extract_strided_slice %277 {offsets = [0, 0], sizes = [8, 128], strides = [1, 1]} : vector<8x512xf32> to vector<8x128xf32>
    %279 = arith.negf %278 : vector<8x128xf32>
    %280 = math.exp %279 : vector<8x128xf32>
    %cst_112 = arith.constant 1.000000e+00 : f32
    %281 = vector.broadcast %cst_112 : f32 to vector<8x128xf32>
    %282 = arith.addf %281, %280 : vector<8x128xf32>
    %283 = arith.divf %281, %282 : vector<8x128xf32>
    %284 = vector.extract_strided_slice %277 {offsets = [0, 128], sizes = [8, 128], strides = [1, 1]} : vector<8x512xf32> to vector<8x128xf32>
    %285 = arith.negf %284 : vector<8x128xf32>
    %286 = math.exp %285 : vector<8x128xf32>
    %cst_113 = arith.constant 1.000000e+00 : f32
    %287 = vector.broadcast %cst_113 : f32 to vector<8x128xf32>
    %288 = arith.addf %287, %286 : vector<8x128xf32>
    %289 = arith.divf %287, %288 : vector<8x128xf32>
    %290 = vector.extract_strided_slice %277 {offsets = [0, 256], sizes = [8, 128], strides = [1, 1]} : vector<8x512xf32> to vector<8x128xf32>
    %291 = math.tanh %290 : vector<8x128xf32>
    %292 = vector.extract_strided_slice %277 {offsets = [0, 384], sizes = [8, 128], strides = [1, 1]} : vector<8x512xf32> to vector<8x128xf32>
    %293 = arith.negf %292 : vector<8x128xf32>
    %294 = math.exp %293 : vector<8x128xf32>
    %cst_114 = arith.constant 1.000000e+00 : f32
    %295 = vector.broadcast %cst_114 : f32 to vector<8x128xf32>
    %296 = arith.addf %295, %294 : vector<8x128xf32>
    %297 = arith.divf %295, %296 : vector<8x128xf32>
    %298 = arith.mulf %289, %274 : vector<8x128xf32>
    %299 = arith.mulf %283, %291 : vector<8x128xf32>
    %300 = arith.addf %298, %299 : vector<8x128xf32>
    %301 = math.tanh %300 : vector<8x128xf32>
    %302 = arith.mulf %297, %301 : vector<8x128xf32>
    %c0_115 = arith.constant 0 : index
    %c0_116 = arith.constant 0 : index
    %303 = vector.load %arg14[%c0_115, %c0_116] : memref<64x128xf32, #tpu.memory_space<vmem>>, vector<8x128xf32>
    tpu.vector_store %arg14[%c0_115, %c0_116], %302 {strides = array<i32>} : memref<64x128xf32, #tpu.memory_space<vmem>>, vector<8x128xf32>,
    %c8_117 = arith.constant 8 : index
    %c0_118 = arith.constant 0 : index
    %304 = vector.load %arg15[%c8_117, %c0_118] : memref<64x512xf32, #tpu.memory_space<vmem>>, vector<8x512xf32>
    %cst_119 = arith.constant dense<0.000000e+00> : vector<8x512xf32>
    %305 = tpu.matmul %302, %270, %cst_119 {dimension_numbers = #tpu.dot_dimension_numbers<[1], [0], [0], [1], [0, 0, 1, 1], [], []>} : vector<8x128xf32>, vector<128x512xf32>, vector<8x512xf32> -> vector<8x512xf32>
    %306 = arith.addf %304, %305 : vector<8x512xf32>
    %307 = vector.extract_strided_slice %306 {offsets = [0, 0], sizes = [8, 128], strides = [1, 1]} : vector<8x512xf32> to vector<8x128xf32>
    %308 = arith.negf %307 : vector<8x128xf32>
    %309 = math.exp %308 : vector<8x128xf32>
    %cst_120 = arith.constant 1.000000e+00 : f32
    %310 = vector.broadcast %cst_120 : f32 to vector<8x128xf32>
    %311 = arith.addf %310, %309 : vector<8x128xf32>
    %312 = arith.divf %310, %311 : vector<8x128xf32>
    %313 = vector.extract_strided_slice %306 {offsets = [0, 128], sizes = [8, 128], strides = [1, 1]} : vector<8x512xf32> to vector<8x128xf32>
    %314 = arith.negf %313 : vector<8x128xf32>
    %315 = math.exp %314 : vector<8x128xf32>
    %cst_121 = arith.constant 1.000000e+00 : f32
    %316 = vector.broadcast %cst_121 : f32 to vector<8x128xf32>
    %317 = arith.addf %316, %315 : vector<8x128xf32>
    %318 = arith.divf %316, %317 : vector<8x128xf32>
    %319 = vector.extract_strided_slice %306 {offsets = [0, 256], sizes = [8, 128], strides = [1, 1]} : vector<8x512xf32> to vector<8x128xf32>
    %320 = math.tanh %319 : vector<8x128xf32>
    %321 = vector.extract_strided_slice %306 {offsets = [0, 384], sizes = [8, 128], strides = [1, 1]} : vector<8x512xf32> to vector<8x128xf32>
    %322 = arith.negf %321 : vector<8x128xf32>
    %323 = math.exp %322 : vector<8x128xf32>
    %cst_122 = arith.constant 1.000000e+00 : f32
    %324 = vector.broadcast %cst_122 : f32 to vector<8x128xf32>
    %325 = arith.addf %324, %323 : vector<8x128xf32>
    %326 = arith.divf %324, %325 : vector<8x128xf32>
    %327 = arith.mulf %318, %300 : vector<8x128xf32>
    %328 = arith.mulf %312, %320 : vector<8x128xf32>
    %329 = arith.addf %327, %328 : vector<8x128xf32>
    %330 = math.tanh %329 : vector<8x128xf32>
    %331 = arith.mulf %326, %330 : vector<8x128xf32>
    %c8_123 = arith.constant 8 : index
    %c0_124 = arith.constant 0 : index
    %332 = vector.load %arg14[%c8_123, %c0_124] : memref<64x128xf32, #tpu.memory_space<vmem>>, vector<8x128xf32>
    tpu.vector_store %arg14[%c8_123, %c0_124], %331 {strides = array<i32>} : memref<64x128xf32, #tpu.memory_space<vmem>>, vector<8x128xf32>,
    %c16_125 = arith.constant 16 : index
    %c0_126 = arith.constant 0 : index
    %333 = vector.load %arg15[%c16_125, %c0_126] : memref<64x512xf32, #tpu.memory_space<vmem>>, vector<8x512xf32>
    %cst_127 = arith.constant dense<0.000000e+00> : vector<8x512xf32>
    %334 = tpu.matmul %331, %270, %cst_127 {dimension_numbers = #tpu.dot_dimension_numbers<[1], [0], [0], [1], [0, 0, 1, 1], [], []>} : vector<8x128xf32>, vector<128x512xf32>, vector<8x512xf32> -> vector<8x512xf32>
    %335 = arith.addf %333, %334 : vector<8x512xf32>
    %336 = vector.extract_strided_slice %335 {offsets = [0, 0], sizes = [8, 128], strides = [1, 1]} : vector<8x512xf32> to vector<8x128xf32>
    %337 = arith.negf %336 : vector<8x128xf32>
    %338 = math.exp %337 : vector<8x128xf32>
    %cst_128 = arith.constant 1.000000e+00 : f32
    %339 = vector.broadcast %cst_128 : f32 to vector<8x128xf32>
    %340 = arith.addf %339, %338 : vector<8x128xf32>
    %341 = arith.divf %339, %340 : vector<8x128xf32>
    %342 = vector.extract_strided_slice %335 {offsets = [0, 128], sizes = [8, 128], strides = [1, 1]} : vector<8x512xf32> to vector<8x128xf32>
    %343 = arith.negf %342 : vector<8x128xf32>
    %344 = math.exp %343 : vector<8x128xf32>
    %cst_129 = arith.constant 1.000000e+00 : f32
    %345 = vector.broadcast %cst_129 : f32 to vector<8x128xf32>
    %346 = arith.addf %345, %344 : vector<8x128xf32>
    %347 = arith.divf %345, %346 : vector<8x128xf32>
    %348 = vector.extract_strided_slice %335 {offsets = [0, 256], sizes = [8, 128], strides = [1, 1]} : vector<8x512xf32> to vector<8x128xf32>
    %349 = math.tanh %348 : vector<8x128xf32>
    %350 = vector.extract_strided_slice %335 {offsets = [0, 384], sizes = [8, 128], strides = [1, 1]} : vector<8x512xf32> to vector<8x128xf32>
    %351 = arith.negf %350 : vector<8x128xf32>
    %352 = math.exp %351 : vector<8x128xf32>
    %cst_130 = arith.constant 1.000000e+00 : f32
    %353 = vector.broadcast %cst_130 : f32 to vector<8x128xf32>
    %354 = arith.addf %353, %352 : vector<8x128xf32>
    %355 = arith.divf %353, %354 : vector<8x128xf32>
    %356 = arith.mulf %347, %329 : vector<8x128xf32>
    %357 = arith.mulf %341, %349 : vector<8x128xf32>
    %358 = arith.addf %356, %357 : vector<8x128xf32>
    %359 = math.tanh %358 : vector<8x128xf32>
    %360 = arith.mulf %355, %359 : vector<8x128xf32>
    %c16_131 = arith.constant 16 : index
    %c0_132 = arith.constant 0 : index
    %361 = vector.load %arg14[%c16_131, %c0_132] : memref<64x128xf32, #tpu.memory_space<vmem>>, vector<8x128xf32>
    tpu.vector_store %arg14[%c16_131, %c0_132], %360 {strides = array<i32>} : memref<64x128xf32, #tpu.memory_space<vmem>>, vector<8x128xf32>,
    %c24_133 = arith.constant 24 : index
    %c0_134 = arith.constant 0 : index
    %362 = vector.load %arg15[%c24_133, %c0_134] : memref<64x512xf32, #tpu.memory_space<vmem>>, vector<8x512xf32>
    %cst_135 = arith.constant dense<0.000000e+00> : vector<8x512xf32>
    %363 = tpu.matmul %360, %270, %cst_135 {dimension_numbers = #tpu.dot_dimension_numbers<[1], [0], [0], [1], [0, 0, 1, 1], [], []>} : vector<8x128xf32>, vector<128x512xf32>, vector<8x512xf32> -> vector<8x512xf32>
    %364 = arith.addf %362, %363 : vector<8x512xf32>
    %365 = vector.extract_strided_slice %364 {offsets = [0, 0], sizes = [8, 128], strides = [1, 1]} : vector<8x512xf32> to vector<8x128xf32>
    %366 = arith.negf %365 : vector<8x128xf32>
    %367 = math.exp %366 : vector<8x128xf32>
    %cst_136 = arith.constant 1.000000e+00 : f32
    %368 = vector.broadcast %cst_136 : f32 to vector<8x128xf32>
    %369 = arith.addf %368, %367 : vector<8x128xf32>
    %370 = arith.divf %368, %369 : vector<8x128xf32>
    %371 = vector.extract_strided_slice %364 {offsets = [0, 128], sizes = [8, 128], strides = [1, 1]} : vector<8x512xf32> to vector<8x128xf32>
    %372 = arith.negf %371 : vector<8x128xf32>
    %373 = math.exp %372 : vector<8x128xf32>
    %cst_137 = arith.constant 1.000000e+00 : f32
    %374 = vector.broadcast %cst_137 : f32 to vector<8x128xf32>
    %375 = arith.addf %374, %373 : vector<8x128xf32>
    %376 = arith.divf %374, %375 : vector<8x128xf32>
    %377 = vector.extract_strided_slice %364 {offsets = [0, 256], sizes = [8, 128], strides = [1, 1]} : vector<8x512xf32> to vector<8x128xf32>
    %378 = math.tanh %377 : vector<8x128xf32>
    %379 = vector.extract_strided_slice %364 {offsets = [0, 384], sizes = [8, 128], strides = [1, 1]} : vector<8x512xf32> to vector<8x128xf32>
    %380 = arith.negf %379 : vector<8x128xf32>
    %381 = math.exp %380 : vector<8x128xf32>
    %cst_138 = arith.constant 1.000000e+00 : f32
    %382 = vector.broadcast %cst_138 : f32 to vector<8x128xf32>
    %383 = arith.addf %382, %381 : vector<8x128xf32>
    %384 = arith.divf %382, %383 : vector<8x128xf32>
    %385 = arith.mulf %376, %358 : vector<8x128xf32>
    %386 = arith.mulf %370, %378 : vector<8x128xf32>
    %387 = arith.addf %385, %386 : vector<8x128xf32>
    %388 = math.tanh %387 : vector<8x128xf32>
    %389 = arith.mulf %384, %388 : vector<8x128xf32>
    %c24_139 = arith.constant 24 : index
    %c0_140 = arith.constant 0 : index
    %390 = vector.load %arg14[%c24_139, %c0_140] : memref<64x128xf32, #tpu.memory_space<vmem>>, vector<8x128xf32>
    tpu.vector_store %arg14[%c24_139, %c0_140], %389 {strides = array<i32>} : memref<64x128xf32, #tpu.memory_space<vmem>>, vector<8x128xf32>,
    %c32_141 = arith.constant 32 : index
    %c0_142 = arith.constant 0 : index
    %391 = vector.load %arg15[%c32_141, %c0_142] : memref<64x512xf32, #tpu.memory_space<vmem>>, vector<8x512xf32>
    %cst_143 = arith.constant dense<0.000000e+00> : vector<8x512xf32>
    %392 = tpu.matmul %389, %270, %cst_143 {dimension_numbers = #tpu.dot_dimension_numbers<[1], [0], [0], [1], [0, 0, 1, 1], [], []>} : vector<8x128xf32>, vector<128x512xf32>, vector<8x512xf32> -> vector<8x512xf32>
    %393 = arith.addf %391, %392 : vector<8x512xf32>
    %394 = vector.extract_strided_slice %393 {offsets = [0, 0], sizes = [8, 128], strides = [1, 1]} : vector<8x512xf32> to vector<8x128xf32>
    %395 = arith.negf %394 : vector<8x128xf32>
    %396 = math.exp %395 : vector<8x128xf32>
    %cst_144 = arith.constant 1.000000e+00 : f32
    %397 = vector.broadcast %cst_144 : f32 to vector<8x128xf32>
    %398 = arith.addf %397, %396 : vector<8x128xf32>
    %399 = arith.divf %397, %398 : vector<8x128xf32>
    %400 = vector.extract_strided_slice %393 {offsets = [0, 128], sizes = [8, 128], strides = [1, 1]} : vector<8x512xf32> to vector<8x128xf32>
    %401 = arith.negf %400 : vector<8x128xf32>
    %402 = math.exp %401 : vector<8x128xf32>
    %cst_145 = arith.constant 1.000000e+00 : f32
    %403 = vector.broadcast %cst_145 : f32 to vector<8x128xf32>
    %404 = arith.addf %403, %402 : vector<8x128xf32>
    %405 = arith.divf %403, %404 : vector<8x128xf32>
    %406 = vector.extract_strided_slice %393 {offsets = [0, 256], sizes = [8, 128], strides = [1, 1]} : vector<8x512xf32> to vector<8x128xf32>
    %407 = math.tanh %406 : vector<8x128xf32>
    %408 = vector.extract_strided_slice %393 {offsets = [0, 384], sizes = [8, 128], strides = [1, 1]} : vector<8x512xf32> to vector<8x128xf32>
    %409 = arith.negf %408 : vector<8x128xf32>
    %410 = math.exp %409 : vector<8x128xf32>
    %cst_146 = arith.constant 1.000000e+00 : f32
    %411 = vector.broadcast %cst_146 : f32 to vector<8x128xf32>
    %412 = arith.addf %411, %410 : vector<8x128xf32>
    %413 = arith.divf %411, %412 : vector<8x128xf32>
    %414 = arith.mulf %405, %387 : vector<8x128xf32>
    %415 = arith.mulf %399, %407 : vector<8x128xf32>
    %416 = arith.addf %414, %415 : vector<8x128xf32>
    %417 = math.tanh %416 : vector<8x128xf32>
    %418 = arith.mulf %413, %417 : vector<8x128xf32>
    %c32_147 = arith.constant 32 : index
    %c0_148 = arith.constant 0 : index
    %419 = vector.load %arg14[%c32_147, %c0_148] : memref<64x128xf32, #tpu.memory_space<vmem>>, vector<8x128xf32>
    tpu.vector_store %arg14[%c32_147, %c0_148], %418 {strides = array<i32>} : memref<64x128xf32, #tpu.memory_space<vmem>>, vector<8x128xf32>,
    %c40_149 = arith.constant 40 : index
    %c0_150 = arith.constant 0 : index
    %420 = vector.load %arg15[%c40_149, %c0_150] : memref<64x512xf32, #tpu.memory_space<vmem>>, vector<8x512xf32>
    %cst_151 = arith.constant dense<0.000000e+00> : vector<8x512xf32>
    %421 = tpu.matmul %418, %270, %cst_151 {dimension_numbers = #tpu.dot_dimension_numbers<[1], [0], [0], [1], [0, 0, 1, 1], [], []>} : vector<8x128xf32>, vector<128x512xf32>, vector<8x512xf32> -> vector<8x512xf32>
    %422 = arith.addf %420, %421 : vector<8x512xf32>
    %423 = vector.extract_strided_slice %422 {offsets = [0, 0], sizes = [8, 128], strides = [1, 1]} : vector<8x512xf32> to vector<8x128xf32>
    %424 = arith.negf %423 : vector<8x128xf32>
    %425 = math.exp %424 : vector<8x128xf32>
    %cst_152 = arith.constant 1.000000e+00 : f32
    %426 = vector.broadcast %cst_152 : f32 to vector<8x128xf32>
    %427 = arith.addf %426, %425 : vector<8x128xf32>
    %428 = arith.divf %426, %427 : vector<8x128xf32>
    %429 = vector.extract_strided_slice %422 {offsets = [0, 128], sizes = [8, 128], strides = [1, 1]} : vector<8x512xf32> to vector<8x128xf32>
    %430 = arith.negf %429 : vector<8x128xf32>
    %431 = math.exp %430 : vector<8x128xf32>
    %cst_153 = arith.constant 1.000000e+00 : f32
    %432 = vector.broadcast %cst_153 : f32 to vector<8x128xf32>
    %433 = arith.addf %432, %431 : vector<8x128xf32>
    %434 = arith.divf %432, %433 : vector<8x128xf32>
    %435 = vector.extract_strided_slice %422 {offsets = [0, 256], sizes = [8, 128], strides = [1, 1]} : vector<8x512xf32> to vector<8x128xf32>
    %436 = math.tanh %435 : vector<8x128xf32>
    %437 = vector.extract_strided_slice %422 {offsets = [0, 384], sizes = [8, 128], strides = [1, 1]} : vector<8x512xf32> to vector<8x128xf32>
    %438 = arith.negf %437 : vector<8x128xf32>
    %439 = math.exp %438 : vector<8x128xf32>
    %cst_154 = arith.constant 1.000000e+00 : f32
    %440 = vector.broadcast %cst_154 : f32 to vector<8x128xf32>
    %441 = arith.addf %440, %439 : vector<8x128xf32>
    %442 = arith.divf %440, %441 : vector<8x128xf32>
    %443 = arith.mulf %434, %416 : vector<8x128xf32>
    %444 = arith.mulf %428, %436 : vector<8x128xf32>
    %445 = arith.addf %443, %444 : vector<8x128xf32>
    %446 = math.tanh %445 : vector<8x128xf32>
    %447 = arith.mulf %442, %446 : vector<8x128xf32>
    %c40_155 = arith.constant 40 : index
    %c0_156 = arith.constant 0 : index
    %448 = vector.load %arg14[%c40_155, %c0_156] : memref<64x128xf32, #tpu.memory_space<vmem>>, vector<8x128xf32>
    tpu.vector_store %arg14[%c40_155, %c0_156], %447 {strides = array<i32>} : memref<64x128xf32, #tpu.memory_space<vmem>>, vector<8x128xf32>,
    %c48_157 = arith.constant 48 : index
    %c0_158 = arith.constant 0 : index
    %449 = vector.load %arg15[%c48_157, %c0_158] : memref<64x512xf32, #tpu.memory_space<vmem>>, vector<8x512xf32>
    %cst_159 = arith.constant dense<0.000000e+00> : vector<8x512xf32>
    %450 = tpu.matmul %447, %270, %cst_159 {dimension_numbers = #tpu.dot_dimension_numbers<[1], [0], [0], [1], [0, 0, 1, 1], [], []>} : vector<8x128xf32>, vector<128x512xf32>, vector<8x512xf32> -> vector<8x512xf32>
    %451 = arith.addf %449, %450 : vector<8x512xf32>
    %452 = vector.extract_strided_slice %451 {offsets = [0, 0], sizes = [8, 128], strides = [1, 1]} : vector<8x512xf32> to vector<8x128xf32>
    %453 = arith.negf %452 : vector<8x128xf32>
    %454 = math.exp %453 : vector<8x128xf32>
    %cst_160 = arith.constant 1.000000e+00 : f32
    %455 = vector.broadcast %cst_160 : f32 to vector<8x128xf32>
    %456 = arith.addf %455, %454 : vector<8x128xf32>
    %457 = arith.divf %455, %456 : vector<8x128xf32>
    %458 = vector.extract_strided_slice %451 {offsets = [0, 128], sizes = [8, 128], strides = [1, 1]} : vector<8x512xf32> to vector<8x128xf32>
    %459 = arith.negf %458 : vector<8x128xf32>
    %460 = math.exp %459 : vector<8x128xf32>
    %cst_161 = arith.constant 1.000000e+00 : f32
    %461 = vector.broadcast %cst_161 : f32 to vector<8x128xf32>
    %462 = arith.addf %461, %460 : vector<8x128xf32>
    %463 = arith.divf %461, %462 : vector<8x128xf32>
    %464 = vector.extract_strided_slice %451 {offsets = [0, 256], sizes = [8, 128], strides = [1, 1]} : vector<8x512xf32> to vector<8x128xf32>
    %465 = math.tanh %464 : vector<8x128xf32>
    %466 = vector.extract_strided_slice %451 {offsets = [0, 384], sizes = [8, 128], strides = [1, 1]} : vector<8x512xf32> to vector<8x128xf32>
    %467 = arith.negf %466 : vector<8x128xf32>
    %468 = math.exp %467 : vector<8x128xf32>
    %cst_162 = arith.constant 1.000000e+00 : f32
    %469 = vector.broadcast %cst_162 : f32 to vector<8x128xf32>
    %470 = arith.addf %469, %468 : vector<8x128xf32>
    %471 = arith.divf %469, %470 : vector<8x128xf32>
    %472 = arith.mulf %463, %445 : vector<8x128xf32>
    %473 = arith.mulf %457, %465 : vector<8x128xf32>
    %474 = arith.addf %472, %473 : vector<8x128xf32>
    %475 = math.tanh %474 : vector<8x128xf32>
    %476 = arith.mulf %471, %475 : vector<8x128xf32>
    %c48_163 = arith.constant 48 : index
    %c0_164 = arith.constant 0 : index
    %477 = vector.load %arg14[%c48_163, %c0_164] : memref<64x128xf32, #tpu.memory_space<vmem>>, vector<8x128xf32>
    tpu.vector_store %arg14[%c48_163, %c0_164], %476 {strides = array<i32>} : memref<64x128xf32, #tpu.memory_space<vmem>>, vector<8x128xf32>,
    %c56_165 = arith.constant 56 : index
    %c0_166 = arith.constant 0 : index
    %478 = vector.load %arg15[%c56_165, %c0_166] : memref<64x512xf32, #tpu.memory_space<vmem>>, vector<8x512xf32>
    %cst_167 = arith.constant dense<0.000000e+00> : vector<8x512xf32>
    %479 = tpu.matmul %476, %270, %cst_167 {dimension_numbers = #tpu.dot_dimension_numbers<[1], [0], [0], [1], [0, 0, 1, 1], [], []>} : vector<8x128xf32>, vector<128x512xf32>, vector<8x512xf32> -> vector<8x512xf32>
    %480 = arith.addf %478, %479 : vector<8x512xf32>
    %481 = vector.extract_strided_slice %480 {offsets = [0, 0], sizes = [8, 128], strides = [1, 1]} : vector<8x512xf32> to vector<8x128xf32>
    %482 = arith.negf %481 : vector<8x128xf32>
    %483 = math.exp %482 : vector<8x128xf32>
    %cst_168 = arith.constant 1.000000e+00 : f32
    %484 = vector.broadcast %cst_168 : f32 to vector<8x128xf32>
    %485 = arith.addf %484, %483 : vector<8x128xf32>
    %486 = arith.divf %484, %485 : vector<8x128xf32>
    %487 = vector.extract_strided_slice %480 {offsets = [0, 128], sizes = [8, 128], strides = [1, 1]} : vector<8x512xf32> to vector<8x128xf32>
    %488 = arith.negf %487 : vector<8x128xf32>
    %489 = math.exp %488 : vector<8x128xf32>
    %cst_169 = arith.constant 1.000000e+00 : f32
    %490 = vector.broadcast %cst_169 : f32 to vector<8x128xf32>
    %491 = arith.addf %490, %489 : vector<8x128xf32>
    %492 = arith.divf %490, %491 : vector<8x128xf32>
    %493 = vector.extract_strided_slice %480 {offsets = [0, 256], sizes = [8, 128], strides = [1, 1]} : vector<8x512xf32> to vector<8x128xf32>
    %494 = math.tanh %493 : vector<8x128xf32>
    %495 = vector.extract_strided_slice %480 {offsets = [0, 384], sizes = [8, 128], strides = [1, 1]} : vector<8x512xf32> to vector<8x128xf32>
    %496 = arith.negf %495 : vector<8x128xf32>
    %497 = math.exp %496 : vector<8x128xf32>
    %cst_170 = arith.constant 1.000000e+00 : f32
    %498 = vector.broadcast %cst_170 : f32 to vector<8x128xf32>
    %499 = arith.addf %498, %497 : vector<8x128xf32>
    %500 = arith.divf %498, %499 : vector<8x128xf32>
    %501 = arith.mulf %492, %474 : vector<8x128xf32>
    %502 = arith.mulf %486, %494 : vector<8x128xf32>
    %503 = arith.addf %501, %502 : vector<8x128xf32>
    %504 = math.tanh %503 : vector<8x128xf32>
    %505 = arith.mulf %500, %504 : vector<8x128xf32>
    %c56_171 = arith.constant 56 : index
    %c0_172 = arith.constant 0 : index
    %506 = vector.load %arg14[%c56_171, %c0_172] : memref<64x128xf32, #tpu.memory_space<vmem>>, vector<8x128xf32>
    tpu.vector_store %arg14[%c56_171, %c0_172], %505 {strides = array<i32>} : memref<64x128xf32, #tpu.memory_space<vmem>>, vector<8x128xf32>,
    %c1_173 = arith.constant 1 : index
    %c0_174 = arith.constant 0 : index
    %c0_175 = arith.constant 0 : index
    %507 = vector.load %arg12[%c1_173, %c0_174, %c0_175] : memref<2x8x128xf32, #tpu.memory_space<vmem>>, vector<1x8x128xf32>
    %508 = vector.shape_cast %507 : vector<1x8x128xf32> to vector<8x128xf32>
    %509 = vector.shape_cast %505 : vector<8x128xf32> to vector<1x8x128xf32>
    tpu.vector_store %arg12[%c1_173, %c0_174, %c0_175], %509 {strides = array<i32>} : memref<2x8x128xf32, #tpu.memory_space<vmem>>, vector<1x8x128xf32>,
    %c1_176 = arith.constant 1 : index
    %c0_177 = arith.constant 0 : index
    %c0_178 = arith.constant 0 : index
    %510 = vector.load %arg13[%c1_176, %c0_177, %c0_178] : memref<2x8x128xf32, #tpu.memory_space<vmem>>, vector<1x8x128xf32>
    %511 = vector.shape_cast %510 : vector<1x8x128xf32> to vector<8x128xf32>
    %512 = vector.shape_cast %503 : vector<8x128xf32> to vector<1x8x128xf32>
    tpu.vector_store %arg13[%c1_176, %c0_177, %c0_178], %512 {strides = array<i32>} : memref<2x8x128xf32, #tpu.memory_space<vmem>>, vector<1x8x128xf32>,
    %c0_179 = arith.constant 0 : index
    %c0_180 = arith.constant 0 : index
    %513 = vector.load %arg14[%c0_179, %c0_180] : memref<64x128xf32, #tpu.memory_space<vmem>>, vector<64x128xf32>
    %c0_181 = arith.constant 0 : index
    %c0_182 = arith.constant 0 : index
    %514 = vector.load %arg7[%c0_181, %c0_182] : memref<128x128xf32, #tpu.memory_space<vmem>>, vector<128x128xf32>
    %cst_183 = arith.constant dense<0.000000e+00> : vector<64x128xf32>
    %515 = tpu.matmul %513, %514, %cst_183 {dimension_numbers = #tpu.dot_dimension_numbers<[1], [0], [0], [1], [0, 0, 1, 1], [], []>} : vector<64x128xf32>, vector<128x128xf32>, vector<64x128xf32> -> vector<64x128xf32>
    %c0_184 = arith.constant 0 : index
    %c0_185 = arith.constant 0 : index
    %516 = vector.load %arg8[%c0_184, %c0_185] : memref<1x128xf32, #tpu.memory_space<vmem>>, vector<1x128xf32>
    %517 = vector.broadcast %516 : vector<1x128xf32> to vector<64x128xf32>
    %518 = arith.addf %515, %517 : vector<64x128xf32>
    %c0_186 = arith.constant 0 : index
    %c0_187 = arith.constant 0 : index
    %519 = vector.load %arg11[%c0_186, %c0_187] : memref<64x128xf32, #tpu.memory_space<vmem>>, vector<64x128xf32>
    tpu.vector_store %arg11[%c0_186, %c0_187], %518 {strides = array<i32>} : memref<64x128xf32, #tpu.memory_space<vmem>>, vector<64x128xf32>,
    return
  }
  func.func @transform_0(%arg0: i32) -> (i32, i32) {
    %c0_i32 = arith.constant 0 : i32
    %c0_i32_0 = arith.constant 0 : i32
    %c0_i32_1 = arith.constant 0 : i32
    return %c0_i32, %c0_i32_0 : i32, i32
  }
  func.func @transform_1(%arg0: i32) -> (i32, i32) {
    %c0_i32 = arith.constant 0 : i32
    %c0_i32_0 = arith.constant 0 : i32
    %c0_i32_1 = arith.constant 0 : i32
    return %c0_i32, %c0_i32_0 : i32, i32
  }
  func.func @transform_2(%arg0: i32) -> (i32, i32) {
    %c0_i32 = arith.constant 0 : i32
    %c0_i32_0 = arith.constant 0 : i32
    %c0_i32_1 = arith.constant 0 : i32
    return %c0_i32, %c0_i32_0 : i32, i32
  }
  func.func @transform_3(%arg0: i32) -> (i32, i32, i32) {
    %c0_i32 = arith.constant 0 : i32
    %c0_i32_0 = arith.constant 0 : i32
    %c0_i32_1 = arith.constant 0 : i32
    %c0_i32_2 = arith.constant 0 : i32
    return %c0_i32, %c0_i32_0, %c0_i32_1 : i32, i32, i32
  }
  func.func @transform_4(%arg0: i32) -> (i32, i32, i32) {
    %c0_i32 = arith.constant 0 : i32
    %c0_i32_0 = arith.constant 0 : i32
    %c0_i32_1 = arith.constant 0 : i32
    %c0_i32_2 = arith.constant 0 : i32
    return %c0_i32, %c0_i32_0, %c0_i32_1 : i32, i32, i32
  }
  func.func @transform_5(%arg0: i32) -> (i32, i32, i32) {
    %c0_i32 = arith.constant 0 : i32
    %c0_i32_0 = arith.constant 0 : i32
    %c0_i32_1 = arith.constant 0 : i32
    %c0_i32_2 = arith.constant 0 : i32
    return %c0_i32, %c0_i32_0, %c0_i32_1 : i32, i32, i32
  }
  func.func @transform_6(%arg0: i32) -> (i32, i32) {
    %c0_i32 = arith.constant 0 : i32
    %c0_i32_0 = arith.constant 0 : i32
    %c0_i32_1 = arith.constant 0 : i32
    return %c0_i32, %c0_i32_0 : i32, i32
  }
  func.func @transform_7(%arg0: i32) -> (i32, i32) {
    %c0_i32 = arith.constant 0 : i32
    %c0_i32_0 = arith.constant 0 : i32
    %c0_i32_1 = arith.constant 0 : i32
    return %c0_i32, %c0_i32_0 : i32, i32
  }
  func.func @transform_8(%arg0: i32) -> (i32, i32, i32) {
    %c0_i32 = arith.constant 0 : i32
    %c0_i32_0 = arith.constant 0 : i32
    %c0_i32_1 = arith.constant 0 : i32
    %c0_i32_2 = arith.constant 0 : i32
    return %c0_i32, %c0_i32_0, %c0_i32_1 : i32, i32, i32
  }
  func.func @transform_9(%arg0: i32) -> (i32, i32, i32) {
    %c0_i32 = arith.constant 0 : i32
    %c0_i32_0 = arith.constant 0 : i32
    %c0_i32_1 = arith.constant 0 : i32
    %c0_i32_2 = arith.constant 0 : i32
    return %c0_i32, %c0_i32_0, %c0_i32_1 : i32, i32, i32
  }
  func.func @transform_10(%arg0: i32) -> (i32, i32) {
    %c0_i32 = arith.constant 0 : i32
    %c0_i32_0 = arith.constant 0 : i32
    %c0_i32_1 = arith.constant 0 : i32
    return %c0_i32, %c0_i32_0 : i32, i32
  }
  func.func @transform_11(%arg0: i32) -> (i32, i32, i32) {
    %c0_i32 = arith.constant 0 : i32
    %c0_i32_0 = arith.constant 0 : i32
    %c0_i32_1 = arith.constant 0 : i32
    %c0_i32_2 = arith.constant 0 : i32
    return %c0_i32, %c0_i32_0, %c0_i32_1 : i32, i32, i32
  }
  func.func @transform_12(%arg0: i32) -> (i32, i32, i32) {
    %c0_i32 = arith.constant 0 : i32
    %c0_i32_0 = arith.constant 0 : i32
    %c0_i32_1 = arith.constant 0 : i32
    %c0_i32_2 = arith.constant 0 : i32
    return %c0_i32, %c0_i32_0, %c0_i32_1 : i32, i32, i32
  }
}

</mosaic_0001>

<llo_original>
// kernel: tpu_custom_call.1
$region0: #{tpu_custom_call.1}
  #allocation0 [shape = 'u32[]', space=smem, size = 0x4, offset = 0x4, fixed_abs, tag = 'smem constant byte address 0x4 - core index']
  #allocation1 [shape = 'u32[144,128]{1,0:T(1,128)}', space=vmem, size = 0x12000, scoped, tag = 'internal scratch']
  #allocation2 [shape = 'f32[64,128]{1,0:T(8,128)}', space=vmem, size = 0x8000, scoped, tag = 'scratch operand']
  #allocation3 [shape = 'f32[64,512]{1,0:T(8,128)}', space=vmem, size = 0x20000, scoped, tag = 'scratch operand']
  %s0 = inlined_call_operand.hbm [shape: f32[64,128], index: 0, kind: input, shape index: {}]
  %s1 = inlined_call_operand.hbm [shape: f32[128,128], index: 1, kind: input, shape index: {}]
  %s2 = inlined_call_operand.vmem [shape: f32[1,128], index: 2, kind: input, shape index: {}]
  %s3 = inlined_call_operand.hbm [shape: f32[2,128,512], index: 3, kind: input, shape index: {}]
  %s4 = inlined_call_operand.hbm [shape: f32[2,128,512], index: 4, kind: input, shape index: {}]
  %s5 = inlined_call_operand.hbm [shape: f32[2,1,512], index: 5, kind: input, shape index: {}]
  %s6 = inlined_call_operand.hbm [shape: f32[128,128], index: 6, kind: input, shape index: {}]
  %s7 = inlined_call_operand.vmem [shape: f32[1,128], index: 7, kind: input, shape index: {}]
  %s8 = inlined_call_operand.vmem [shape: f32[2,8,128], index: 8, kind: input, shape index: {}]
  %s9 = inlined_call_operand.vmem [shape: f32[2,8,128], index: 9, kind: input, shape index: {}]
  %s10 = inlined_call_operand.hbm [shape: f32[64,128], index: 10, kind: output, shape index: {0}]
  %s11 = inlined_call_operand.hbm [shape: f32[2,8,128], index: 11, kind: output, shape index: {1}]
  %s12 = inlined_call_operand.hbm [shape: f32[2,8,128], index: 12, kind: output, shape index: {2}]
  %13 = xla_tuple %s10, %s11, %s12
  %s14 = sld [smem:[#allocation0]]
  $region90: #{tpu_custom_call.1} parent=0
    _
  %s16 = ssub.s32 1, %s14
  %s17 = scalar_select 0, %s16, %s14
  $region1: #{tpu_custom_call.1} parent=0
    #allocation4 [shape = 'u8[32768]{0}', space=vmem, size = 0x8000, scoped, tag = 'input window, operand 0, single buffered']
    #allocation5 [shape = 's32[1]{0}', space=sflag, size = 0x4, scoped, tag = 'scoped memory for tpu_custom_call.1']
    #allocation6 [shape = 's32[1]{0}', space=sflag, size = 0x4, scoped, tag = 'scoped memory for tpu_custom_call.1']
    #allocation7 [shape = 'u8[65536]{0}', space=vmem, size = 0x10000, scoped, tag = 'input window, operand 1, single buffered']
    #allocation8 [shape = 's32[1]{0}', space=sflag, size = 0x4, scoped, tag = 'scoped memory for tpu_custom_call.1']
    #allocation9 [shape = 'u8[524288]{0}', space=vmem, size = 0x80000, scoped, tag = 'input window, operand 3, single buffered']
    #allocation10 [shape = 'u8[524288]{0}', space=vmem, size = 0x80000, scoped, tag = 'input window, operand 4, single buffered']
    #allocation11 [shape = 's32[1]{0}', space=sflag, size = 0x4, scoped, tag = 'scoped memory for tpu_custom_call.1']
    #allocation12 [shape = 'u8[4096]{0}', space=vmem, size = 0x1000, scoped, tag = 'input window, operand 5, single buffered']
    #allocation13 [shape = 'u8[65536]{0}', space=vmem, size = 0x10000, scoped, tag = 'input window, operand 6, single buffered']
    #allocation14 [shape = 's32[1]{0}', space=sflag, size = 0x4, scoped, tag = 'scoped memory for tpu_custom_call.1']
    #allocation15 [shape = 'u8[32768]{0}', space=vmem, size = 0x8000, scoped, tag = 'output window, operand 0, single buffered']
    #allocation16 [shape = 'u8[8192]{0}', space=vmem, size = 0x2000, scoped, tag = 'output window, operand 1, single buffered']
    #allocation17 [shape = 's32[1]{0}', space=sflag, size = 0x4, scoped, tag = 'scoped memory for tpu_custom_call.1']
    #allocation18 [shape = 'u8[8192]{0}', space=vmem, size = 0x2000, scoped, tag = 'output window, operand 2, single buffered']
    %18 = vsyncpa [#allocation5], 0
    %19 = vsyncpa [#allocation8], 0
    %20 = vsyncpa [#allocation11], 0
    %21 = vsyncpa [#allocation14], 0
    %22 = vsyncpa [#allocation6], 0
    %23 = vsyncpa [#allocation17], 0
    // Predicated region
    $region2: #{tpu_custom_call.1} parent=1 // pred_check
      _
    $region3: #{tpu_custom_call.1} parent=1 // pred_check_branch
      %25 = sbr.rel (0) target = $region5
    $region4: #{tpu_custom_call.1} parent=1 // pred_region
      %s27 = ssub.s32 1024, 1024
      %28 = vsyncadd [#allocation5], %s27
      %s29 = sshll.u32 [#allocation4], 4
      %s30 = int_to_ptr.vmem [resolvable:$true] %s29
      %35 = dma.hbm_to_vmem [thread:$0]  %s0, 1024, %s30, [#allocation5], 128, 128, 8
    $region5: #{tpu_custom_call.1} parent=1 // pred_fallthru
      _
    // Predicated region
    $region6: #{tpu_custom_call.1} parent=1 // pred_check
      _
    $region7: #{tpu_custom_call.1} parent=1 // pred_check_branch
      %37 = sbr.rel (0) target = $region9
    $region8: #{tpu_custom_call.1} parent=1 // pred_region
      %s39 = ssub.s32 2048, 2048
      %40 = vsyncadd [#allocation8], %s39
      %s41 = sshll.u32 [#allocation7], 4
      %s42 = int_to_ptr.vmem [resolvable:$true] %s41
      %47 = dma.hbm_to_vmem [thread:$0]  %s1, 2048, %s42, [#allocation8], 128, 128, 8
    $region9: #{tpu_custom_call.1} parent=1 // pred_fallthru
      _
    // Predicated region
    $region10: #{tpu_custom_call.1} parent=1 // pred_check
      _
    $region11: #{tpu_custom_call.1} parent=1 // pred_check_branch
      %49 = sbr.rel (0) target = $region13
    $region12: #{tpu_custom_call.1} parent=1 // pred_region
      _
    $region13: #{tpu_custom_call.1} parent=1 // pred_fallthru
      _
    // Predicated region
    $region14: #{tpu_custom_call.1} parent=1 // pred_check
      _
    $region15: #{tpu_custom_call.1} parent=1 // pred_check_branch
      %51 = sbr.rel (0) target = $region17
    $region16: #{tpu_custom_call.1} parent=1 // pred_region
      %s53 = ssub.s32 16384, 16384
      %54 = vsyncadd [#allocation8], %s53
      %s55 = sshll.u32 [#allocation9], 4
      %s56 = int_to_ptr.vmem [resolvable:$true] %s55
      %61 = dma.hbm_to_vmem [thread:$0]  %s3, 16384, %s56, [#allocation8], 512, 512, 32
    $region17: #{tpu_custom_call.1} parent=1 // pred_fallthru
      _
    // Predicated region
    $region18: #{tpu_custom_call.1} parent=1 // pred_check
      _
    $region19: #{tpu_custom_call.1} parent=1 // pred_check_branch
      %63 = sbr.rel (0) target = $region21
    $region20: #{tpu_custom_call.1} parent=1 // pred_region
      %s65 = ssub.s32 16384, 16384
      %66 = vsyncadd [#allocation11], %s65
      %s67 = sshll.u32 [#allocation10], 4
      %s68 = int_to_ptr.vmem [resolvable:$true] %s67
      %73 = dma.hbm_to_vmem [thread:$0]  %s4, 16384, %s68, [#allocation11], 512, 512, 32
    $region21: #{tpu_custom_call.1} parent=1 // pred_fallthru
      _
    // Predicated region
    $region22: #{tpu_custom_call.1} parent=1 // pred_check
      _
    $region23: #{tpu_custom_call.1} parent=1 // pred_check_branch
      %75 = sbr.rel (0) target = $region25
    $region24: #{tpu_custom_call.1} parent=1 // pred_region
      %s77 = ssub.s32 128, 128
      %78 = vsyncadd [#allocation11], %s77
      %s79 = sshll.u32 [#allocation12], 4
      %s80 = int_to_ptr.vmem [resolvable:$true] %s79
      %85 = dma.hbm_to_vmem [thread:$0]  %s5, 128, %s80, [#allocation11], 64, 64, 4
    $region25: #{tpu_custom_call.1} parent=1 // pred_fallthru
      _
    // Predicated region
    $region26: #{tpu_custom_call.1} parent=1 // pred_check
      _
    $region27: #{tpu_custom_call.1} parent=1 // pred_check_branch
      %87 = sbr.rel (0) target = $region29
    $region28: #{tpu_custom_call.1} parent=1 // pred_region
      %s89 = ssub.s32 2048, 2048
      %90 = vsyncadd [#allocation14], %s89
      %s91 = sshll.u32 [#allocation13], 4
      %s92 = int_to_ptr.vmem [resolvable:$true] %s91
      %97 = dma.hbm_to_vmem [thread:$0]  %s6, 2048, %s92, [#allocation14], 128, 128, 8
    $region29: #{tpu_custom_call.1} parent=1 // pred_fallthru
      _
    // Predicated region
    $region30: #{tpu_custom_call.1} parent=1 // pred_check
      _
    $region31: #{tpu_custom_call.1} parent=1 // pred_check_branch
      %99 = sbr.rel (0) target = $region33
    $region32: #{tpu_custom_call.1} parent=1 // pred_region
      _
    $region33: #{tpu_custom_call.1} parent=1 // pred_fallthru
      _
    // Predicated region
    $region34: #{tpu_custom_call.1} parent=1 // pred_check
      _
    $region35: #{tpu_custom_call.1} parent=1 // pred_check_branch
      %101 = sbr.rel (0) target = $region37
    $region36: #{tpu_custom_call.1} parent=1 // pred_region
      _
    $region37: #{tpu_custom_call.1} parent=1 // pred_fallthru
      _
    // Predicated region
    $region38: #{tpu_custom_call.1} parent=1 // pred_check
      _
    $region39: #{tpu_custom_call.1} parent=1 // pred_check_branch
      %103 = sbr.rel (0) target = $region41
    $region40: #{tpu_custom_call.1} parent=1 // pred_region
      _
    $region41: #{tpu_custom_call.1} parent=1 // pred_fallthru
      _
    // Predicated region
    $region42: #{tpu_custom_call.1} parent=1 // pred_check
      _
    $region43: #{tpu_custom_call.1} parent=1 // pred_check_branch
      %105 = sbr.rel (0) target = $region45
    $region44: #{tpu_custom_call.1} parent=1 // pred_region
      %106 = dma.done [#allocation5], 1024
    $region45: #{tpu_custom_call.1} parent=1 // pred_fallthru
      _
    // Predicated region
    $region46: #{tpu_custom_call.1} parent=1 // pred_check
      _
    $region47: #{tpu_custom_call.1} parent=1 // pred_check_branch
      %108 = sbr.rel (0) target = $region49
    $region48: #{tpu_custom_call.1} parent=1 // pred_region
      %109 = dma.done [#allocation8], 2048
    $region49: #{tpu_custom_call.1} parent=1 // pred_fallthru
      _
    // Predicated region
    $region50: #{tpu_custom_call.1} parent=1 // pred_check
      _
    $region51: #{tpu_custom_call.1} parent=1 // pred_check_branch
      %111 = sbr.rel (0) target = $region53
    $region52: #{tpu_custom_call.1} parent=1 // pred_region
      %112 = dma.done [#allocation8], 16384
    $region53: #{tpu_custom_call.1} parent=1 // pred_fallthru
      _
    // Predicated region
    $region54: #{tpu_custom_call.1} parent=1 // pred_check
      _
    $region55: #{tpu_custom_call.1} parent=1 // pred_check_branch
      %114 = sbr.rel (0) target = $region57
    $region56: #{tpu_custom_call.1} parent=1 // pred_region
      %115 = dma.done [#allocation11], 16384
    $region57: #{tpu_custom_call.1} parent=1 // pred_fallthru
      _
    // Predicated region
    $region58: #{tpu_custom_call.1} parent=1 // pred_check
      _
    $region59: #{tpu_custom_call.1} parent=1 // pred_check_branch
      %117 = sbr.rel (0) target = $region61
    $region60: #{tpu_custom_call.1} parent=1 // pred_region
      %118 = dma.done [#allocation11], 128
    $region61: #{tpu_custom_call.1} parent=1 // pred_fallthru
      _
    // Predicated region
    $region62: #{tpu_custom_call.1} parent=1 // pred_check
      _
    $region63: #{tpu_custom_call.1} parent=1 // pred_check_branch
      %120 = sbr.rel (0) target = $region65
    $region64: #{tpu_custom_call.1} parent=1 // pred_region
      %121 = dma.done [#allocation14], 2048
    $region65: #{tpu_custom_call.1} parent=1 // pred_fallthru
      _
    %v122 = vld [vmem:[#allocation4] sm:$0xff]
    %v123 = vld [vmem:[#allocation4 + $0x8] sm:$0xff]
    %v124 = vld [vmem:[#allocation4 + $0x10] sm:$0xff]
    %v125 = vld [vmem:[#allocation4 + $0x18] sm:$0xff]
    %v126 = vld [vmem:[#allocation4 + $0x20] sm:$0xff]
    %v127 = vld [vmem:[#allocation4 + $0x28] sm:$0xff]
    %v128 = vld [vmem:[#allocation4 + $0x30] sm:$0xff]
    %v129 = vld [vmem:[#allocation4 + $0x38] sm:$0xff]
    %v130 = vld [vmem:[#allocation7] sm:$0xff]
    %v131 = vld [vmem:[#allocation7 + $0x8] sm:$0xff]
    %v132 = vld [vmem:[#allocation7 + $0x10] sm:$0xff]
    %v133 = vld [vmem:[#allocation7 + $0x18] sm:$0xff]
    %v134 = vld [vmem:[#allocation7 + $0x20] sm:$0xff]
    %v135 = vld [vmem:[#allocation7 + $0x28] sm:$0xff]
    %v136 = vld [vmem:[#allocation7 + $0x30] sm:$0xff]
    %v137 = vld [vmem:[#allocation7 + $0x38] sm:$0xff]
    %v138 = vld [vmem:[#allocation7 + $0x40] sm:$0xff]
    %v139 = vld [vmem:[#allocation7 + $0x48] sm:$0xff]
    %v140 = vld [vmem:[#allocation7 + $0x50] sm:$0xff]
    %v141 = vld [vmem:[#allocation7 + $0x58] sm:$0xff]
    %v142 = vld [vmem:[#allocation7 + $0x60] sm:$0xff]
    %v143 = vld [vmem:[#allocation7 + $0x68] sm:$0xff]
    %v144 = vld [vmem:[#allocation7 + $0x70] sm:$0xff]
    %v145 = vld [vmem:[#allocation7 + $0x78] sm:$0xff]
    %v146 = vld [vmem:[%s2] sm:$0x1]
    %v148 = vlaneseq
    %v149 = vshrl.u32 %v148, 7
    %v150 = vsub.s32 0, %v149
    %v151 = vrot.slane %v146, %v150
    %153 = vmatprep.subr.mxu0 0.0
    %154 = vmatpush1.msra.mxu0 %v130
    %155 = vmatprep.subr.mxu0 0.0
    %156 = vmatpush1.msra.mxu0 %v131
    %157 = vmatprep.subr.mxu0 0.0
    %158 = vmatpush1.msra.mxu0 %v132
    %159 = vmatprep.subr.mxu0 0.0
    %160 = vmatpush1.msra.mxu0 %v133
    %161 = vmatprep.subr.mxu0 0.0
    %162 = vmatpush1.msra.mxu0 %v134
    %163 = vmatprep.subr.mxu0 0.0
    %164 = vmatpush1.msra.mxu0 %v135
    %165 = vmatprep.subr.mxu0 0.0
    %166 = vmatpush1.msra.mxu0 %v136
    %167 = vmatprep.subr.mxu0 0.0
    %168 = vmatpush1.msra.mxu0 %v137
    %169 = vmatprep.subr.mxu0 0.0
    %170 = vmatpush1.msra.mxu0 %v138
    %171 = vmatprep.subr.mxu0 0.0
    %172 = vmatpush1.msra.mxu0 %v139
    %173 = vmatprep.subr.mxu0 0.0
    %174 = vmatpush1.msra.mxu0 %v140
    %175 = vmatprep.subr.mxu0 0.0
    %176 = vmatpush1.msra.mxu0 %v141
    %177 = vmatprep.subr.mxu0 0.0
    %178 = vmatpush1.msra.mxu0 %v142
    %179 = vmatprep.subr.mxu0 0.0
    %180 = vmatpush1.msra.mxu0 %v143
    %181 = vmatprep.subr.mxu0 0.0
    %182 = vmatpush1.msra.mxu0 %v144
    %183 = vmatprep.subr.mxu0 0.0
    %184 = vmatpush1.msra.mxu0 %v145
    %185 = vmatprep.subr.mxu0 0.0
    %186 = vmatpush1.msra.mxu0 0.0
    %187 = vmatprep.subr.mxu0 0.0
    %188 = vmatpush1.msra.mxu0 0.0
    %189 = vmatprep.subr.mxu0 0.0
    %190 = vmatpush1.msra.mxu0 0.0
    %191 = vmatprep.subr.mxu0 0.0
    %192 = vmatpush1.msra.mxu0 0.0
    %193 = vmatprep.subr.mxu0 0.0
    %194 = vmatpush1.msra.mxu0 0.0
    %195 = vmatprep.subr.mxu0 0.0
    %196 = vmatpush1.msra.mxu0 0.0
    %197 = vmatprep.subr.mxu0 0.0
    %198 = vmatpush1.msra.mxu0 0.0
    %199 = vmatprep.subr.mxu0 0.0
    %200 = vmatpush1.msra.mxu0 0.0
    %201 = vmatprep.subr.mxu0 0.0
    %202 = vmatpush1.msra.mxu0 0.0
    %203 = vmatprep.subr.mxu0 0.0
    %204 = vmatpush1.msra.mxu0 0.0
    %205 = vmatprep.subr.mxu0 0.0
    %206 = vmatpush1.msra.mxu0 0.0
    %207 = vmatprep.subr.mxu0 0.0
    %208 = vmatpush1.msra.mxu0 0.0
    %209 = vmatprep.subr.mxu0 0.0
    %210 = vmatpush1.msra.mxu0 0.0
    %211 = vmatprep.subr.mxu0 0.0
    %212 = vmatpush1.msra.mxu0 0.0
    %213 = vmatprep.subr.mxu0 0.0
    %214 = vmatpush1.msra.mxu0 0.0
    %215 = vmatprep.subr.mxu0 0.0
    %216 = vmatpush1.msra.mxu0 0.0
    %217 = vmatprep.mubr.f32.mxu0 0.0
    %218 = vmatmul.mubr.f32.gmra.mrb[0].mxu0 %v122
    %v219 = vpop.f32.mrb[0].mxu0
    %v220 = vadd.f32 %v151, %v219
    %v221 = vpop.f32.mrb[0].mxu0
    %222 = vmatprep.mubr.f32.mxu0 0.0
    %223 = vmatmul.mubr.f32.gmra.mrb[0].mxu0 %v123
    %v224 = vpop.f32.mrb[0].mxu0
    %v225 = vadd.f32 %v151, %v224
    %v226 = vpop.f32.mrb[0].mxu0
    %227 = vmatprep.mubr.f32.mxu0 0.0
    %228 = vmatmul.mubr.f32.gmra.mrb[0].mxu0 %v124
    %v229 = vpop.f32.mrb[0].mxu0
    %v230 = vadd.f32 %v151, %v229
    %v231 = vpop.f32.mrb[0].mxu0
    %232 = vmatprep.mubr.f32.mxu0 0.0
    %233 = vmatmul.mubr.f32.gmra.mrb[0].mxu0 %v125
    %v234 = vpop.f32.mrb[0].mxu0
    %v235 = vadd.f32 %v151, %v234
    %v236 = vpop.f32.mrb[0].mxu0
    %237 = vmatprep.mubr.f32.mxu0 0.0
    %238 = vmatmul.mubr.f32.gmra.mrb[0].mxu0 %v126
    %v239 = vpop.f32.mrb[0].mxu0
    %v240 = vadd.f32 %v151, %v239
    %v241 = vpop.f32.mrb[0].mxu0
    %242 = vmatprep.mubr.f32.mxu0 0.0
    %243 = vmatmul.mubr.f32.gmra.mrb[0].mxu0 %v127
    %v244 = vpop.f32.mrb[0].mxu0
    %v245 = vadd.f32 %v151, %v244
    %v246 = vpop.f32.mrb[0].mxu0
    %247 = vmatprep.mubr.f32.mxu0 0.0
    %248 = vmatmul.mubr.f32.gmra.mrb[0].mxu0 %v128
    %v249 = vpop.f32.mrb[0].mxu0
    %v250 = vadd.f32 %v151, %v249
    %v251 = vpop.f32.mrb[0].mxu0
    %252 = vmatprep.mubr.f32.mxu0 0.0
    %253 = vmatmul.mubr.f32.gmra.mrb[0].mxu0 %v129
    %v254 = vpop.f32.mrb[0].mxu0
    %v255 = vadd.f32 %v151, %v254
    %v256 = vpop.f32.mrb[0].mxu0
    %257 = vdwg.mxu0
    %258 = vst [vmem:[#allocation2] sm:$0xff] %v220
    %259 = vst [vmem:[#allocation2 + $0x8] sm:$0xff] %v225
    %260 = vst [vmem:[#allocation2 + $0x10] sm:$0xff] %v230
    %261 = vst [vmem:[#allocation2 + $0x18] sm:$0xff] %v235
    %262 = vst [vmem:[#allocation2 + $0x20] sm:$0xff] %v240
    %263 = vst [vmem:[#allocation2 + $0x28] sm:$0xff] %v245
    %264 = vst [vmem:[#allocation2 + $0x30] sm:$0xff] %v250
    %265 = vst [vmem:[#allocation2 + $0x38] sm:$0xff] %v255
    %v266 = vld [vmem:[#allocation2] sm:$0xff]
    %v267 = vld [vmem:[#allocation2 + $0x8] sm:$0xff]
    %v268 = vld [vmem:[#allocation2 + $0x10] sm:$0xff]
    %v269 = vld [vmem:[#allocation2 + $0x18] sm:$0xff]
    %v270 = vld [vmem:[#allocation2 + $0x20] sm:$0xff]
    %v271 = vld [vmem:[#allocation2 + $0x28] sm:$0xff]
    %v272 = vld [vmem:[#allocation2 + $0x30] sm:$0xff]
    %v273 = vld [vmem:[#allocation2 + $0x38] sm:$0xff]
    %v274 = vld [vmem:[#allocation9] sm:$0xff]
    %v275 = vld [vmem:[#allocation9 + $0x8] sm:$0xff]
    %v276 = vld [vmem:[#allocation9 + $0x10] sm:$0xff]
    %v277 = vld [vmem:[#allocation9 + $0x18] sm:$0xff]
    %v278 = vld [vmem:[#allocation9 + $0x20] sm:$0xff]
    %v279 = vld [vmem:[#allocation9 + $0x28] sm:$0xff]
    %v280 = vld [vmem:[#allocation9 + $0x30] sm:$0xff]
    %v281 = vld [vmem:[#allocation9 + $0x38] sm:$0xff]
    %v282 = vld [vmem:[#allocation9 + $0x40] sm:$0xff]
    %v283 = vld [vmem:[#allocation9 + $0x48] sm:$0xff]
    %v284 = vld [vmem:[#allocation9 + $0x50] sm:$0xff]
    %v285 = vld [vmem:[#allocation9 + $0x58] sm:$0xff]
    %v286 = vld [vmem:[#allocation9 + $0x60] sm:$0xff]
    %v287 = vld [vmem:[#allocation9 + $0x68] sm:$0xff]
    %v288 = vld [vmem:[#allocation9 + $0x70] sm:$0xff]
    %v289 = vld [vmem:[#allocation9 + $0x78] sm:$0xff]
    %v290 = vld [vmem:[#allocation9 + $0x80] sm:$0xff]
    %v291 = vld [vmem:[#allocation9 + $0x88] sm:$0xff]
    %v292 = vld [vmem:[#allocation9 + $0x90] sm:$0xff]
    %v293 = vld [vmem:[#allocation9 + $0x98] sm:$0xff]
    %v294 = vld [vmem:[#allocation9 + $0xa0] sm:$0xff]
    %v295 = vld [vmem:[#allocation9 + $0xa8] sm:$0xff]
    %v296 = vld [vmem:[#allocation9 + $0xb0] sm:$0xff]
    %v297 = vld [vmem:[#allocation9 + $0xb8] sm:$0xff]
    %v298 = vld [vmem:[#allocation9 + $0xc0] sm:$0xff]
    %v299 = vld [vmem:[#allocation9 + $0xc8] sm:$0xff]
    %v300 = vld [vmem:[#allocation9 + $0xd0] sm:$0xff]
    %v301 = vld [vmem:[#allocation9 + $0xd8] sm:$0xff]
    %v302 = vld [vmem:[#allocation9 + $0xe0] sm:$0xff]
    %v303 = vld [vmem:[#allocation9 + $0xe8] sm:$0xff]
    %v304 = vld [vmem:[#allocation9 + $0xf0] sm:$0xff]
    %v305 = vld [vmem:[#allocation9 + $0xf8] sm:$0xff]
    %v306 = vld [vmem:[#allocation9 + $0x100] sm:$0xff]
    %v307 = vld [vmem:[#allocation9 + $0x108] sm:$0xff]
    %v308 = vld [vmem:[#allocation9 + $0x110] sm:$0xff]
    %v309 = vld [vmem:[#allocation9 + $0x118] sm:$0xff]
    %v310 = vld [vmem:[#allocation9 + $0x120] sm:$0xff]
    %v311 = vld [vmem:[#allocation9 + $0x128] sm:$0xff]
    %v312 = vld [vmem:[#allocation9 + $0x130] sm:$0xff]
    %v313 = vld [vmem:[#allocation9 + $0x138] sm:$0xff]
    %v314 = vld [vmem:[#allocation9 + $0x140] sm:$0xff]
    %v315 = vld [vmem:[#allocation9 + $0x148] sm:$0xff]
    %v316 = vld [vmem:[#allocation9 + $0x150] sm:$0xff]
    %v317 = vld [vmem:[#allocation9 + $0x158] sm:$0xff]
    %v318 = vld [vmem:[#allocation9 + $0x160] sm:$0xff]
    %v319 = vld [vmem:[#allocation9 + $0x168] sm:$0xff]
    %v320 = vld [vmem:[#allocation9 + $0x170] sm:$0xff]
    %v321 = vld [vmem:[#allocation9 + $0x178] sm:$0xff]
    %v322 = vld [vmem:[#allocation9 + $0x180] sm:$0xff]
    %v323 = vld [vmem:[#allocation9 + $0x188] sm:$0xff]
    %v324 = vld [vmem:[#allocation9 + $0x190] sm:$0xff]
    %v325 = vld [vmem:[#allocation9 + $0x198] sm:$0xff]
    %v326 = vld [vmem:[#allocation9 + $0x1a0] sm:$0xff]
    %v327 = vld [vmem:[#allocation9 + $0x1a8] sm:$0xff]
    %v328 = vld [vmem:[#allocation9 + $0x1b0] sm:$0xff]
    %v329 = vld [vmem:[#allocation9 + $0x1b8] sm:$0xff]
    %v330 = vld [vmem:[#allocation9 + $0x1c0] sm:$0xff]
    %v331 = vld [vmem:[#allocation9 + $0x1c8] sm:$0xff]
    %v332 = vld [vmem:[#allocation9 + $0x1d0] sm:$0xff]
    %v333 = vld [vmem:[#allocation9 + $0x1d8] sm:$0xff]
    %v334 = vld [vmem:[#allocation9 + $0x1e0] sm:$0xff]
    %v335 = vld [vmem:[#allocation9 + $0x1e8] sm:$0xff]
    %v336 = vld [vmem:[#allocation9 + $0x1f0] sm:$0xff]
    %v337 = vld [vmem:[#allocation9 + $0x1f8] sm:$0xff]
    %v338 = vld [vmem:[#allocation12] sm:$0xf]
    %v340 = vlaneseq
    %v341 = vshrl.u32 %v340, 7
    %v342 = vsub.s32 0, %v341
    %v343 = vrot.slane %v338, %v342
    %v344 = vlaneseq
    %v345 = vshrl.u32 %v344, 7
    %v346 = vsub.s32 1, %v345
    %v347 = vrot.slane %v338, %v346
    %v348 = vlaneseq
    %v349 = vshrl.u32 %v348, 7
    %v350 = vsub.s32 2, %v349
    %v351 = vrot.slane %v338, %v350
    %v352 = vlaneseq
    %v353 = vshrl.u32 %v352, 7
    %v354 = vsub.s32 3, %v353
    %v355 = vrot.slane %v338, %v354
    %360 = vmatprep.subr.mxu0 %v275
    %361 = vmatpush1.msra.mxu0 %v274
    %362 = vmatprep.subr.mxu0 %v279
    %363 = vmatpush1.msra.mxu0 %v278
    %364 = vmatprep.subr.mxu0 %v283
    %365 = vmatpush1.msra.mxu0 %v282
    %366 = vmatprep.subr.mxu0 %v287
    %367 = vmatpush1.msra.mxu0 %v286
    %368 = vmatprep.subr.mxu0 %v291
    %369 = vmatpush1.msra.mxu0 %v290
    %370 = vmatprep.subr.mxu0 %v295
    %371 = vmatpush1.msra.mxu0 %v294
    %372 = vmatprep.subr.mxu0 %v299
    %373 = vmatpush1.msra.mxu0 %v298
    %374 = vmatprep.subr.mxu0 %v303
    %375 = vmatpush1.msra.mxu0 %v302
    %376 = vmatprep.subr.mxu0 %v307
    %377 = vmatpush1.msra.mxu0 %v306
    %378 = vmatprep.subr.mxu0 %v311
    %379 = vmatpush1.msra.mxu0 %v310
    %380 = vmatprep.subr.mxu0 %v315
    %381 = vmatpush1.msra.mxu0 %v314
    %382 = vmatprep.subr.mxu0 %v319
    %383 = vmatpush1.msra.mxu0 %v318
    %384 = vmatprep.subr.mxu0 %v323
    %385 = vmatpush1.msra.mxu0 %v322
    %386 = vmatprep.subr.mxu0 %v327
    %387 = vmatpush1.msra.mxu0 %v326
    %388 = vmatprep.subr.mxu0 %v331
    %389 = vmatpush1.msra.mxu0 %v330
    %390 = vmatprep.subr.mxu0 %v335
    %391 = vmatpush1.msra.mxu0 %v334
    %392 = vmatprep.subr.mxu0 0.0
    %393 = vmatpush1.msra.mxu0 0.0
    %394 = vmatprep.subr.mxu0 0.0
    %395 = vmatpush1.msra.mxu0 0.0
    %396 = vmatprep.subr.mxu0 0.0
    %397 = vmatpush1.msra.mxu0 0.0
    %398 = vmatprep.subr.mxu0 0.0
    %399 = vmatpush1.msra.mxu0 0.0
    %400 = vmatprep.subr.mxu0 0.0
    %401 = vmatpush1.msra.mxu0 0.0
    %402 = vmatprep.subr.mxu0 0.0
    %403 = vmatpush1.msra.mxu0 0.0
    %404 = vmatprep.subr.mxu0 0.0
    %405 = vmatpush1.msra.mxu0 0.0
    %406 = vmatprep.subr.mxu0 0.0
    %407 = vmatpush1.msra.mxu0 0.0
    %408 = vmatprep.subr.mxu0 0.0
    %409 = vmatpush1.msra.mxu0 0.0
    %410 = vmatprep.subr.mxu0 0.0
    %411 = vmatpush1.msra.mxu0 0.0
    %412 = vmatprep.subr.mxu0 0.0
    %413 = vmatpush1.msra.mxu0 0.0
    %414 = vmatprep.subr.mxu0 0.0
    %415 = vmatpush1.msra.mxu0 0.0
    %416 = vmatprep.subr.mxu0 0.0
    %417 = vmatpush1.msra.mxu0 0.0
    %418 = vmatprep.subr.mxu0 0.0
    %419 = vmatpush1.msra.mxu0 0.0
    %420 = vmatprep.subr.mxu0 0.0
    %421 = vmatpush1.msra.mxu0 0.0
    %422 = vmatprep.subr.mxu0 0.0
    %423 = vmatpush1.msra.mxu0 0.0
    %424 = vmatprep.mubr.f32.mxu0 0.0
    %425 = vmatmul.mubr.f32.gmra.mrb[0].mxu0 %v266
    %v426 = vpop.f32.mrb[0].mxu0
    %v427 = vadd.f32 %v343, %v426
    %v428 = vpop.f32.mrb[0].mxu0
    %v429 = vadd.f32 %v347, %v428
    %430 = vmatprep.mubr.f32.mxu0 0.0
    %431 = vmatmul.mubr.f32.gmra.mrb[0].mxu0 %v267
    %v432 = vpop.f32.mrb[0].mxu0
    %v433 = vadd.f32 %v343, %v432
    %v434 = vpop.f32.mrb[0].mxu0
    %v435 = vadd.f32 %v347, %v434
    %436 = vmatprep.mubr.f32.mxu0 0.0
    %437 = vmatmul.mubr.f32.gmra.mrb[0].mxu0 %v268
    %v438 = vpop.f32.mrb[0].mxu0
    %v439 = vadd.f32 %v343, %v438
    %v440 = vpop.f32.mrb[0].mxu0
    %v441 = vadd.f32 %v347, %v440
    %442 = vmatprep.mubr.f32.mxu0 0.0
    %443 = vmatmul.mubr.f32.gmra.mrb[0].mxu0 %v269
    %v444 = vpop.f32.mrb[0].mxu0
    %v445 = vadd.f32 %v343, %v444
    %v446 = vpop.f32.mrb[0].mxu0
    %v447 = vadd.f32 %v347, %v446
    %448 = vmatprep.mubr.f32.mxu0 0.0
    %449 = vmatmul.mubr.f32.gmra.mrb[0].mxu0 %v270
    %v450 = vpop.f32.mrb[0].mxu0
    %v451 = vadd.f32 %v343, %v450
    %v452 = vpop.f32.mrb[0].mxu0
    %v453 = vadd.f32 %v347, %v452
    %454 = vmatprep.mubr.f32.mxu0 0.0
    %455 = vmatmul.mubr.f32.gmra.mrb[0].mxu0 %v271
    %v456 = vpop.f32.mrb[0].mxu0
    %v457 = vadd.f32 %v343, %v456
    %v458 = vpop.f32.mrb[0].mxu0
    %v459 = vadd.f32 %v347, %v458
    %460 = vmatprep.mubr.f32.mxu0 0.0
    %461 = vmatmul.mubr.f32.gmra.mrb[0].mxu0 %v272
    %v462 = vpop.f32.mrb[0].mxu0
    %v463 = vadd.f32 %v343, %v462
    %v464 = vpop.f32.mrb[0].mxu0
    %v465 = vadd.f32 %v347, %v464
    %466 = vmatprep.mubr.f32.mxu0 0.0
    %467 = vmatmul.mubr.f32.gmra.mrb[0].mxu0 %v273
    %v468 = vpop.f32.mrb[0].mxu0
    %v469 = vadd.f32 %v343, %v468
    %v470 = vpop.f32.mrb[0].mxu0
    %v471 = vadd.f32 %v347, %v470
    %472 = vdwg.mxu0
    %473 = vmatprep.subr.mxu0 %v277
    %474 = vmatpush1.msra.mxu0 %v276
    %475 = vmatprep.subr.mxu0 %v281
    %476 = vmatpush1.msra.mxu0 %v280
    %477 = vmatprep.subr.mxu0 %v285
    %478 = vmatpush1.msra.mxu0 %v284
    %479 = vmatprep.subr.mxu0 %v289
    %480 = vmatpush1.msra.mxu0 %v288
    %481 = vmatprep.subr.mxu0 %v293
    %482 = vmatpush1.msra.mxu0 %v292
    %483 = vmatprep.subr.mxu0 %v297
    %484 = vmatpush1.msra.mxu0 %v296
    %485 = vmatprep.subr.mxu0 %v301
    %486 = vmatpush1.msra.mxu0 %v300
    %487 = vmatprep.subr.mxu0 %v305
    %488 = vmatpush1.msra.mxu0 %v304
    %489 = vmatprep.subr.mxu0 %v309
    %490 = vmatpush1.msra.mxu0 %v308
    %491 = vmatprep.subr.mxu0 %v313
    %492 = vmatpush1.msra.mxu0 %v312
    %493 = vmatprep.subr.mxu0 %v317
    %494 = vmatpush1.msra.mxu0 %v316
    %495 = vmatprep.subr.mxu0 %v321
    %496 = vmatpush1.msra.mxu0 %v320
    %497 = vmatprep.subr.mxu0 %v325
    %498 = vmatpush1.msra.mxu0 %v324
    %499 = vmatprep.subr.mxu0 %v329
    %500 = vmatpush1.msra.mxu0 %v328
    %501 = vmatprep.subr.mxu0 %v333
    %502 = vmatpush1.msra.mxu0 %v332
    %503 = vmatprep.subr.mxu0 %v337
    %504 = vmatpush1.msra.mxu0 %v336
    %505 = vmatprep.subr.mxu0 0.0
    %506 = vmatpush1.msra.mxu0 0.0
    %507 = vmatprep.subr.mxu0 0.0
    %508 = vmatpush1.msra.mxu0 0.0
    %509 = vmatprep.subr.mxu0 0.0
    %510 = vmatpush1.msra.mxu0 0.0
    %511 = vmatprep.subr.mxu0 0.0
    %512 = vmatpush1.msra.mxu0 0.0
    %513 = vmatprep.subr.mxu0 0.0
    %514 = vmatpush1.msra.mxu0 0.0
    %515 = vmatprep.subr.mxu0 0.0
    %516 = vmatpush1.msra.mxu0 0.0
    %517 = vmatprep.subr.mxu0 0.0
    %518 = vmatpush1.msra.mxu0 0.0
    %519 = vmatprep.subr.mxu0 0.0
    %520 = vmatpush1.msra.mxu0 0.0
    %521 = vmatprep.subr.mxu0 0.0
    %522 = vmatpush1.msra.mxu0 0.0
    %523 = vmatprep.subr.mxu0 0.0
    %524 = vmatpush1.msra.mxu0 0.0
    %525 = vmatprep.subr.mxu0 0.0
    %526 = vmatpush1.msra.mxu0 0.0
    %527 = vmatprep.subr.mxu0 0.0
    %528 = vmatpush1.msra.mxu0 0.0
    %529 = vmatprep.subr.mxu0 0.0
    %530 = vmatpush1.msra.mxu0 0.0
    %531 = vmatprep.subr.mxu0 0.0
    %532 = vmatpush1.msra.mxu0 0.0
    %533 = vmatprep.subr.mxu0 0.0
    %534 = vmatpush1.msra.mxu0 0.0
    %535 = vmatprep.subr.mxu0 0.0
    %536 = vmatpush1.msra.mxu0 0.0
    %537 = vmatprep.mubr.f32.mxu0 0.0
    %538 = vmatmul.mubr.f32.gmra.mrb[0].mxu0 %v266
    %v539 = vpop.f32.mrb[0].mxu0
    %v540 = vadd.f32 %v351, %v539
    %v541 = vpop.f32.mrb[0].mxu0
    %v542 = vadd.f32 %v355, %v541
    %543 = vmatprep.mubr.f32.mxu0 0.0
    %544 = vmatmul.mubr.f32.gmra.mrb[0].mxu0 %v267
    %v545 = vpop.f32.mrb[0].mxu0
    %v546 = vadd.f32 %v351, %v545
    %v547 = vpop.f32.mrb[0].mxu0
    %v548 = vadd.f32 %v355, %v547
    %549 = vmatprep.mubr.f32.mxu0 0.0
    %550 = vmatmul.mubr.f32.gmra.mrb[0].mxu0 %v268
    %v551 = vpop.f32.mrb[0].mxu0
    %v552 = vadd.f32 %v351, %v551
    %v553 = vpop.f32.mrb[0].mxu0
    %v554 = vadd.f32 %v355, %v553
    %555 = vmatprep.mubr.f32.mxu0 0.0
    %556 = vmatmul.mubr.f32.gmra.mrb[0].mxu0 %v269
    %v557 = vpop.f32.mrb[0].mxu0
    %v558 = vadd.f32 %v351, %v557
    %v559 = vpop.f32.mrb[0].mxu0
    %v560 = vadd.f32 %v355, %v559
    %561 = vmatprep.mubr.f32.mxu0 0.0
    %562 = vmatmul.mubr.f32.gmra.mrb[0].mxu0 %v270
    %v563 = vpop.f32.mrb[0].mxu0
    %v564 = vadd.f32 %v351, %v563
    %v565 = vpop.f32.mrb[0].mxu0
    %v566 = vadd.f32 %v355, %v565
    %567 = vmatprep.mubr.f32.mxu0 0.0
    %568 = vmatmul.mubr.f32.gmra.mrb[0].mxu0 %v271
    %v569 = vpop.f32.mrb[0].mxu0
    %v570 = vadd.f32 %v351, %v569
    %v571 = vpop.f32.mrb[0].mxu0
    %v572 = vadd.f32 %v355, %v571
    %573 = vmatprep.mubr.f32.mxu0 0.0
    %574 = vmatmul.mubr.f32.gmra.mrb[0].mxu0 %v272
    %v575 = vpop.f32.mrb[0].mxu0
    %v576 = vadd.f32 %v351, %v575
    %v577 = vpop.f32.mrb[0].mxu0
    %v578 = vadd.f32 %v355, %v577
    %579 = vmatprep.mubr.f32.mxu0 0.0
    %580 = vmatmul.mubr.f32.gmra.mrb[0].mxu0 %v273
    %v581 = vpop.f32.mrb[0].mxu0
    %v582 = vadd.f32 %v351, %v581
    %v583 = vpop.f32.mrb[0].mxu0
    %v584 = vadd.f32 %v355, %v583
    %585 = vdwg.mxu0
    %586 = vst [vmem:[#allocation3] sm:$0xff] %v427
    %587 = vst [vmem:[#allocation3 + $0x8] sm:$0xff] %v429
    %588 = vst [vmem:[#allocation3 + $0x10] sm:$0xff] %v540
    %589 = vst [vmem:[#allocation3 + $0x18] sm:$0xff] %v542
    %590 = vst [vmem:[#allocation3 + $0x20] sm:$0xff] %v433
    %591 = vst [vmem:[#allocation3 + $0x28] sm:$0xff] %v435
    %592 = vst [vmem:[#allocation3 + $0x30] sm:$0xff] %v546
    %593 = vst [vmem:[#allocation3 + $0x38] sm:$0xff] %v548
    %594 = vst [vmem:[#allocation3 + $0x40] sm:$0xff] %v439
    %595 = vst [vmem:[#allocation3 + $0x48] sm:$0xff] %v441
    %596 = vst [vmem:[#allocation3 + $0x50] sm:$0xff] %v552
    %597 = vst [vmem:[#allocation3 + $0x58] sm:$0xff] %v554
    %598 = vst [vmem:[#allocation3 + $0x60] sm:$0xff] %v445
    %599 = vst [vmem:[#allocation3 + $0x68] sm:$0xff] %v447
    %600 = vst [vmem:[#allocation3 + $0x70] sm:$0xff] %v558
    %601 = vst [vmem:[#allocation3 + $0x78] sm:$0xff] %v560
    %602 = vst [vmem:[#allocation3 + $0x80] sm:$0xff] %v451
    %603 = vst [vmem:[#allocation3 + $0x88] sm:$0xff] %v453
    %604 = vst [vmem:[#allocation3 + $0x90] sm:$0xff] %v564
    %605 = vst [vmem:[#allocation3 + $0x98] sm:$0xff] %v566
    %606 = vst [vmem:[#allocation3 + $0xa0] sm:$0xff] %v457
    %607 = vst [vmem:[#allocation3 + $0xa8] sm:$0xff] %v459
    %608 = vst [vmem:[#allocation3 + $0xb0] sm:$0xff] %v570
    %609 = vst [vmem:[#allocation3 + $0xb8] sm:$0xff] %v572
    %610 = vst [vmem:[#allocation3 + $0xc0] sm:$0xff] %v463
    %611 = vst [vmem:[#allocation3 + $0xc8] sm:$0xff] %v465
    %612 = vst [vmem:[#allocation3 + $0xd0] sm:$0xff] %v576
    %613 = vst [vmem:[#allocation3 + $0xd8] sm:$0xff] %v578
    %614 = vst [vmem:[#allocation3 + $0xe0] sm:$0xff] %v469
    %615 = vst [vmem:[#allocation3 + $0xe8] sm:$0xff] %v471
    %616 = vst [vmem:[#allocation3 + $0xf0] sm:$0xff] %v582
    %617 = vst [vmem:[#allocation3 + $0xf8] sm:$0xff] %v584
    %v618 = vld [vmem:[#allocation10] sm:$0xff]
    %v619 = vld [vmem:[#allocation10 + $0x8] sm:$0xff]
    %v620 = vld [vmem:[#allocation10 + $0x10] sm:$0xff]
    %v621 = vld [vmem:[#allocation10 + $0x18] sm:$0xff]
    %v622 = vld [vmem:[#allocation10 + $0x20] sm:$0xff]
    %v623 = vld [vmem:[#allocation10 + $0x28] sm:$0xff]
    %v624 = vld [vmem:[#allocation10 + $0x30] sm:$0xff]
    %v625 = vld [vmem:[#allocation10 + $0x38] sm:$0xff]
    %v626 = vld [vmem:[#allocation10 + $0x40] sm:$0xff]
    %v627 = vld [vmem:[#allocation10 + $0x48] sm:$0xff]
    %v628 = vld [vmem:[#allocation10 + $0x50] sm:$0xff]
    %v629 = vld [vmem:[#allocation10 + $0x58] sm:$0xff]
    %v630 = vld [vmem:[#allocation10 + $0x60] sm:$0xff]
    %v631 = vld [vmem:[#allocation10 + $0x68] sm:$0xff]
    %v632 = vld [vmem:[#allocation10 + $0x70] sm:$0xff]
    %v633 = vld [vmem:[#allocation10 + $0x78] sm:$0xff]
    %v634 = vld [vmem:[#allocation10 + $0x80] sm:$0xff]
    %v635 = vld [vmem:[#allocation10 + $0x88] sm:$0xff]
    %v636 = vld [vmem:[#allocation10 + $0x90] sm:$0xff]
    %v637 = vld [vmem:[#allocation10 + $0x98] sm:$0xff]
    %v638 = vld [vmem:[#allocation10 + $0xa0] sm:$0xff]
    %v639 = vld [vmem:[#allocation10 + $0xa8] sm:$0xff]
    %v640 = vld [vmem:[#allocation10 + $0xb0] sm:$0xff]
    %v641 = vld [vmem:[#allocation10 + $0xb8] sm:$0xff]
    %v642 = vld [vmem:[#allocation10 + $0xc0] sm:$0xff]
    %v643 = vld [vmem:[#allocation10 + $0xc8] sm:$0xff]
    %v644 = vld [vmem:[#allocation10 + $0xd0] sm:$0xff]
    %v645 = vld [vmem:[#allocation10 + $0xd8] sm:$0xff]
    %v646 = vld [vmem:[#allocation10 + $0xe0] sm:$0xff]
    %v647 = vld [vmem:[#allocation10 + $0xe8] sm:$0xff]
    %v648 = vld [vmem:[#allocation10 + $0xf0] sm:$0xff]
    %v649 = vld [vmem:[#allocation10 + $0xf8] sm:$0xff]
    %v650 = vld [vmem:[#allocation10 + $0x100] sm:$0xff]
    %v651 = vld [vmem:[#allocation10 + $0x108] sm:$0xff]
    %v652 = vld [vmem:[#allocation10 + $0x110] sm:$0xff]
    %v653 = vld [vmem:[#allocation10 + $0x118] sm:$0xff]
    %v654 = vld [vmem:[#allocation10 + $0x120] sm:$0xff]
    %v655 = vld [vmem:[#allocation10 + $0x128] sm:$0xff]
    %v656 = vld [vmem:[#allocation10 + $0x130] sm:$0xff]
    %v657 = vld [vmem:[#allocation10 + $0x138] sm:$0xff]
    %v658 = vld [vmem:[#allocation10 + $0x140] sm:$0xff]
    %v659 = vld [vmem:[#allocation10 + $0x148] sm:$0xff]
    %v660 = vld [vmem:[#allocation10 + $0x150] sm:$0xff]
    %v661 = vld [vmem:[#allocation10 + $0x158] sm:$0xff]
    %v662 = vld [vmem:[#allocation10 + $0x160] sm:$0xff]
    %v663 = vld [vmem:[#allocation10 + $0x168] sm:$0xff]
    %v664 = vld [vmem:[#allocation10 + $0x170] sm:$0xff]
    %v665 = vld [vmem:[#allocation10 + $0x178] sm:$0xff]
    %v666 = vld [vmem:[#allocation10 + $0x180] sm:$0xff]
    %v667 = vld [vmem:[#allocation10 + $0x188] sm:$0xff]
    %v668 = vld [vmem:[#allocation10 + $0x190] sm:$0xff]
    %v669 = vld [vmem:[#allocation10 + $0x198] sm:$0xff]
    %v670 = vld [vmem:[#allocation10 + $0x1a0] sm:$0xff]
    %v671 = vld [vmem:[#allocation10 + $0x1a8] sm:$0xff]
    %v672 = vld [vmem:[#allocation10 + $0x1b0] sm:$0xff]
    %v673 = vld [vmem:[#allocation10 + $0x1b8] sm:$0xff]
    %v674 = vld [vmem:[#allocation10 + $0x1c0] sm:$0xff]
    %v675 = vld [vmem:[#allocation10 + $0x1c8] sm:$0xff]
    %v676 = vld [vmem:[#allocation10 + $0x1d0] sm:$0xff]
    %v677 = vld [vmem:[#allocation10 + $0x1d8] sm:$0xff]
    %v678 = vld [vmem:[#allocation10 + $0x1e0] sm:$0xff]
    %v679 = vld [vmem:[#allocation10 + $0x1e8] sm:$0xff]
    %v680 = vld [vmem:[#allocation10 + $0x1f0] sm:$0xff]
    %v681 = vld [vmem:[#allocation10 + $0x1f8] sm:$0xff]
    %v682 = vld [vmem:[%s8] sm:$0xff]
    %v683 = vld [vmem:[%s9] sm:$0xff]
    %v684 = vld [vmem:[#allocation3] sm:$0xff]
    %v685 = vld [vmem:[#allocation3 + $0x8] sm:$0xff]
    %v686 = vld [vmem:[#allocation3 + $0x10] sm:$0xff]
    %v687 = vld [vmem:[#allocation3 + $0x18] sm:$0xff]
    %688 = vmatprep.subr.mxu0 %v619
    %689 = vmatpush1.msra.mxu0 %v618
    %690 = vmatprep.subr.mxu0 %v623
    %691 = vmatpush1.msra.mxu0 %v622
    %692 = vmatprep.subr.mxu0 %v627
    %693 = vmatpush1.msra.mxu0 %v626
    %694 = vmatprep.subr.mxu0 %v631
    %695 = vmatpush1.msra.mxu0 %v630
    %696 = vmatprep.subr.mxu0 %v635
    %697 = vmatpush1.msra.mxu0 %v634
    %698 = vmatprep.subr.mxu0 %v639
    %699 = vmatpush1.msra.mxu0 %v638
    %700 = vmatprep.subr.mxu0 %v643
    %701 = vmatpush1.msra.mxu0 %v642
    %702 = vmatprep.subr.mxu0 %v647
    %703 = vmatpush1.msra.mxu0 %v646
    %704 = vmatprep.subr.mxu0 %v651
    %705 = vmatpush1.msra.mxu0 %v650
    %706 = vmatprep.subr.mxu0 %v655
    %707 = vmatpush1.msra.mxu0 %v654
    %708 = vmatprep.subr.mxu0 %v659
    %709 = vmatpush1.msra.mxu0 %v658
    %710 = vmatprep.subr.mxu0 %v663
    %711 = vmatpush1.msra.mxu0 %v662
    %712 = vmatprep.subr.mxu0 %v667
    %713 = vmatpush1.msra.mxu0 %v666
    %714 = vmatprep.subr.mxu0 %v671
    %715 = vmatpush1.msra.mxu0 %v670
    %716 = vmatprep.subr.mxu0 %v675
    %717 = vmatpush1.msra.mxu0 %v674
    %718 = vmatprep.subr.mxu0 %v679
    %719 = vmatpush1.msra.mxu0 %v678
    %720 = vmatprep.subr.mxu0 0.0
    %721 = vmatpush1.msra.mxu0 0.0
    %722 = vmatprep.subr.mxu0 0.0
    %723 = vmatpush1.msra.mxu0 0.0
    %724 = vmatprep.subr.mxu0 0.0
    %725 = vmatpush1.msra.mxu0 0.0
    %726 = vmatprep.subr.mxu0 0.0
    %727 = vmatpush1.msra.mxu0 0.0
    %728 = vmatprep.subr.mxu0 0.0
    %729 = vmatpush1.msra.mxu0 0.0
    %730 = vmatprep.subr.mxu0 0.0
    %731 = vmatpush1.msra.mxu0 0.0
    %732 = vmatprep.subr.mxu0 0.0
    %733 = vmatpush1.msra.mxu0 0.0
    %734 = vmatprep.subr.mxu0 0.0
    %735 = vmatpush1.msra.mxu0 0.0
    %736 = vmatprep.subr.mxu0 0.0
    %737 = vmatpush1.msra.mxu0 0.0
    %738 = vmatprep.subr.mxu0 0.0
    %739 = vmatpush1.msra.mxu0 0.0
    %740 = vmatprep.subr.mxu0 0.0
    %741 = vmatpush1.msra.mxu0 0.0
    %742 = vmatprep.subr.mxu0 0.0
    %743 = vmatpush1.msra.mxu0 0.0
    %744 = vmatprep.subr.mxu0 0.0
    %745 = vmatpush1.msra.mxu0 0.0
    %746 = vmatprep.subr.mxu0 0.0
    %747 = vmatpush1.msra.mxu0 0.0
    %748 = vmatprep.subr.mxu0 0.0
    %749 = vmatpush1.msra.mxu0 0.0
    %750 = vmatprep.subr.mxu0 0.0
    %751 = vmatpush1.msra.mxu0 0.0
    %752 = vmatprep.mubr.f32.mxu0 0.0
    %753 = vmatmul.mubr.f32.gmra.mrb[0].mxu0 %v682
    %v754 = vpop.f32.mrb[0].mxu0
    %v755 = vadd.f32 0.0, %v754
    %v756 = vpop.f32.mrb[0].mxu0
    %v757 = vadd.f32 0.0, %v756
    %758 = vdwg.mxu0
    %759 = vmatprep.subr.mxu0 %v621
    %760 = vmatpush1.msra.mxu0 %v620
    %761 = vmatprep.subr.mxu0 %v625
    %762 = vmatpush1.msra.mxu0 %v624
    %763 = vmatprep.subr.mxu0 %v629
    %764 = vmatpush1.msra.mxu0 %v628
    %765 = vmatprep.subr.mxu0 %v633
    %766 = vmatpush1.msra.mxu0 %v632
    %767 = vmatprep.subr.mxu0 %v637
    %768 = vmatpush1.msra.mxu0 %v636
    %769 = vmatprep.subr.mxu0 %v641
    %770 = vmatpush1.msra.mxu0 %v640
    %771 = vmatprep.subr.mxu0 %v645
    %772 = vmatpush1.msra.mxu0 %v644
    %773 = vmatprep.subr.mxu0 %v649
    %774 = vmatpush1.msra.mxu0 %v648
    %775 = vmatprep.subr.mxu0 %v653
    %776 = vmatpush1.msra.mxu0 %v652
    %777 = vmatprep.subr.mxu0 %v657
    %778 = vmatpush1.msra.mxu0 %v656
    %779 = vmatprep.subr.mxu0 %v661
    %780 = vmatpush1.msra.mxu0 %v660
    %781 = vmatprep.subr.mxu0 %v665
    %782 = vmatpush1.msra.mxu0 %v664
    %783 = vmatprep.subr.mxu0 %v669
    %784 = vmatpush1.msra.mxu0 %v668
    %785 = vmatprep.subr.mxu0 %v673
    %786 = vmatpush1.msra.mxu0 %v672
    %787 = vmatprep.subr.mxu0 %v677
    %788 = vmatpush1.msra.mxu0 %v676
    %789 = vmatprep.subr.mxu0 %v681
    %790 = vmatpush1.msra.mxu0 %v680
    %791 = vmatprep.subr.mxu0 0.0
    %792 = vmatpush1.msra.mxu0 0.0
    %793 = vmatprep.subr.mxu0 0.0
    %794 = vmatpush1.msra.mxu0 0.0
    %795 = vmatprep.subr.mxu0 0.0
    %796 = vmatpush1.msra.mxu0 0.0
    %797 = vmatprep.subr.mxu0 0.0
    %798 = vmatpush1.msra.mxu0 0.0
    %799 = vmatprep.subr.mxu0 0.0
    %800 = vmatpush1.msra.mxu0 0.0
    %801 = vmatprep.subr.mxu0 0.0
    %802 = vmatpush1.msra.mxu0 0.0
    %803 = vmatprep.subr.mxu0 0.0
    %804 = vmatpush1.msra.mxu0 0.0
    %805 = vmatprep.subr.mxu0 0.0
    %806 = vmatpush1.msra.mxu0 0.0
    %807 = vmatprep.subr.mxu0 0.0
    %808 = vmatpush1.msra.mxu0 0.0
    %809 = vmatprep.subr.mxu0 0.0
    %810 = vmatpush1.msra.mxu0 0.0
    %811 = vmatprep.subr.mxu0 0.0
    %812 = vmatpush1.msra.mxu0 0.0
    %813 = vmatprep.subr.mxu0 0.0
    %814 = vmatpush1.msra.mxu0 0.0
    %815 = vmatprep.subr.mxu0 0.0
    %816 = vmatpush1.msra.mxu0 0.0
    %817 = vmatprep.subr.mxu0 0.0
    %818 = vmatpush1.msra.mxu0 0.0
    %819 = vmatprep.subr.mxu0 0.0
    %820 = vmatpush1.msra.mxu0 0.0
    %821 = vmatprep.subr.mxu0 0.0
    %822 = vmatpush1.msra.mxu0 0.0
    %823 = vmatprep.mubr.f32.mxu0 0.0
    %824 = vmatmul.mubr.f32.gmra.mrb[0].mxu0 %v682
    %v825 = vpop.f32.mrb[0].mxu0
    %v826 = vadd.f32 0.0, %v825
    %v827 = vpop.f32.mrb[0].mxu0
    %v828 = vadd.f32 0.0, %v827
    %829 = vdwg.mxu0
    %v830 = vadd.f32 %v684, %v755
    %v831 = vadd.f32 %v685, %v757
    %v832 = vadd.f32 %v686, %v826
    %v833 = vadd.f32 %v687, %v828
    %v834 = vxor.u32 %v830, 2147483648
    %v835 = vmul.f32 %v834, 1.442695
    %v836 = vpow.pop %v835
    %v837 = vadd.f32 %v836, 1.0
    %v838 = vrcp.pop %v837
    %v839 = vmul.f32 1.0, %v838
    %v840 = vxor.u32 %v831, 2147483648
    %v841 = vmul.f32 %v840, 1.442695
    %v842 = vpow.pop %v841
    %v843 = vadd.f32 %v842, 1.0
    %v844 = vrcp.pop %v843
    %v845 = vmul.f32 1.0, %v844
    %v846 = vtanh.pop %v832
    %v847 = vxor.u32 %v833, 2147483648
    %v848 = vmul.f32 %v847, 1.442695
    %v849 = vpow.pop %v848
    %v850 = vadd.f32 %v849, 1.0
    %v851 = vrcp.pop %v850
    %v852 = vmul.f32 1.0, %v851
    %v853 = vmul.f32 %v845, %v683
    %v854 = vmul.f32 %v839, %v846
    %v855 = vadd.f32 %v853, %v854
    %v856 = vtanh.pop %v855
    %v857 = vmul.f32 %v852, %v856
    %858 = vst [vmem:[#allocation2] sm:$0xff] %v857
    %v859 = vld [vmem:[#allocation3 + $0x20] sm:$0xff]
    %v860 = vld [vmem:[#allocation3 + $0x28] sm:$0xff]
    %v861 = vld [vmem:[#allocation3 + $0x30] sm:$0xff]
    %v862 = vld [vmem:[#allocation3 + $0x38] sm:$0xff]
    %863 = vmatprep.subr.mxu0 %v619
    %864 = vmatpush1.msra.mxu0 %v618
    %865 = vmatprep.subr.mxu0 %v623
    %866 = vmatpush1.msra.mxu0 %v622
    %867 = vmatprep.subr.mxu0 %v627
    %868 = vmatpush1.msra.mxu0 %v626
    %869 = vmatprep.subr.mxu0 %v631
    %870 = vmatpush1.msra.mxu0 %v630
    %871 = vmatprep.subr.mxu0 %v635
    %872 = vmatpush1.msra.mxu0 %v634
    %873 = vmatprep.subr.mxu0 %v639
    %874 = vmatpush1.msra.mxu0 %v638
    %875 = vmatprep.subr.mxu0 %v643
    %876 = vmatpush1.msra.mxu0 %v642
    %877 = vmatprep.subr.mxu0 %v647
    %878 = vmatpush1.msra.mxu0 %v646
    %879 = vmatprep.subr.mxu0 %v651
    %880 = vmatpush1.msra.mxu0 %v650
    %881 = vmatprep.subr.mxu0 %v655
    %882 = vmatpush1.msra.mxu0 %v654
    %883 = vmatprep.subr.mxu0 %v659
    %884 = vmatpush1.msra.mxu0 %v658
    %885 = vmatprep.subr.mxu0 %v663
    %886 = vmatpush1.msra.mxu0 %v662
    %887 = vmatprep.subr.mxu0 %v667
    %888 = vmatpush1.msra.mxu0 %v666
    %889 = vmatprep.subr.mxu0 %v671
    %890 = vmatpush1.msra.mxu0 %v670
    %891 = vmatprep.subr.mxu0 %v675
    %892 = vmatpush1.msra.mxu0 %v674
    %893 = vmatprep.subr.mxu0 %v679
    %894 = vmatpush1.msra.mxu0 %v678
    %895 = vmatprep.subr.mxu0 0.0
    %896 = vmatpush1.msra.mxu0 0.0
    %897 = vmatprep.subr.mxu0 0.0
    %898 = vmatpush1.msra.mxu0 0.0
    %899 = vmatprep.subr.mxu0 0.0
    %900 = vmatpush1.msra.mxu0 0.0
    %901 = vmatprep.subr.mxu0 0.0
    %902 = vmatpush1.msra.mxu0 0.0
    %903 = vmatprep.subr.mxu0 0.0
    %904 = vmatpush1.msra.mxu0 0.0
    %905 = vmatprep.subr.mxu0 0.0
    %906 = vmatpush1.msra.mxu0 0.0
    %907 = vmatprep.subr.mxu0 0.0
    %908 = vmatpush1.msra.mxu0 0.0
    %909 = vmatprep.subr.mxu0 0.0
    %910 = vmatpush1.msra.mxu0 0.0
    %911 = vmatprep.subr.mxu0 0.0
    %912 = vmatpush1.msra.mxu0 0.0
    %913 = vmatprep.subr.mxu0 0.0
    %914 = vmatpush1.msra.mxu0 0.0
    %915 = vmatprep.subr.mxu0 0.0
    %916 = vmatpush1.msra.mxu0 0.0
    %917 = vmatprep.subr.mxu0 0.0
    %918 = vmatpush1.msra.mxu0 0.0
    %919 = vmatprep.subr.mxu0 0.0
    %920 = vmatpush1.msra.mxu0 0.0
    %921 = vmatprep.subr.mxu0 0.0
    %922 = vmatpush1.msra.mxu0 0.0
    %923 = vmatprep.subr.mxu0 0.0
    %924 = vmatpush1.msra.mxu0 0.0
    %925 = vmatprep.subr.mxu0 0.0
    %926 = vmatpush1.msra.mxu0 0.0
    %927 = vmatprep.mubr.f32.mxu0 0.0
    %928 = vmatmul.mubr.f32.gmra.mrb[0].mxu0 %v857
    %v929 = vpop.f32.mrb[0].mxu0
    %v930 = vadd.f32 0.0, %v929
    %v931 = vpop.f32.mrb[0].mxu0
    %v932 = vadd.f32 0.0, %v931
    %933 = vdwg.mxu0
    %934 = vmatprep.subr.mxu0 %v621
    %935 = vmatpush1.msra.mxu0 %v620
    %936 = vmatprep.subr.mxu0 %v625
    %937 = vmatpush1.msra.mxu0 %v624
    %938 = vmatprep.subr.mxu0 %v629
    %939 = vmatpush1.msra.mxu0 %v628
    %940 = vmatprep.subr.mxu0 %v633
    %941 = vmatpush1.msra.mxu0 %v632
    %942 = vmatprep.subr.mxu0 %v637
    %943 = vmatpush1.msra.mxu0 %v636
    %944 = vmatprep.subr.mxu0 %v641
    %945 = vmatpush1.msra.mxu0 %v640
    %946 = vmatprep.subr.mxu0 %v645
    %947 = vmatpush1.msra.mxu0 %v644
    %948 = vmatprep.subr.mxu0 %v649
    %949 = vmatpush1.msra.mxu0 %v648
    %950 = vmatprep.subr.mxu0 %v653
    %951 = vmatpush1.msra.mxu0 %v652
    %952 = vmatprep.subr.mxu0 %v657
    %953 = vmatpush1.msra.mxu0 %v656
    %954 = vmatprep.subr.mxu0 %v661
    %955 = vmatpush1.msra.mxu0 %v660
    %956 = vmatprep.subr.mxu0 %v665
    %957 = vmatpush1.msra.mxu0 %v664
    %958 = vmatprep.subr.mxu0 %v669
    %959 = vmatpush1.msra.mxu0 %v668
    %960 = vmatprep.subr.mxu0 %v673
    %961 = vmatpush1.msra.mxu0 %v672
    %962 = vmatprep.subr.mxu0 %v677
    %963 = vmatpush1.msra.mxu0 %v676
    %964 = vmatprep.subr.mxu0 %v681
    %965 = vmatpush1.msra.mxu0 %v680
    %966 = vmatprep.subr.mxu0 0.0
    %967 = vmatpush1.msra.mxu0 0.0
    %968 = vmatprep.subr.mxu0 0.0
    %969 = vmatpush1.msra.mxu0 0.0
    %970 = vmatprep.subr.mxu0 0.0
    %971 = vmatpush1.msra.mxu0 0.0
    %972 = vmatprep.subr.mxu0 0.0
    %973 = vmatpush1.msra.mxu0 0.0
    %974 = vmatprep.subr.mxu0 0.0
    %975 = vmatpush1.msra.mxu0 0.0
    %976 = vmatprep.subr.mxu0 0.0
    %977 = vmatpush1.msra.mxu0 0.0
    %978 = vmatprep.subr.mxu0 0.0
    %979 = vmatpush1.msra.mxu0 0.0
    %980 = vmatprep.subr.mxu0 0.0
    %981 = vmatpush1.msra.mxu0 0.0
    %982 = vmatprep.subr.mxu0 0.0
    %983 = vmatpush1.msra.mxu0 0.0
    %984 = vmatprep.subr.mxu0 0.0
    %985 = vmatpush1.msra.mxu0 0.0
    %986 = vmatprep.subr.mxu0 0.0
    %987 = vmatpush1.msra.mxu0 0.0
    %988 = vmatprep.subr.mxu0 0.0
    %989 = vmatpush1.msra.mxu0 0.0
    %990 = vmatprep.subr.mxu0 0.0
    %991 = vmatpush1.msra.mxu0 0.0
    %992 = vmatprep.subr.mxu0 0.0
    %993 = vmatpush1.msra.mxu0 0.0
    %994 = vmatprep.subr.mxu0 0.0
    %995 = vmatpush1.msra.mxu0 0.0
    %996 = vmatprep.subr.mxu0 0.0
    %997 = vmatpush1.msra.mxu0 0.0
    %998 = vmatprep.mubr.f32.mxu0 0.0
    %999 = vmatmul.mubr.f32.gmra.mrb[0].mxu0 %v857
    %v1000 = vpop.f32.mrb[0].mxu0
    %v1001 = vadd.f32 0.0, %v1000
    %v1002 = vpop.f32.mrb[0].mxu0
    %v1003 = vadd.f32 0.0, %v1002
    %1004 = vdwg.mxu0
    %v1005 = vadd.f32 %v859, %v930
    %v1006 = vadd.f32 %v860, %v932
    %v1007 = vadd.f32 %v861, %v1001
    %v1008 = vadd.f32 %v862, %v1003
    %v1009 = vxor.u32 %v1005, 2147483648
    %v1010 = vmul.f32 %v1009, 1.442695
    %v1011 = vpow.pop %v1010
    %v1012 = vadd.f32 %v1011, 1.0
    %v1013 = vrcp.pop %v1012
    %v1014 = vmul.f32 1.0, %v1013
    %v1015 = vxor.u32 %v1006, 2147483648
    %v1016 = vmul.f32 %v1015, 1.442695
    %v1017 = vpow.pop %v1016
    %v1018 = vadd.f32 %v1017, 1.0
    %v1019 = vrcp.pop %v1018
    %v1020 = vmul.f32 1.0, %v1019
    %v1021 = vtanh.pop %v1007
    %v1022 = vxor.u32 %v1008, 2147483648
    %v1023 = vmul.f32 %v1022, 1.442695
    %v1024 = vpow.pop %v1023
    %v1025 = vadd.f32 %v1024, 1.0
    %v1026 = vrcp.pop %v1025
    %v1027 = vmul.f32 1.0, %v1026
    %v1028 = vmul.f32 %v1020, %v855
    %v1029 = vmul.f32 %v1014, %v1021
    %v1030 = vadd.f32 %v1028, %v1029
    %v1031 = vtanh.pop %v1030
    %v1032 = vmul.f32 %v1027, %v1031
    %1033 = vst [vmem:[#allocation2 + $0x8] sm:$0xff] %v1032
    %v1034 = vld [vmem:[#allocation3 + $0x40] sm:$0xff]
    %v1035 = vld [vmem:[#allocation3 + $0x48] sm:$0xff]
    %v1036 = vld [vmem:[#allocation3 + $0x50] sm:$0xff]
    %v1037 = vld [vmem:[#allocation3 + $0x58] sm:$0xff]
    %1038 = vmatprep.subr.mxu0 %v619
    %1039 = vmatpush1.msra.mxu0 %v618
    %1040 = vmatprep.subr.mxu0 %v623
    %1041 = vmatpush1.msra.mxu0 %v622
    %1042 = vmatprep.subr.mxu0 %v627
    %1043 = vmatpush1.msra.mxu0 %v626
    %1044 = vmatprep.subr.mxu0 %v631
    %1045 = vmatpush1.msra.mxu0 %v630
    %1046 = vmatprep.subr.mxu0 %v635
    %1047 = vmatpush1.msra.mxu0 %v634
    %1048 = vmatprep.subr.mxu0 %v639
    %1049 = vmatpush1.msra.mxu0 %v638
    %1050 = vmatprep.subr.mxu0 %v643
    %1051 = vmatpush1.msra.mxu0 %v642
    %1052 = vmatprep.subr.mxu0 %v647
    %1053 = vmatpush1.msra.mxu0 %v646
    %1054 = vmatprep.subr.mxu0 %v651
    %1055 = vmatpush1.msra.mxu0 %v650
    %1056 = vmatprep.subr.mxu0 %v655
    %1057 = vmatpush1.msra.mxu0 %v654
    %1058 = vmatprep.subr.mxu0 %v659
    %1059 = vmatpush1.msra.mxu0 %v658
    %1060 = vmatprep.subr.mxu0 %v663
    %1061 = vmatpush1.msra.mxu0 %v662
    %1062 = vmatprep.subr.mxu0 %v667
    %1063 = vmatpush1.msra.mxu0 %v666
    %1064 = vmatprep.subr.mxu0 %v671
    %1065 = vmatpush1.msra.mxu0 %v670
    %1066 = vmatprep.subr.mxu0 %v675
    %1067 = vmatpush1.msra.mxu0 %v674
    %1068 = vmatprep.subr.mxu0 %v679
    %1069 = vmatpush1.msra.mxu0 %v678
    %1070 = vmatprep.subr.mxu0 0.0
    %1071 = vmatpush1.msra.mxu0 0.0
    %1072 = vmatprep.subr.mxu0 0.0
    %1073 = vmatpush1.msra.mxu0 0.0
    %1074 = vmatprep.subr.mxu0 0.0
    %1075 = vmatpush1.msra.mxu0 0.0
    %1076 = vmatprep.subr.mxu0 0.0
    %1077 = vmatpush1.msra.mxu0 0.0
    %1078 = vmatprep.subr.mxu0 0.0
    %1079 = vmatpush1.msra.mxu0 0.0
    %1080 = vmatprep.subr.mxu0 0.0
    %1081 = vmatpush1.msra.mxu0 0.0
    %1082 = vmatprep.subr.mxu0 0.0
    %1083 = vmatpush1.msra.mxu0 0.0
    %1084 = vmatprep.subr.mxu0 0.0
    %1085 = vmatpush1.msra.mxu0 0.0
    %1086 = vmatprep.subr.mxu0 0.0
    %1087 = vmatpush1.msra.mxu0 0.0
    %1088 = vmatprep.subr.mxu0 0.0
    %1089 = vmatpush1.msra.mxu0 0.0
    %1090 = vmatprep.subr.mxu0 0.0
    %1091 = vmatpush1.msra.mxu0 0.0
    %1092 = vmatprep.subr.mxu0 0.0
    %1093 = vmatpush1.msra.mxu0 0.0
    %1094 = vmatprep.subr.mxu0 0.0
    %1095 = vmatpush1.msra.mxu0 0.0
    %1096 = vmatprep.subr.mxu0 0.0
    %1097 = vmatpush1.msra.mxu0 0.0
    %1098 = vmatprep.subr.mxu0 0.0
    %1099 = vmatpush1.msra.mxu0 0.0
    %1100 = vmatprep.subr.mxu0 0.0
    %1101 = vmatpush1.msra.mxu0 0.0
    %1102 = vmatprep.mubr.f32.mxu0 0.0
    %1103 = vmatmul.mubr.f32.gmra.mrb[0].mxu0 %v1032
    %v1104 = vpop.f32.mrb[0].mxu0
    %v1105 = vadd.f32 0.0, %v1104
    %v1106 = vpop.f32.mrb[0].mxu0
    %v1107 = vadd.f32 0.0, %v1106
    %1108 = vdwg.mxu0
    %1109 = vmatprep.subr.mxu0 %v621
    %1110 = vmatpush1.msra.mxu0 %v620
    %1111 = vmatprep.subr.mxu0 %v625
    %1112 = vmatpush1.msra.mxu0 %v624
    %1113 = vmatprep.subr.mxu0 %v629
    %1114 = vmatpush1.msra.mxu0 %v628
    %1115 = vmatprep.subr.mxu0 %v633
    %1116 = vmatpush1.msra.mxu0 %v632
    %1117 = vmatprep.subr.mxu0 %v637
    %1118 = vmatpush1.msra.mxu0 %v636
    %1119 = vmatprep.subr.mxu0 %v641
    %1120 = vmatpush1.msra.mxu0 %v640
    %1121 = vmatprep.subr.mxu0 %v645
    %1122 = vmatpush1.msra.mxu0 %v644
    %1123 = vmatprep.subr.mxu0 %v649
    %1124 = vmatpush1.msra.mxu0 %v648
    %1125 = vmatprep.subr.mxu0 %v653
    %1126 = vmatpush1.msra.mxu0 %v652
    %1127 = vmatprep.subr.mxu0 %v657
    %1128 = vmatpush1.msra.mxu0 %v656
    %1129 = vmatprep.subr.mxu0 %v661
    %1130 = vmatpush1.msra.mxu0 %v660
    %1131 = vmatprep.subr.mxu0 %v665
    %1132 = vmatpush1.msra.mxu0 %v664
    %1133 = vmatprep.subr.mxu0 %v669
    %1134 = vmatpush1.msra.mxu0 %v668
    %1135 = vmatprep.subr.mxu0 %v673
    %1136 = vmatpush1.msra.mxu0 %v672
    %1137 = vmatprep.subr.mxu0 %v677
    %1138 = vmatpush1.msra.mxu0 %v676
    %1139 = vmatprep.subr.mxu0 %v681
    %1140 = vmatpush1.msra.mxu0 %v680
    %1141 = vmatprep.subr.mxu0 0.0
    %1142 = vmatpush1.msra.mxu0 0.0
    %1143 = vmatprep.subr.mxu0 0.0
    %1144 = vmatpush1.msra.mxu0 0.0
    %1145 = vmatprep.subr.mxu0 0.0
    %1146 = vmatpush1.msra.mxu0 0.0
    %1147 = vmatprep.subr.mxu0 0.0
    %1148 = vmatpush1.msra.mxu0 0.0
    %1149 = vmatprep.subr.mxu0 0.0
    %1150 = vmatpush1.msra.mxu0 0.0
    %1151 = vmatprep.subr.mxu0 0.0
    %1152 = vmatpush1.msra.mxu0 0.0
    %1153 = vmatprep.subr.mxu0 0.0
    %1154 = vmatpush1.msra.mxu0 0.0
    %1155 = vmatprep.subr.mxu0 0.0
    %1156 = vmatpush1.msra.mxu0 0.0
    %1157 = vmatprep.subr.mxu0 0.0
    %1158 = vmatpush1.msra.mxu0 0.0
    %1159 = vmatprep.subr.mxu0 0.0
    %1160 = vmatpush1.msra.mxu0 0.0
    %1161 = vmatprep.subr.mxu0 0.0
    %1162 = vmatpush1.msra.mxu0 0.0
    %1163 = vmatprep.subr.mxu0 0.0
    %1164 = vmatpush1.msra.mxu0 0.0
    %1165 = vmatprep.subr.mxu0 0.0
    %1166 = vmatpush1.msra.mxu0 0.0
    %1167 = vmatprep.subr.mxu0 0.0
    %1168 = vmatpush1.msra.mxu0 0.0
    %1169 = vmatprep.subr.mxu0 0.0
    %1170 = vmatpush1.msra.mxu0 0.0
    %1171 = vmatprep.subr.mxu0 0.0
    %1172 = vmatpush1.msra.mxu0 0.0
    %1173 = vmatprep.mubr.f32.mxu0 0.0
    %1174 = vmatmul.mubr.f32.gmra.mrb[0].mxu0 %v1032
    %v1175 = vpop.f32.mrb[0].mxu0
    %v1176 = vadd.f32 0.0, %v1175
    %v1177 = vpop.f32.mrb[0].mxu0
    %v1178 = vadd.f32 0.0, %v1177
    %1179 = vdwg.mxu0
    %v1180 = vadd.f32 %v1034, %v1105
    %v1181 = vadd.f32 %v1035, %v1107
    %v1182 = vadd.f32 %v1036, %v1176
    %v1183 = vadd.f32 %v1037, %v1178
    %v1184 = vxor.u32 %v1180, 2147483648
    %v1185 = vmul.f32 %v1184, 1.442695
    %v1186 = vpow.pop %v1185
    %v1187 = vadd.f32 %v1186, 1.0
    %v1188 = vrcp.pop %v1187
    %v1189 = vmul.f32 1.0, %v1188
    %v1190 = vxor.u32 %v1181, 2147483648
    %v1191 = vmul.f32 %v1190, 1.442695
    %v1192 = vpow.pop %v1191
    %v1193 = vadd.f32 %v1192, 1.0
    %v1194 = vrcp.pop %v1193
    %v1195 = vmul.f32 1.0, %v1194
    %v1196 = vtanh.pop %v1182
    %v1197 = vxor.u32 %v1183, 2147483648
    %v1198 = vmul.f32 %v1197, 1.442695
    %v1199 = vpow.pop %v1198
    %v1200 = vadd.f32 %v1199, 1.0
    %v1201 = vrcp.pop %v1200
    %v1202 = vmul.f32 1.0, %v1201
    %v1203 = vmul.f32 %v1195, %v1030
    %v1204 = vmul.f32 %v1189, %v1196
    %v1205 = vadd.f32 %v1203, %v1204
    %v1206 = vtanh.pop %v1205
    %v1207 = vmul.f32 %v1202, %v1206
    %1208 = vst [vmem:[#allocation2 + $0x10] sm:$0xff] %v1207
    %v1209 = vld [vmem:[#allocation3 + $0x60] sm:$0xff]
    %v1210 = vld [vmem:[#allocation3 + $0x68] sm:$0xff]
    %v1211 = vld [vmem:[#allocation3 + $0x70] sm:$0xff]
    %v1212 = vld [vmem:[#allocation3 + $0x78] sm:$0xff]
    %1213 = vmatprep.subr.mxu0 %v619
    %1214 = vmatpush1.msra.mxu0 %v618
    %1215 = vmatprep.subr.mxu0 %v623
    %1216 = vmatpush1.msra.mxu0 %v622
    %1217 = vmatprep.subr.mxu0 %v627
    %1218 = vmatpush1.msra.mxu0 %v626
    %1219 = vmatprep.subr.mxu0 %v631
    %1220 = vmatpush1.msra.mxu0 %v630
    %1221 = vmatprep.subr.mxu0 %v635
    %1222 = vmatpush1.msra.mxu0 %v634
    %1223 = vmatprep.subr.mxu0 %v639
    %1224 = vmatpush1.msra.mxu0 %v638
    %1225 = vmatprep.subr.mxu0 %v643
    %1226 = vmatpush1.msra.mxu0 %v642
    %1227 = vmatprep.subr.mxu0 %v647
    %1228 = vmatpush1.msra.mxu0 %v646
    %1229 = vmatprep.subr.mxu0 %v651
    %1230 = vmatpush1.msra.mxu0 %v650
    %1231 = vmatprep.subr.mxu0 %v655
    %1232 = vmatpush1.msra.mxu0 %v654
    %1233 = vmatprep.subr.mxu0 %v659
    %1234 = vmatpush1.msra.mxu0 %v658
    %1235 = vmatprep.subr.mxu0 %v663
    %1236 = vmatpush1.msra.mxu0 %v662
    %1237 = vmatprep.subr.mxu0 %v667
    %1238 = vmatpush1.msra.mxu0 %v666
    %1239 = vmatprep.subr.mxu0 %v671
    %1240 = vmatpush1.msra.mxu0 %v670
    %1241 = vmatprep.subr.mxu0 %v675
    %1242 = vmatpush1.msra.mxu0 %v674
    %1243 = vmatprep.subr.mxu0 %v679
    %1244 = vmatpush1.msra.mxu0 %v678
    %1245 = vmatprep.subr.mxu0 0.0
    %1246 = vmatpush1.msra.mxu0 0.0
    %1247 = vmatprep.subr.mxu0 0.0
    %1248 = vmatpush1.msra.mxu0 0.0
    %1249 = vmatprep.subr.mxu0 0.0
    %1250 = vmatpush1.msra.mxu0 0.0
    %1251 = vmatprep.subr.mxu0 0.0
    %1252 = vmatpush1.msra.mxu0 0.0
    %1253 = vmatprep.subr.mxu0 0.0
    %1254 = vmatpush1.msra.mxu0 0.0
    %1255 = vmatprep.subr.mxu0 0.0
    %1256 = vmatpush1.msra.mxu0 0.0
    %1257 = vmatprep.subr.mxu0 0.0
    %1258 = vmatpush1.msra.mxu0 0.0
    %1259 = vmatprep.subr.mxu0 0.0
    %1260 = vmatpush1.msra.mxu0 0.0
    %1261 = vmatprep.subr.mxu0 0.0
    %1262 = vmatpush1.msra.mxu0 0.0
    %1263 = vmatprep.subr.mxu0 0.0
    %1264 = vmatpush1.msra.mxu0 0.0
    %1265 = vmatprep.subr.mxu0 0.0
    %1266 = vmatpush1.msra.mxu0 0.0
    %1267 = vmatprep.subr.mxu0 0.0
    %1268 = vmatpush1.msra.mxu0 0.0
    %1269 = vmatprep.subr.mxu0 0.0
    %1270 = vmatpush1.msra.mxu0 0.0
    %1271 = vmatprep.subr.mxu0 0.0
    %1272 = vmatpush1.msra.mxu0 0.0
    %1273 = vmatprep.subr.mxu0 0.0
    %1274 = vmatpush1.msra.mxu0 0.0
    %1275 = vmatprep.subr.mxu0 0.0
    %1276 = vmatpush1.msra.mxu0 0.0
    %1277 = vmatprep.mubr.f32.mxu0 0.0
    %1278 = vmatmul.mubr.f32.gmra.mrb[0].mxu0 %v1207
    %v1279 = vpop.f32.mrb[0].mxu0
    %v1280 = vadd.f32 0.0, %v1279
    %v1281 = vpop.f32.mrb[0].mxu0
    %v1282 = vadd.f32 0.0, %v1281
    %1283 = vdwg.mxu0
    %1284 = vmatprep.subr.mxu0 %v621
    %1285 = vmatpush1.msra.mxu0 %v620
    %1286 = vmatprep.subr.mxu0 %v625
    %1287 = vmatpush1.msra.mxu0 %v624
    %1288 = vmatprep.subr.mxu0 %v629
    %1289 = vmatpush1.msra.mxu0 %v628
    %1290 = vmatprep.subr.mxu0 %v633
    %1291 = vmatpush1.msra.mxu0 %v632
    %1292 = vmatprep.subr.mxu0 %v637
    %1293 = vmatpush1.msra.mxu0 %v636
    %1294 = vmatprep.subr.mxu0 %v641
    %1295 = vmatpush1.msra.mxu0 %v640
    %1296 = vmatprep.subr.mxu0 %v645
    %1297 = vmatpush1.msra.mxu0 %v644
    %1298 = vmatprep.subr.mxu0 %v649
    %1299 = vmatpush1.msra.mxu0 %v648
    %1300 = vmatprep.subr.mxu0 %v653
    %1301 = vmatpush1.msra.mxu0 %v652
    %1302 = vmatprep.subr.mxu0 %v657
    %1303 = vmatpush1.msra.mxu0 %v656
    %1304 = vmatprep.subr.mxu0 %v661
    %1305 = vmatpush1.msra.mxu0 %v660
    %1306 = vmatprep.subr.mxu0 %v665
    %1307 = vmatpush1.msra.mxu0 %v664
    %1308 = vmatprep.subr.mxu0 %v669
    %1309 = vmatpush1.msra.mxu0 %v668
    %1310 = vmatprep.subr.mxu0 %v673
    %1311 = vmatpush1.msra.mxu0 %v672
    %1312 = vmatprep.subr.mxu0 %v677
    %1313 = vmatpush1.msra.mxu0 %v676
    %1314 = vmatprep.subr.mxu0 %v681
    %1315 = vmatpush1.msra.mxu0 %v680
    %1316 = vmatprep.subr.mxu0 0.0
    %1317 = vmatpush1.msra.mxu0 0.0
    %1318 = vmatprep.subr.mxu0 0.0
    %1319 = vmatpush1.msra.mxu0 0.0
    %1320 = vmatprep.subr.mxu0 0.0
    %1321 = vmatpush1.msra.mxu0 0.0
    %1322 = vmatprep.subr.mxu0 0.0
    %1323 = vmatpush1.msra.mxu0 0.0
    %1324 = vmatprep.subr.mxu0 0.0
    %1325 = vmatpush1.msra.mxu0 0.0
    %1326 = vmatprep.subr.mxu0 0.0
    %1327 = vmatpush1.msra.mxu0 0.0
    %1328 = vmatprep.subr.mxu0 0.0
    %1329 = vmatpush1.msra.mxu0 0.0
    %1330 = vmatprep.subr.mxu0 0.0
    %1331 = vmatpush1.msra.mxu0 0.0
    %1332 = vmatprep.subr.mxu0 0.0
    %1333 = vmatpush1.msra.mxu0 0.0
    %1334 = vmatprep.subr.mxu0 0.0
    %1335 = vmatpush1.msra.mxu0 0.0
    %1336 = vmatprep.subr.mxu0 0.0
    %1337 = vmatpush1.msra.mxu0 0.0
    %1338 = vmatprep.subr.mxu0 0.0
    %1339 = vmatpush1.msra.mxu0 0.0
    %1340 = vmatprep.subr.mxu0 0.0
    %1341 = vmatpush1.msra.mxu0 0.0
    %1342 = vmatprep.subr.mxu0 0.0
    %1343 = vmatpush1.msra.mxu0 0.0
    %1344 = vmatprep.subr.mxu0 0.0
    %1345 = vmatpush1.msra.mxu0 0.0
    %1346 = vmatprep.subr.mxu0 0.0
    %1347 = vmatpush1.msra.mxu0 0.0
    %1348 = vmatprep.mubr.f32.mxu0 0.0
    %1349 = vmatmul.mubr.f32.gmra.mrb[0].mxu0 %v1207
    %v1350 = vpop.f32.mrb[0].mxu0
    %v1351 = vadd.f32 0.0, %v1350
    %v1352 = vpop.f32.mrb[0].mxu0
    %v1353 = vadd.f32 0.0, %v1352
    %1354 = vdwg.mxu0
    %v1355 = vadd.f32 %v1209, %v1280
    %v1356 = vadd.f32 %v1210, %v1282
    %v1357 = vadd.f32 %v1211, %v1351
    %v1358 = vadd.f32 %v1212, %v1353
    %v1359 = vxor.u32 %v1355, 2147483648
    %v1360 = vmul.f32 %v1359, 1.442695
    %v1361 = vpow.pop %v1360
    %v1362 = vadd.f32 %v1361, 1.0
    %v1363 = vrcp.pop %v1362
    %v1364 = vmul.f32 1.0, %v1363
    %v1365 = vxor.u32 %v1356, 2147483648
    %v1366 = vmul.f32 %v1365, 1.442695
    %v1367 = vpow.pop %v1366
    %v1368 = vadd.f32 %v1367, 1.0
    %v1369 = vrcp.pop %v1368
    %v1370 = vmul.f32 1.0, %v1369
    %v1371 = vtanh.pop %v1357
    %v1372 = vxor.u32 %v1358, 2147483648
    %v1373 = vmul.f32 %v1372, 1.442695
    %v1374 = vpow.pop %v1373
    %v1375 = vadd.f32 %v1374, 1.0
    %v1376 = vrcp.pop %v1375
    %v1377 = vmul.f32 1.0, %v1376
    %v1378 = vmul.f32 %v1370, %v1205
    %v1379 = vmul.f32 %v1364, %v1371
    %v1380 = vadd.f32 %v1378, %v1379
    %v1381 = vtanh.pop %v1380
    %v1382 = vmul.f32 %v1377, %v1381
    %1383 = vst [vmem:[#allocation2 + $0x18] sm:$0xff] %v1382
    %v1384 = vld [vmem:[#allocation3 + $0x80] sm:$0xff]
    %v1385 = vld [vmem:[#allocation3 + $0x88] sm:$0xff]
    %v1386 = vld [vmem:[#allocation3 + $0x90] sm:$0xff]
    %v1387 = vld [vmem:[#allocation3 + $0x98] sm:$0xff]
    %1388 = vmatprep.subr.mxu0 %v619
    %1389 = vmatpush1.msra.mxu0 %v618
    %1390 = vmatprep.subr.mxu0 %v623
    %1391 = vmatpush1.msra.mxu0 %v622
    %1392 = vmatprep.subr.mxu0 %v627
    %1393 = vmatpush1.msra.mxu0 %v626
    %1394 = vmatprep.subr.mxu0 %v631
    %1395 = vmatpush1.msra.mxu0 %v630
    %1396 = vmatprep.subr.mxu0 %v635
    %1397 = vmatpush1.msra.mxu0 %v634
    %1398 = vmatprep.subr.mxu0 %v639
    %1399 = vmatpush1.msra.mxu0 %v638
    %1400 = vmatprep.subr.mxu0 %v643
    %1401 = vmatpush1.msra.mxu0 %v642
    %1402 = vmatprep.subr.mxu0 %v647
    %1403 = vmatpush1.msra.mxu0 %v646
    %1404 = vmatprep.subr.mxu0 %v651
    %1405 = vmatpush1.msra.mxu0 %v650
    %1406 = vmatprep.subr.mxu0 %v655
    %1407 = vmatpush1.msra.mxu0 %v654
    %1408 = vmatprep.subr.mxu0 %v659
    %1409 = vmatpush1.msra.mxu0 %v658
    %1410 = vmatprep.subr.mxu0 %v663
    %1411 = vmatpush1.msra.mxu0 %v662
    %1412 = vmatprep.subr.mxu0 %v667
    %1413 = vmatpush1.msra.mxu0 %v666
    %1414 = vmatprep.subr.mxu0 %v671
    %1415 = vmatpush1.msra.mxu0 %v670
    %1416 = vmatprep.subr.mxu0 %v675
    %1417 = vmatpush1.msra.mxu0 %v674
    %1418 = vmatprep.subr.mxu0 %v679
    %1419 = vmatpush1.msra.mxu0 %v678
    %1420 = vmatprep.subr.mxu0 0.0
    %1421 = vmatpush1.msra.mxu0 0.0
    %1422 = vmatprep.subr.mxu0 0.0
    %1423 = vmatpush1.msra.mxu0 0.0
    %1424 = vmatprep.subr.mxu0 0.0
    %1425 = vmatpush1.msra.mxu0 0.0
    %1426 = vmatprep.subr.mxu0 0.0
    %1427 = vmatpush1.msra.mxu0 0.0
    %1428 = vmatprep.subr.mxu0 0.0
    %1429 = vmatpush1.msra.mxu0 0.0
    %1430 = vmatprep.subr.mxu0 0.0
    %1431 = vmatpush1.msra.mxu0 0.0
    %1432 = vmatprep.subr.mxu0 0.0
    %1433 = vmatpush1.msra.mxu0 0.0
    %1434 = vmatprep.subr.mxu0 0.0
    %1435 = vmatpush1.msra.mxu0 0.0
    %1436 = vmatprep.subr.mxu0 0.0
    %1437 = vmatpush1.msra.mxu0 0.0
    %1438 = vmatprep.subr.mxu0 0.0
    %1439 = vmatpush1.msra.mxu0 0.0
    %1440 = vmatprep.subr.mxu0 0.0
    %1441 = vmatpush1.msra.mxu0 0.0
    %1442 = vmatprep.subr.mxu0 0.0
    %1443 = vmatpush1.msra.mxu0 0.0
    %1444 = vmatprep.subr.mxu0 0.0
    %1445 = vmatpush1.msra.mxu0 0.0
    %1446 = vmatprep.subr.mxu0 0.0
    %1447 = vmatpush1.msra.mxu0 0.0
    %1448 = vmatprep.subr.mxu0 0.0
    %1449 = vmatpush1.msra.mxu0 0.0
    %1450 = vmatprep.subr.mxu0 0.0
    %1451 = vmatpush1.msra.mxu0 0.0
    %1452 = vmatprep.mubr.f32.mxu0 0.0
    %1453 = vmatmul.mubr.f32.gmra.mrb[0].mxu0 %v1382
    %v1454 = vpop.f32.mrb[0].mxu0
    %v1455 = vadd.f32 0.0, %v1454
    %v1456 = vpop.f32.mrb[0].mxu0
    %v1457 = vadd.f32 0.0, %v1456
    %1458 = vdwg.mxu0
    %1459 = vmatprep.subr.mxu0 %v621
    %1460 = vmatpush1.msra.mxu0 %v620
    %1461 = vmatprep.subr.mxu0 %v625
    %1462 = vmatpush1.msra.mxu0 %v624
    %1463 = vmatprep.subr.mxu0 %v629
    %1464 = vmatpush1.msra.mxu0 %v628
    %1465 = vmatprep.subr.mxu0 %v633
    %1466 = vmatpush1.msra.mxu0 %v632
    %1467 = vmatprep.subr.mxu0 %v637
    %1468 = vmatpush1.msra.mxu0 %v636
    %1469 = vmatprep.subr.mxu0 %v641
    %1470 = vmatpush1.msra.mxu0 %v640
    %1471 = vmatprep.subr.mxu0 %v645
    %1472 = vmatpush1.msra.mxu0 %v644
    %1473 = vmatprep.subr.mxu0 %v649
    %1474 = vmatpush1.msra.mxu0 %v648
    %1475 = vmatprep.subr.mxu0 %v653
    %1476 = vmatpush1.msra.mxu0 %v652
    %1477 = vmatprep.subr.mxu0 %v657
    %1478 = vmatpush1.msra.mxu0 %v656
    %1479 = vmatprep.subr.mxu0 %v661
    %1480 = vmatpush1.msra.mxu0 %v660
    %1481 = vmatprep.subr.mxu0 %v665
    %1482 = vmatpush1.msra.mxu0 %v664
    %1483 = vmatprep.subr.mxu0 %v669
    %1484 = vmatpush1.msra.mxu0 %v668
    %1485 = vmatprep.subr.mxu0 %v673
    %1486 = vmatpush1.msra.mxu0 %v672
    %1487 = vmatprep.subr.mxu0 %v677
    %1488 = vmatpush1.msra.mxu0 %v676
    %1489 = vmatprep.subr.mxu0 %v681
    %1490 = vmatpush1.msra.mxu0 %v680
    %1491 = vmatprep.subr.mxu0 0.0
    %1492 = vmatpush1.msra.mxu0 0.0
    %1493 = vmatprep.subr.mxu0 0.0
    %1494 = vmatpush1.msra.mxu0 0.0
    %1495 = vmatprep.subr.mxu0 0.0
    %1496 = vmatpush1.msra.mxu0 0.0
    %1497 = vmatprep.subr.mxu0 0.0
    %1498 = vmatpush1.msra.mxu0 0.0
    %1499 = vmatprep.subr.mxu0 0.0
    %1500 = vmatpush1.msra.mxu0 0.0
    %1501 = vmatprep.subr.mxu0 0.0
    %1502 = vmatpush1.msra.mxu0 0.0
    %1503 = vmatprep.subr.mxu0 0.0
    %1504 = vmatpush1.msra.mxu0 0.0
    %1505 = vmatprep.subr.mxu0 0.0
    %1506 = vmatpush1.msra.mxu0 0.0
    %1507 = vmatprep.subr.mxu0 0.0
    %1508 = vmatpush1.msra.mxu0 0.0
    %1509 = vmatprep.subr.mxu0 0.0
    %1510 = vmatpush1.msra.mxu0 0.0
    %1511 = vmatprep.subr.mxu0 0.0
    %1512 = vmatpush1.msra.mxu0 0.0
    %1513 = vmatprep.subr.mxu0 0.0
    %1514 = vmatpush1.msra.mxu0 0.0
    %1515 = vmatprep.subr.mxu0 0.0
    %1516 = vmatpush1.msra.mxu0 0.0
    %1517 = vmatprep.subr.mxu0 0.0
    %1518 = vmatpush1.msra.mxu0 0.0
    %1519 = vmatprep.subr.mxu0 0.0
    %1520 = vmatpush1.msra.mxu0 0.0
    %1521 = vmatprep.subr.mxu0 0.0
    %1522 = vmatpush1.msra.mxu0 0.0
    %1523 = vmatprep.mubr.f32.mxu0 0.0
    %1524 = vmatmul.mubr.f32.gmra.mrb[0].mxu0 %v1382
    %v1525 = vpop.f32.mrb[0].mxu0
    %v1526 = vadd.f32 0.0, %v1525
    %v1527 = vpop.f32.mrb[0].mxu0
    %v1528 = vadd.f32 0.0, %v1527
    %1529 = vdwg.mxu0
    %v1530 = vadd.f32 %v1384, %v1455
    %v1531 = vadd.f32 %v1385, %v1457
    %v1532 = vadd.f32 %v1386, %v1526
    %v1533 = vadd.f32 %v1387, %v1528
    %v1534 = vxor.u32 %v1530, 2147483648
    %v1535 = vmul.f32 %v1534, 1.442695
    %v1536 = vpow.pop %v1535
    %v1537 = vadd.f32 %v1536, 1.0
    %v1538 = vrcp.pop %v1537
    %v1539 = vmul.f32 1.0, %v1538
    %v1540 = vxor.u32 %v1531, 2147483648
    %v1541 = vmul.f32 %v1540, 1.442695
    %v1542 = vpow.pop %v1541
    %v1543 = vadd.f32 %v1542, 1.0
    %v1544 = vrcp.pop %v1543
    %v1545 = vmul.f32 1.0, %v1544
    %v1546 = vtanh.pop %v1532
    %v1547 = vxor.u32 %v1533, 2147483648
    %v1548 = vmul.f32 %v1547, 1.442695
    %v1549 = vpow.pop %v1548
    %v1550 = vadd.f32 %v1549, 1.0
    %v1551 = vrcp.pop %v1550
    %v1552 = vmul.f32 1.0, %v1551
    %v1553 = vmul.f32 %v1545, %v1380
    %v1554 = vmul.f32 %v1539, %v1546
    %v1555 = vadd.f32 %v1553, %v1554
    %v1556 = vtanh.pop %v1555
    %v1557 = vmul.f32 %v1552, %v1556
    %1558 = vst [vmem:[#allocation2 + $0x20] sm:$0xff] %v1557
    %v1559 = vld [vmem:[#allocation3 + $0xa0] sm:$0xff]
    %v1560 = vld [vmem:[#allocation3 + $0xa8] sm:$0xff]
    %v1561 = vld [vmem:[#allocation3 + $0xb0] sm:$0xff]
    %v1562 = vld [vmem:[#allocation3 + $0xb8] sm:$0xff]
    %1563 = vmatprep.subr.mxu0 %v619
    %1564 = vmatpush1.msra.mxu0 %v618
    %1565 = vmatprep.subr.mxu0 %v623
    %1566 = vmatpush1.msra.mxu0 %v622
    %1567 = vmatprep.subr.mxu0 %v627
    %1568 = vmatpush1.msra.mxu0 %v626
    %1569 = vmatprep.subr.mxu0 %v631
    %1570 = vmatpush1.msra.mxu0 %v630
    %1571 = vmatprep.subr.mxu0 %v635
    %1572 = vmatpush1.msra.mxu0 %v634
    %1573 = vmatprep.subr.mxu0 %v639
    %1574 = vmatpush1.msra.mxu0 %v638
    %1575 = vmatprep.subr.mxu0 %v643
    %1576 = vmatpush1.msra.mxu0 %v642
    %1577 = vmatprep.subr.mxu0 %v647
    %1578 = vmatpush1.msra.mxu0 %v646
    %1579 = vmatprep.subr.mxu0 %v651
    %1580 = vmatpush1.msra.mxu0 %v650
    %1581 = vmatprep.subr.mxu0 %v655
    %1582 = vmatpush1.msra.mxu0 %v654
    %1583 = vmatprep.subr.mxu0 %v659
    %1584 = vmatpush1.msra.mxu0 %v658
    %1585 = vmatprep.subr.mxu0 %v663
    %1586 = vmatpush1.msra.mxu0 %v662
    %1587 = vmatprep.subr.mxu0 %v667
    %1588 = vmatpush1.msra.mxu0 %v666
    %1589 = vmatprep.subr.mxu0 %v671
    %1590 = vmatpush1.msra.mxu0 %v670
    %1591 = vmatprep.subr.mxu0 %v675
    %1592 = vmatpush1.msra.mxu0 %v674
    %1593 = vmatprep.subr.mxu0 %v679
    %1594 = vmatpush1.msra.mxu0 %v678
    %1595 = vmatprep.subr.mxu0 0.0
    %1596 = vmatpush1.msra.mxu0 0.0
    %1597 = vmatprep.subr.mxu0 0.0
    %1598 = vmatpush1.msra.mxu0 0.0
    %1599 = vmatprep.subr.mxu0 0.0
    %1600 = vmatpush1.msra.mxu0 0.0
    %1601 = vmatprep.subr.mxu0 0.0
    %1602 = vmatpush1.msra.mxu0 0.0
    %1603 = vmatprep.subr.mxu0 0.0
    %1604 = vmatpush1.msra.mxu0 0.0
    %1605 = vmatprep.subr.mxu0 0.0
    %1606 = vmatpush1.msra.mxu0 0.0
    %1607 = vmatprep.subr.mxu0 0.0
    %1608 = vmatpush1.msra.mxu0 0.0
    %1609 = vmatprep.subr.mxu0 0.0
    %1610 = vmatpush1.msra.mxu0 0.0
    %1611 = vmatprep.subr.mxu0 0.0
    %1612 = vmatpush1.msra.mxu0 0.0
    %1613 = vmatprep.subr.mxu0 0.0
    %1614 = vmatpush1.msra.mxu0 0.0
    %1615 = vmatprep.subr.mxu0 0.0
    %1616 = vmatpush1.msra.mxu0 0.0
    %1617 = vmatprep.subr.mxu0 0.0
    %1618 = vmatpush1.msra.mxu0 0.0
    %1619 = vmatprep.subr.mxu0 0.0
    %1620 = vmatpush1.msra.mxu0 0.0
    %1621 = vmatprep.subr.mxu0 0.0
    %1622 = vmatpush1.msra.mxu0 0.0
    %1623 = vmatprep.subr.mxu0 0.0
    %1624 = vmatpush1.msra.mxu0 0.0
    %1625 = vmatprep.subr.mxu0 0.0
    %1626 = vmatpush1.msra.mxu0 0.0
    %1627 = vmatprep.mubr.f32.mxu0 0.0
    %1628 = vmatmul.mubr.f32.gmra.mrb[0].mxu0 %v1557
    %v1629 = vpop.f32.mrb[0].mxu0
    %v1630 = vadd.f32 0.0, %v1629
    %v1631 = vpop.f32.mrb[0].mxu0
    %v1632 = vadd.f32 0.0, %v1631
    %1633 = vdwg.mxu0
    %1634 = vmatprep.subr.mxu0 %v621
    %1635 = vmatpush1.msra.mxu0 %v620
    %1636 = vmatprep.subr.mxu0 %v625
    %1637 = vmatpush1.msra.mxu0 %v624
    %1638 = vmatprep.subr.mxu0 %v629
    %1639 = vmatpush1.msra.mxu0 %v628
    %1640 = vmatprep.subr.mxu0 %v633
    %1641 = vmatpush1.msra.mxu0 %v632
    %1642 = vmatprep.subr.mxu0 %v637
    %1643 = vmatpush1.msra.mxu0 %v636
    %1644 = vmatprep.subr.mxu0 %v641
    %1645 = vmatpush1.msra.mxu0 %v640
    %1646 = vmatprep.subr.mxu0 %v645
    %1647 = vmatpush1.msra.mxu0 %v644
    %1648 = vmatprep.subr.mxu0 %v649
    %1649 = vmatpush1.msra.mxu0 %v648
    %1650 = vmatprep.subr.mxu0 %v653
    %1651 = vmatpush1.msra.mxu0 %v652
    %1652 = vmatprep.subr.mxu0 %v657
    %1653 = vmatpush1.msra.mxu0 %v656
    %1654 = vmatprep.subr.mxu0 %v661
    %1655 = vmatpush1.msra.mxu0 %v660
    %1656 = vmatprep.subr.mxu0 %v665
    %1657 = vmatpush1.msra.mxu0 %v664
    %1658 = vmatprep.subr.mxu0 %v669
    %1659 = vmatpush1.msra.mxu0 %v668
    %1660 = vmatprep.subr.mxu0 %v673
    %1661 = vmatpush1.msra.mxu0 %v672
    %1662 = vmatprep.subr.mxu0 %v677
    %1663 = vmatpush1.msra.mxu0 %v676
    %1664 = vmatprep.subr.mxu0 %v681
    %1665 = vmatpush1.msra.mxu0 %v680
    %1666 = vmatprep.subr.mxu0 0.0
    %1667 = vmatpush1.msra.mxu0 0.0
    %1668 = vmatprep.subr.mxu0 0.0
    %1669 = vmatpush1.msra.mxu0 0.0
    %1670 = vmatprep.subr.mxu0 0.0
    %1671 = vmatpush1.msra.mxu0 0.0
    %1672 = vmatprep.subr.mxu0 0.0
    %1673 = vmatpush1.msra.mxu0 0.0
    %1674 = vmatprep.subr.mxu0 0.0
    %1675 = vmatpush1.msra.mxu0 0.0
    %1676 = vmatprep.subr.mxu0 0.0
    %1677 = vmatpush1.msra.mxu0 0.0
    %1678 = vmatprep.subr.mxu0 0.0
    %1679 = vmatpush1.msra.mxu0 0.0
    %1680 = vmatprep.subr.mxu0 0.0
    %1681 = vmatpush1.msra.mxu0 0.0
    %1682 = vmatprep.subr.mxu0 0.0
    %1683 = vmatpush1.msra.mxu0 0.0
    %1684 = vmatprep.subr.mxu0 0.0
    %1685 = vmatpush1.msra.mxu0 0.0
    %1686 = vmatprep.subr.mxu0 0.0
    %1687 = vmatpush1.msra.mxu0 0.0
    %1688 = vmatprep.subr.mxu0 0.0
    %1689 = vmatpush1.msra.mxu0 0.0
    %1690 = vmatprep.subr.mxu0 0.0
    %1691 = vmatpush1.msra.mxu0 0.0
    %1692 = vmatprep.subr.mxu0 0.0
    %1693 = vmatpush1.msra.mxu0 0.0
    %1694 = vmatprep.subr.mxu0 0.0
    %1695 = vmatpush1.msra.mxu0 0.0
    %1696 = vmatprep.subr.mxu0 0.0
    %1697 = vmatpush1.msra.mxu0 0.0
    %1698 = vmatprep.mubr.f32.mxu0 0.0
    %1699 = vmatmul.mubr.f32.gmra.mrb[0].mxu0 %v1557
    %v1700 = vpop.f32.mrb[0].mxu0
    %v1701 = vadd.f32 0.0, %v1700
    %v1702 = vpop.f32.mrb[0].mxu0
    %v1703 = vadd.f32 0.0, %v1702
    %1704 = vdwg.mxu0
    %v1705 = vadd.f32 %v1559, %v1630
    %v1706 = vadd.f32 %v1560, %v1632
    %v1707 = vadd.f32 %v1561, %v1701
    %v1708 = vadd.f32 %v1562, %v1703
    %v1709 = vxor.u32 %v1705, 2147483648
    %v1710 = vmul.f32 %v1709, 1.442695
    %v1711 = vpow.pop %v1710
    %v1712 = vadd.f32 %v1711, 1.0
    %v1713 = vrcp.pop %v1712
    %v1714 = vmul.f32 1.0, %v1713
    %v1715 = vxor.u32 %v1706, 2147483648
    %v1716 = vmul.f32 %v1715, 1.442695
    %v1717 = vpow.pop %v1716
    %v1718 = vadd.f32 %v1717, 1.0
    %v1719 = vrcp.pop %v1718
    %v1720 = vmul.f32 1.0, %v1719
    %v1721 = vtanh.pop %v1707
    %v1722 = vxor.u32 %v1708, 2147483648
    %v1723 = vmul.f32 %v1722, 1.442695
    %v1724 = vpow.pop %v1723
    %v1725 = vadd.f32 %v1724, 1.0
    %v1726 = vrcp.pop %v1725
    %v1727 = vmul.f32 1.0, %v1726
    %v1728 = vmul.f32 %v1720, %v1555
    %v1729 = vmul.f32 %v1714, %v1721
    %v1730 = vadd.f32 %v1728, %v1729
    %v1731 = vtanh.pop %v1730
    %v1732 = vmul.f32 %v1727, %v1731
    %1733 = vst [vmem:[#allocation2 + $0x28] sm:$0xff] %v1732
    %v1734 = vld [vmem:[#allocation3 + $0xc0] sm:$0xff]
    %v1735 = vld [vmem:[#allocation3 + $0xc8] sm:$0xff]
    %v1736 = vld [vmem:[#allocation3 + $0xd0] sm:$0xff]
    %v1737 = vld [vmem:[#allocation3 + $0xd8] sm:$0xff]
    %1738 = vmatprep.subr.mxu0 %v619
    %1739 = vmatpush1.msra.mxu0 %v618
    %1740 = vmatprep.subr.mxu0 %v623
    %1741 = vmatpush1.msra.mxu0 %v622
    %1742 = vmatprep.subr.mxu0 %v627
    %1743 = vmatpush1.msra.mxu0 %v626
    %1744 = vmatprep.subr.mxu0 %v631
    %1745 = vmatpush1.msra.mxu0 %v630
    %1746 = vmatprep.subr.mxu0 %v635
    %1747 = vmatpush1.msra.mxu0 %v634
    %1748 = vmatprep.subr.mxu0 %v639
    %1749 = vmatpush1.msra.mxu0 %v638
    %1750 = vmatprep.subr.mxu0 %v643
    %1751 = vmatpush1.msra.mxu0 %v642
    %1752 = vmatprep.subr.mxu0 %v647
    %1753 = vmatpush1.msra.mxu0 %v646
    %1754 = vmatprep.subr.mxu0 %v651
    %1755 = vmatpush1.msra.mxu0 %v650
    %1756 = vmatprep.subr.mxu0 %v655
    %1757 = vmatpush1.msra.mxu0 %v654
    %1758 = vmatprep.subr.mxu0 %v659
    %1759 = vmatpush1.msra.mxu0 %v658
    %1760 = vmatprep.subr.mxu0 %v663
    %1761 = vmatpush1.msra.mxu0 %v662
    %1762 = vmatprep.subr.mxu0 %v667
    %1763 = vmatpush1.msra.mxu0 %v666
    %1764 = vmatprep.subr.mxu0 %v671
    %1765 = vmatpush1.msra.mxu0 %v670
    %1766 = vmatprep.subr.mxu0 %v675
    %1767 = vmatpush1.msra.mxu0 %v674
    %1768 = vmatprep.subr.mxu0 %v679
    %1769 = vmatpush1.msra.mxu0 %v678
    %1770 = vmatprep.subr.mxu0 0.0
    %1771 = vmatpush1.msra.mxu0 0.0
    %1772 = vmatprep.subr.mxu0 0.0
    %1773 = vmatpush1.msra.mxu0 0.0
    %1774 = vmatprep.subr.mxu0 0.0
    %1775 = vmatpush1.msra.mxu0 0.0
    %1776 = vmatprep.subr.mxu0 0.0
    %1777 = vmatpush1.msra.mxu0 0.0
    %1778 = vmatprep.subr.mxu0 0.0
    %1779 = vmatpush1.msra.mxu0 0.0
    %1780 = vmatprep.subr.mxu0 0.0
    %1781 = vmatpush1.msra.mxu0 0.0
    %1782 = vmatprep.subr.mxu0 0.0
    %1783 = vmatpush1.msra.mxu0 0.0
    %1784 = vmatprep.subr.mxu0 0.0
    %1785 = vmatpush1.msra.mxu0 0.0
    %1786 = vmatprep.subr.mxu0 0.0
    %1787 = vmatpush1.msra.mxu0 0.0
    %1788 = vmatprep.subr.mxu0 0.0
    %1789 = vmatpush1.msra.mxu0 0.0
    %1790 = vmatprep.subr.mxu0 0.0
    %1791 = vmatpush1.msra.mxu0 0.0
    %1792 = vmatprep.subr.mxu0 0.0
    %1793 = vmatpush1.msra.mxu0 0.0
    %1794 = vmatprep.subr.mxu0 0.0
    %1795 = vmatpush1.msra.mxu0 0.0
    %1796 = vmatprep.subr.mxu0 0.0
    %1797 = vmatpush1.msra.mxu0 0.0
    %1798 = vmatprep.subr.mxu0 0.0
    %1799 = vmatpush1.msra.mxu0 0.0
    %1800 = vmatprep.subr.mxu0 0.0
    %1801 = vmatpush1.msra.mxu0 0.0
    %1802 = vmatprep.mubr.f32.mxu0 0.0
    %1803 = vmatmul.mubr.f32.gmra.mrb[0].mxu0 %v1732
    %v1804 = vpop.f32.mrb[0].mxu0
    %v1805 = vadd.f32 0.0, %v1804
    %v1806 = vpop.f32.mrb[0].mxu0
    %v1807 = vadd.f32 0.0, %v1806
    %1808 = vdwg.mxu0
    %1809 = vmatprep.subr.mxu0 %v621
    %1810 = vmatpush1.msra.mxu0 %v620
    %1811 = vmatprep.subr.mxu0 %v625
    %1812 = vmatpush1.msra.mxu0 %v624
    %1813 = vmatprep.subr.mxu0 %v629
    %1814 = vmatpush1.msra.mxu0 %v628
    %1815 = vmatprep.subr.mxu0 %v633
    %1816 = vmatpush1.msra.mxu0 %v632
    %1817 = vmatprep.subr.mxu0 %v637
    %1818 = vmatpush1.msra.mxu0 %v636
    %1819 = vmatprep.subr.mxu0 %v641
    %1820 = vmatpush1.msra.mxu0 %v640
    %1821 = vmatprep.subr.mxu0 %v645
    %1822 = vmatpush1.msra.mxu0 %v644
    %1823 = vmatprep.subr.mxu0 %v649
    %1824 = vmatpush1.msra.mxu0 %v648
    %1825 = vmatprep.subr.mxu0 %v653
    %1826 = vmatpush1.msra.mxu0 %v652
    %1827 = vmatprep.subr.mxu0 %v657
    %1828 = vmatpush1.msra.mxu0 %v656
    %1829 = vmatprep.subr.mxu0 %v661
    %1830 = vmatpush1.msra.mxu0 %v660
    %1831 = vmatprep.subr.mxu0 %v665
    %1832 = vmatpush1.msra.mxu0 %v664
    %1833 = vmatprep.subr.mxu0 %v669
    %1834 = vmatpush1.msra.mxu0 %v668
    %1835 = vmatprep.subr.mxu0 %v673
    %1836 = vmatpush1.msra.mxu0 %v672
    %1837 = vmatprep.subr.mxu0 %v677
    %1838 = vmatpush1.msra.mxu0 %v676
    %1839 = vmatprep.subr.mxu0 %v681
    %1840 = vmatpush1.msra.mxu0 %v680
    %1841 = vmatprep.subr.mxu0 0.0
    %1842 = vmatpush1.msra.mxu0 0.0
    %1843 = vmatprep.subr.mxu0 0.0
    %1844 = vmatpush1.msra.mxu0 0.0
    %1845 = vmatprep.subr.mxu0 0.0
    %1846 = vmatpush1.msra.mxu0 0.0
    %1847 = vmatprep.subr.mxu0 0.0
    %1848 = vmatpush1.msra.mxu0 0.0
    %1849 = vmatprep.subr.mxu0 0.0
    %1850 = vmatpush1.msra.mxu0 0.0
    %1851 = vmatprep.subr.mxu0 0.0
    %1852 = vmatpush1.msra.mxu0 0.0
    %1853 = vmatprep.subr.mxu0 0.0
    %1854 = vmatpush1.msra.mxu0 0.0
    %1855 = vmatprep.subr.mxu0 0.0
    %1856 = vmatpush1.msra.mxu0 0.0
    %1857 = vmatprep.subr.mxu0 0.0
    %1858 = vmatpush1.msra.mxu0 0.0
    %1859 = vmatprep.subr.mxu0 0.0
    %1860 = vmatpush1.msra.mxu0 0.0
    %1861 = vmatprep.subr.mxu0 0.0
    %1862 = vmatpush1.msra.mxu0 0.0
    %1863 = vmatprep.subr.mxu0 0.0
    %1864 = vmatpush1.msra.mxu0 0.0
    %1865 = vmatprep.subr.mxu0 0.0
    %1866 = vmatpush1.msra.mxu0 0.0
    %1867 = vmatprep.subr.mxu0 0.0
    %1868 = vmatpush1.msra.mxu0 0.0
    %1869 = vmatprep.subr.mxu0 0.0
    %1870 = vmatpush1.msra.mxu0 0.0
    %1871 = vmatprep.subr.mxu0 0.0
    %1872 = vmatpush1.msra.mxu0 0.0
    %1873 = vmatprep.mubr.f32.mxu0 0.0
    %1874 = vmatmul.mubr.f32.gmra.mrb[0].mxu0 %v1732
    %v1875 = vpop.f32.mrb[0].mxu0
    %v1876 = vadd.f32 0.0, %v1875
    %v1877 = vpop.f32.mrb[0].mxu0
    %v1878 = vadd.f32 0.0, %v1877
    %1879 = vdwg.mxu0
    %v1880 = vadd.f32 %v1734, %v1805
    %v1881 = vadd.f32 %v1735, %v1807
    %v1882 = vadd.f32 %v1736, %v1876
    %v1883 = vadd.f32 %v1737, %v1878
    %v1884 = vxor.u32 %v1880, 2147483648
    %v1885 = vmul.f32 %v1884, 1.442695
    %v1886 = vpow.pop %v1885
    %v1887 = vadd.f32 %v1886, 1.0
    %v1888 = vrcp.pop %v1887
    %v1889 = vmul.f32 1.0, %v1888
    %v1890 = vxor.u32 %v1881, 2147483648
    %v1891 = vmul.f32 %v1890, 1.442695
    %v1892 = vpow.pop %v1891
    %v1893 = vadd.f32 %v1892, 1.0
    %v1894 = vrcp.pop %v1893
    %v1895 = vmul.f32 1.0, %v1894
    %v1896 = vtanh.pop %v1882
    %v1897 = vxor.u32 %v1883, 2147483648
    %v1898 = vmul.f32 %v1897, 1.442695
    %v1899 = vpow.pop %v1898
    %v1900 = vadd.f32 %v1899, 1.0
    %v1901 = vrcp.pop %v1900
    %v1902 = vmul.f32 1.0, %v1901
    %v1903 = vmul.f32 %v1895, %v1730
    %v1904 = vmul.f32 %v1889, %v1896
    %v1905 = vadd.f32 %v1903, %v1904
    %v1906 = vtanh.pop %v1905
    %v1907 = vmul.f32 %v1902, %v1906
    %1908 = vst [vmem:[#allocation2 + $0x30] sm:$0xff] %v1907
    %v1909 = vld [vmem:[#allocation3 + $0xe0] sm:$0xff]
    %v1910 = vld [vmem:[#allocation3 + $0xe8] sm:$0xff]
    %v1911 = vld [vmem:[#allocation3 + $0xf0] sm:$0xff]
    %v1912 = vld [vmem:[#allocation3 + $0xf8] sm:$0xff]
    %1913 = vmatprep.subr.mxu0 %v619
    %1914 = vmatpush1.msra.mxu0 %v618
    %1915 = vmatprep.subr.mxu0 %v623
    %1916 = vmatpush1.msra.mxu0 %v622
    %1917 = vmatprep.subr.mxu0 %v627
    %1918 = vmatpush1.msra.mxu0 %v626
    %1919 = vmatprep.subr.mxu0 %v631
    %1920 = vmatpush1.msra.mxu0 %v630
    %1921 = vmatprep.subr.mxu0 %v635
    %1922 = vmatpush1.msra.mxu0 %v634
    %1923 = vmatprep.subr.mxu0 %v639
    %1924 = vmatpush1.msra.mxu0 %v638
    %1925 = vmatprep.subr.mxu0 %v643
    %1926 = vmatpush1.msra.mxu0 %v642
    %1927 = vmatprep.subr.mxu0 %v647
    %1928 = vmatpush1.msra.mxu0 %v646
    %1929 = vmatprep.subr.mxu0 %v651
    %1930 = vmatpush1.msra.mxu0 %v650
    %1931 = vmatprep.subr.mxu0 %v655
    %1932 = vmatpush1.msra.mxu0 %v654
    %1933 = vmatprep.subr.mxu0 %v659
    %1934 = vmatpush1.msra.mxu0 %v658
    %1935 = vmatprep.subr.mxu0 %v663
    %1936 = vmatpush1.msra.mxu0 %v662
    %1937 = vmatprep.subr.mxu0 %v667
    %1938 = vmatpush1.msra.mxu0 %v666
    %1939 = vmatprep.subr.mxu0 %v671
    %1940 = vmatpush1.msra.mxu0 %v670
    %1941 = vmatprep.subr.mxu0 %v675
    %1942 = vmatpush1.msra.mxu0 %v674
    %1943 = vmatprep.subr.mxu0 %v679
    %1944 = vmatpush1.msra.mxu0 %v678
    %1945 = vmatprep.subr.mxu0 0.0
    %1946 = vmatpush1.msra.mxu0 0.0
    %1947 = vmatprep.subr.mxu0 0.0
    %1948 = vmatpush1.msra.mxu0 0.0
    %1949 = vmatprep.subr.mxu0 0.0
    %1950 = vmatpush1.msra.mxu0 0.0
    %1951 = vmatprep.subr.mxu0 0.0
    %1952 = vmatpush1.msra.mxu0 0.0
    %1953 = vmatprep.subr.mxu0 0.0
    %1954 = vmatpush1.msra.mxu0 0.0
    %1955 = vmatprep.subr.mxu0 0.0
    %1956 = vmatpush1.msra.mxu0 0.0
    %1957 = vmatprep.subr.mxu0 0.0
    %1958 = vmatpush1.msra.mxu0 0.0
    %1959 = vmatprep.subr.mxu0 0.0
    %1960 = vmatpush1.msra.mxu0 0.0
    %1961 = vmatprep.subr.mxu0 0.0
    %1962 = vmatpush1.msra.mxu0 0.0
    %1963 = vmatprep.subr.mxu0 0.0
    %1964 = vmatpush1.msra.mxu0 0.0
    %1965 = vmatprep.subr.mxu0 0.0
    %1966 = vmatpush1.msra.mxu0 0.0
    %1967 = vmatprep.subr.mxu0 0.0
    %1968 = vmatpush1.msra.mxu0 0.0
    %1969 = vmatprep.subr.mxu0 0.0
    %1970 = vmatpush1.msra.mxu0 0.0
    %1971 = vmatprep.subr.mxu0 0.0
    %1972 = vmatpush1.msra.mxu0 0.0
    %1973 = vmatprep.subr.mxu0 0.0
    %1974 = vmatpush1.msra.mxu0 0.0
    %1975 = vmatprep.subr.mxu0 0.0
    %1976 = vmatpush1.msra.mxu0 0.0
    %1977 = vmatprep.mubr.f32.mxu0 0.0
    %1978 = vmatmul.mubr.f32.gmra.mrb[0].mxu0 %v1907
    %v1979 = vpop.f32.mrb[0].mxu0
    %v1980 = vadd.f32 0.0, %v1979
    %v1981 = vpop.f32.mrb[0].mxu0
    %v1982 = vadd.f32 0.0, %v1981
    %1983 = vdwg.mxu0
    %1984 = vmatprep.subr.mxu0 %v621
    %1985 = vmatpush1.msra.mxu0 %v620
    %1986 = vmatprep.subr.mxu0 %v625
    %1987 = vmatpush1.msra.mxu0 %v624
    %1988 = vmatprep.subr.mxu0 %v629
    %1989 = vmatpush1.msra.mxu0 %v628
    %1990 = vmatprep.subr.mxu0 %v633
    %1991 = vmatpush1.msra.mxu0 %v632
    %1992 = vmatprep.subr.mxu0 %v637
    %1993 = vmatpush1.msra.mxu0 %v636
    %1994 = vmatprep.subr.mxu0 %v641
    %1995 = vmatpush1.msra.mxu0 %v640
    %1996 = vmatprep.subr.mxu0 %v645
    %1997 = vmatpush1.msra.mxu0 %v644
    %1998 = vmatprep.subr.mxu0 %v649
    %1999 = vmatpush1.msra.mxu0 %v648
    %2000 = vmatprep.subr.mxu0 %v653
    %2001 = vmatpush1.msra.mxu0 %v652
    %2002 = vmatprep.subr.mxu0 %v657
    %2003 = vmatpush1.msra.mxu0 %v656
    %2004 = vmatprep.subr.mxu0 %v661
    %2005 = vmatpush1.msra.mxu0 %v660
    %2006 = vmatprep.subr.mxu0 %v665
    %2007 = vmatpush1.msra.mxu0 %v664
    %2008 = vmatprep.subr.mxu0 %v669
    %2009 = vmatpush1.msra.mxu0 %v668
    %2010 = vmatprep.subr.mxu0 %v673
    %2011 = vmatpush1.msra.mxu0 %v672
    %2012 = vmatprep.subr.mxu0 %v677
    %2013 = vmatpush1.msra.mxu0 %v676
    %2014 = vmatprep.subr.mxu0 %v681
    %2015 = vmatpush1.msra.mxu0 %v680
    %2016 = vmatprep.subr.mxu0 0.0
    %2017 = vmatpush1.msra.mxu0 0.0
    %2018 = vmatprep.subr.mxu0 0.0
    %2019 = vmatpush1.msra.mxu0 0.0
    %2020 = vmatprep.subr.mxu0 0.0
    %2021 = vmatpush1.msra.mxu0 0.0
    %2022 = vmatprep.subr.mxu0 0.0
    %2023 = vmatpush1.msra.mxu0 0.0
    %2024 = vmatprep.subr.mxu0 0.0
    %2025 = vmatpush1.msra.mxu0 0.0
    %2026 = vmatprep.subr.mxu0 0.0
    %2027 = vmatpush1.msra.mxu0 0.0
    %2028 = vmatprep.subr.mxu0 0.0
    %2029 = vmatpush1.msra.mxu0 0.0
    %2030 = vmatprep.subr.mxu0 0.0
    %2031 = vmatpush1.msra.mxu0 0.0
    %2032 = vmatprep.subr.mxu0 0.0
    %2033 = vmatpush1.msra.mxu0 0.0
    %2034 = vmatprep.subr.mxu0 0.0
    %2035 = vmatpush1.msra.mxu0 0.0
    %2036 = vmatprep.subr.mxu0 0.0
    %2037 = vmatpush1.msra.mxu0 0.0
    %2038 = vmatprep.subr.mxu0 0.0
    %2039 = vmatpush1.msra.mxu0 0.0
    %2040 = vmatprep.subr.mxu0 0.0
    %2041 = vmatpush1.msra.mxu0 0.0
    %2042 = vmatprep.subr.mxu0 0.0
    %2043 = vmatpush1.msra.mxu0 0.0
    %2044 = vmatprep.subr.mxu0 0.0
    %2045 = vmatpush1.msra.mxu0 0.0
    %2046 = vmatprep.subr.mxu0 0.0
    %2047 = vmatpush1.msra.mxu0 0.0
    %2048 = vmatprep.mubr.f32.mxu0 0.0
    %2049 = vmatmul.mubr.f32.gmra.mrb[0].mxu0 %v1907
    %v2050 = vpop.f32.mrb[0].mxu0
    %v2051 = vadd.f32 0.0, %v2050
    %v2052 = vpop.f32.mrb[0].mxu0
    %v2053 = vadd.f32 0.0, %v2052
    %2054 = vdwg.mxu0
    %v2055 = vadd.f32 %v1909, %v1980
    %v2056 = vadd.f32 %v1910, %v1982
    %v2057 = vadd.f32 %v1911, %v2051
    %v2058 = vadd.f32 %v1912, %v2053
    %v2059 = vxor.u32 %v2055, 2147483648
    %v2060 = vmul.f32 %v2059, 1.442695
    %v2061 = vpow.pop %v2060
    %v2062 = vadd.f32 %v2061, 1.0
    %v2063 = vrcp.pop %v2062
    %v2064 = vmul.f32 1.0, %v2063
    %v2065 = vxor.u32 %v2056, 2147483648
    %v2066 = vmul.f32 %v2065, 1.442695
    %v2067 = vpow.pop %v2066
    %v2068 = vadd.f32 %v2067, 1.0
    %v2069 = vrcp.pop %v2068
    %v2070 = vmul.f32 1.0, %v2069
    %v2071 = vtanh.pop %v2057
    %v2072 = vxor.u32 %v2058, 2147483648
    %v2073 = vmul.f32 %v2072, 1.442695
    %v2074 = vpow.pop %v2073
    %v2075 = vadd.f32 %v2074, 1.0
    %v2076 = vrcp.pop %v2075
    %v2077 = vmul.f32 1.0, %v2076
    %v2078 = vmul.f32 %v2070, %v1905
    %v2079 = vmul.f32 %v2064, %v2071
    %v2080 = vadd.f32 %v2078, %v2079
    %v2081 = vtanh.pop %v2080
    %v2082 = vmul.f32 %v2077, %v2081
    %2083 = vst [vmem:[#allocation2 + $0x38] sm:$0xff] %v2082
    %2084 = vst [vmem:[#allocation16] sm:$0xff] %v2082
    %2085 = vst [vmem:[#allocation18] sm:$0xff] %v2080
    %v2086 = vld [vmem:[#allocation2] sm:$0xff]
    %v2087 = vld [vmem:[#allocation2 + $0x8] sm:$0xff]
    %v2088 = vld [vmem:[#allocation2 + $0x10] sm:$0xff]
    %v2089 = vld [vmem:[#allocation2 + $0x18] sm:$0xff]
    %v2090 = vld [vmem:[#allocation2 + $0x20] sm:$0xff]
    %v2091 = vld [vmem:[#allocation2 + $0x28] sm:$0xff]
    %v2092 = vld [vmem:[#allocation2 + $0x30] sm:$0xff]
    %v2093 = vld [vmem:[#allocation2 + $0x38] sm:$0xff]
    %s2094 = scalar_lea.vmem [#allocation9], 512
    %v2095 = vld [vmem:[%s2094] sm:$0xff]
    %v2096 = vld [vmem:[%s2094 + $0x8] sm:$0xff]
    %v2097 = vld [vmem:[%s2094 + $0x10] sm:$0xff]
    %v2098 = vld [vmem:[%s2094 + $0x18] sm:$0xff]
    %v2099 = vld [vmem:[%s2094 + $0x20] sm:$0xff]
    %v2100 = vld [vmem:[%s2094 + $0x28] sm:$0xff]
    %v2101 = vld [vmem:[%s2094 + $0x30] sm:$0xff]
    %v2102 = vld [vmem:[%s2094 + $0x38] sm:$0xff]
    %v2103 = vld [vmem:[%s2094 + $0x40] sm:$0xff]
    %v2104 = vld [vmem:[%s2094 + $0x48] sm:$0xff]
    %v2105 = vld [vmem:[%s2094 + $0x50] sm:$0xff]
    %v2106 = vld [vmem:[%s2094 + $0x58] sm:$0xff]
    %v2107 = vld [vmem:[%s2094 + $0x60] sm:$0xff]
    %v2108 = vld [vmem:[%s2094 + $0x68] sm:$0xff]
    %v2109 = vld [vmem:[%s2094 + $0x70] sm:$0xff]
    %v2110 = vld [vmem:[%s2094 + $0x78] sm:$0xff]
    %v2111 = vld [vmem:[%s2094 + $0x80] sm:$0xff]
    %v2112 = vld [vmem:[%s2094 + $0x88] sm:$0xff]
    %v2113 = vld [vmem:[%s2094 + $0x90] sm:$0xff]
    %v2114 = vld [vmem:[%s2094 + $0x98] sm:$0xff]
    %v2115 = vld [vmem:[%s2094 + $0xa0] sm:$0xff]
    %v2116 = vld [vmem:[%s2094 + $0xa8] sm:$0xff]
    %v2117 = vld [vmem:[%s2094 + $0xb0] sm:$0xff]
    %v2118 = vld [vmem:[%s2094 + $0xb8] sm:$0xff]
    %v2119 = vld [vmem:[%s2094 + $0xc0] sm:$0xff]
    %v2120 = vld [vmem:[%s2094 + $0xc8] sm:$0xff]
    %v2121 = vld [vmem:[%s2094 + $0xd0] sm:$0xff]
    %v2122 = vld [vmem:[%s2094 + $0xd8] sm:$0xff]
    %v2123 = vld [vmem:[%s2094 + $0xe0] sm:$0xff]
    %v2124 = vld [vmem:[%s2094 + $0xe8] sm:$0xff]
    %v2125 = vld [vmem:[%s2094 + $0xf0] sm:$0xff]
    %v2126 = vld [vmem:[%s2094 + $0xf8] sm:$0xff]
    %v2127 = vld [vmem:[%s2094 + $0x100] sm:$0xff]
    %v2128 = vld [vmem:[%s2094 + $0x108] sm:$0xff]
    %v2129 = vld [vmem:[%s2094 + $0x110] sm:$0xff]
    %v2130 = vld [vmem:[%s2094 + $0x118] sm:$0xff]
    %v2131 = vld [vmem:[%s2094 + $0x120] sm:$0xff]
    %v2132 = vld [vmem:[%s2094 + $0x128] sm:$0xff]
    %v2133 = vld [vmem:[%s2094 + $0x130] sm:$0xff]
    %v2134 = vld [vmem:[%s2094 + $0x138] sm:$0xff]
    %v2135 = vld [vmem:[%s2094 + $0x140] sm:$0xff]
    %v2136 = vld [vmem:[%s2094 + $0x148] sm:$0xff]
    %v2137 = vld [vmem:[%s2094 + $0x150] sm:$0xff]
    %v2138 = vld [vmem:[%s2094 + $0x158] sm:$0xff]
    %v2139 = vld [vmem:[%s2094 + $0x160] sm:$0xff]
    %v2140 = vld [vmem:[%s2094 + $0x168] sm:$0xff]
    %v2141 = vld [vmem:[%s2094 + $0x170] sm:$0xff]
    %v2142 = vld [vmem:[%s2094 + $0x178] sm:$0xff]
    %v2143 = vld [vmem:[%s2094 + $0x180] sm:$0xff]
    %v2144 = vld [vmem:[%s2094 + $0x188] sm:$0xff]
    %v2145 = vld [vmem:[%s2094 + $0x190] sm:$0xff]
    %v2146 = vld [vmem:[%s2094 + $0x198] sm:$0xff]
    %v2147 = vld [vmem:[%s2094 + $0x1a0] sm:$0xff]
    %v2148 = vld [vmem:[%s2094 + $0x1a8] sm:$0xff]
    %v2149 = vld [vmem:[%s2094 + $0x1b0] sm:$0xff]
    %v2150 = vld [vmem:[%s2094 + $0x1b8] sm:$0xff]
    %v2151 = vld [vmem:[%s2094 + $0x1c0] sm:$0xff]
    %v2152 = vld [vmem:[%s2094 + $0x1c8] sm:$0xff]
    %v2153 = vld [vmem:[%s2094 + $0x1d0] sm:$0xff]
    %v2154 = vld [vmem:[%s2094 + $0x1d8] sm:$0xff]
    %v2155 = vld [vmem:[%s2094 + $0x1e0] sm:$0xff]
    %v2156 = vld [vmem:[%s2094 + $0x1e8] sm:$0xff]
    %v2157 = vld [vmem:[%s2094 + $0x1f0] sm:$0xff]
    %v2158 = vld [vmem:[%s2094 + $0x1f8] sm:$0xff]
    %s2159 = scalar_lea.vmem [#allocation12], 4
    %v2160 = vld [vmem:[%s2159] sm:$0xf]
    %v2162 = vlaneseq
    %v2163 = vshrl.u32 %v2162, 7
    %v2164 = vsub.s32 0, %v2163
    %v2165 = vrot.slane %v2160, %v2164
    %v2166 = vlaneseq
    %v2167 = vshrl.u32 %v2166, 7
    %v2168 = vsub.s32 1, %v2167
    %v2169 = vrot.slane %v2160, %v2168
    %v2170 = vlaneseq
    %v2171 = vshrl.u32 %v2170, 7
    %v2172 = vsub.s32 2, %v2171
    %v2173 = vrot.slane %v2160, %v2172
    %v2174 = vlaneseq
    %v2175 = vshrl.u32 %v2174, 7
    %v2176 = vsub.s32 3, %v2175
    %v2177 = vrot.slane %v2160, %v2176
    %2182 = vmatprep.subr.mxu0 %v2096
    %2183 = vmatpush1.msra.mxu0 %v2095
    %2184 = vmatprep.subr.mxu0 %v2100
    %2185 = vmatpush1.msra.mxu0 %v2099
    %2186 = vmatprep.subr.mxu0 %v2104
    %2187 = vmatpush1.msra.mxu0 %v2103
    %2188 = vmatprep.subr.mxu0 %v2108
    %2189 = vmatpush1.msra.mxu0 %v2107
    %2190 = vmatprep.subr.mxu0 %v2112
    %2191 = vmatpush1.msra.mxu0 %v2111
    %2192 = vmatprep.subr.mxu0 %v2116
    %2193 = vmatpush1.msra.mxu0 %v2115
    %2194 = vmatprep.subr.mxu0 %v2120
    %2195 = vmatpush1.msra.mxu0 %v2119
    %2196 = vmatprep.subr.mxu0 %v2124
    %2197 = vmatpush1.msra.mxu0 %v2123
    %2198 = vmatprep.subr.mxu0 %v2128
    %2199 = vmatpush1.msra.mxu0 %v2127
    %2200 = vmatprep.subr.mxu0 %v2132
    %2201 = vmatpush1.msra.mxu0 %v2131
    %2202 = vmatprep.subr.mxu0 %v2136
    %2203 = vmatpush1.msra.mxu0 %v2135
    %2204 = vmatprep.subr.mxu0 %v2140
    %2205 = vmatpush1.msra.mxu0 %v2139
    %2206 = vmatprep.subr.mxu0 %v2144
    %2207 = vmatpush1.msra.mxu0 %v2143
    %2208 = vmatprep.subr.mxu0 %v2148
    %2209 = vmatpush1.msra.mxu0 %v2147
    %2210 = vmatprep.subr.mxu0 %v2152
    %2211 = vmatpush1.msra.mxu0 %v2151
    %2212 = vmatprep.subr.mxu0 %v2156
    %2213 = vmatpush1.msra.mxu0 %v2155
    %2214 = vmatprep.subr.mxu0 0.0
    %2215 = vmatpush1.msra.mxu0 0.0
    %2216 = vmatprep.subr.mxu0 0.0
    %2217 = vmatpush1.msra.mxu0 0.0
    %2218 = vmatprep.subr.mxu0 0.0
    %2219 = vmatpush1.msra.mxu0 0.0
    %2220 = vmatprep.subr.mxu0 0.0
    %2221 = vmatpush1.msra.mxu0 0.0
    %2222 = vmatprep.subr.mxu0 0.0
    %2223 = vmatpush1.msra.mxu0 0.0
    %2224 = vmatprep.subr.mxu0 0.0
    %2225 = vmatpush1.msra.mxu0 0.0
    %2226 = vmatprep.subr.mxu0 0.0
    %2227 = vmatpush1.msra.mxu0 0.0
    %2228 = vmatprep.subr.mxu0 0.0
    %2229 = vmatpush1.msra.mxu0 0.0
    %2230 = vmatprep.subr.mxu0 0.0
    %2231 = vmatpush1.msra.mxu0 0.0
    %2232 = vmatprep.subr.mxu0 0.0
    %2233 = vmatpush1.msra.mxu0 0.0
    %2234 = vmatprep.subr.mxu0 0.0
    %2235 = vmatpush1.msra.mxu0 0.0
    %2236 = vmatprep.subr.mxu0 0.0
    %2237 = vmatpush1.msra.mxu0 0.0
    %2238 = vmatprep.subr.mxu0 0.0
    %2239 = vmatpush1.msra.mxu0 0.0
    %2240 = vmatprep.subr.mxu0 0.0
    %2241 = vmatpush1.msra.mxu0 0.0
    %2242 = vmatprep.subr.mxu0 0.0
    %2243 = vmatpush1.msra.mxu0 0.0
    %2244 = vmatprep.subr.mxu0 0.0
    %2245 = vmatpush1.msra.mxu0 0.0
    %2246 = vmatprep.mubr.f32.mxu0 0.0
    %2247 = vmatmul.mubr.f32.gmra.mrb[0].mxu0 %v2086
    %v2248 = vpop.f32.mrb[0].mxu0
    %v2249 = vadd.f32 %v2165, %v2248
    %v2250 = vpop.f32.mrb[0].mxu0
    %v2251 = vadd.f32 %v2169, %v2250
    %2252 = vmatprep.mubr.f32.mxu0 0.0
    %2253 = vmatmul.mubr.f32.gmra.mrb[0].mxu0 %v2087
    %v2254 = vpop.f32.mrb[0].mxu0
    %v2255 = vadd.f32 %v2165, %v2254
    %v2256 = vpop.f32.mrb[0].mxu0
    %v2257 = vadd.f32 %v2169, %v2256
    %2258 = vmatprep.mubr.f32.mxu0 0.0
    %2259 = vmatmul.mubr.f32.gmra.mrb[0].mxu0 %v2088
    %v2260 = vpop.f32.mrb[0].mxu0
    %v2261 = vadd.f32 %v2165, %v2260
    %v2262 = vpop.f32.mrb[0].mxu0
    %v2263 = vadd.f32 %v2169, %v2262
    %2264 = vmatprep.mubr.f32.mxu0 0.0
    %2265 = vmatmul.mubr.f32.gmra.mrb[0].mxu0 %v2089
    %v2266 = vpop.f32.mrb[0].mxu0
    %v2267 = vadd.f32 %v2165, %v2266
    %v2268 = vpop.f32.mrb[0].mxu0
    %v2269 = vadd.f32 %v2169, %v2268
    %2270 = vmatprep.mubr.f32.mxu0 0.0
    %2271 = vmatmul.mubr.f32.gmra.mrb[0].mxu0 %v2090
    %v2272 = vpop.f32.mrb[0].mxu0
    %v2273 = vadd.f32 %v2165, %v2272
    %v2274 = vpop.f32.mrb[0].mxu0
    %v2275 = vadd.f32 %v2169, %v2274
    %2276 = vmatprep.mubr.f32.mxu0 0.0
    %2277 = vmatmul.mubr.f32.gmra.mrb[0].mxu0 %v2091
    %v2278 = vpop.f32.mrb[0].mxu0
    %v2279 = vadd.f32 %v2165, %v2278
    %v2280 = vpop.f32.mrb[0].mxu0
    %v2281 = vadd.f32 %v2169, %v2280
    %2282 = vmatprep.mubr.f32.mxu0 0.0
    %2283 = vmatmul.mubr.f32.gmra.mrb[0].mxu0 %v2092
    %v2284 = vpop.f32.mrb[0].mxu0
    %v2285 = vadd.f32 %v2165, %v2284
    %v2286 = vpop.f32.mrb[0].mxu0
    %v2287 = vadd.f32 %v2169, %v2286
    %2288 = vmatprep.mubr.f32.mxu0 0.0
    %2289 = vmatmul.mubr.f32.gmra.mrb[0].mxu0 %v2093
    %v2290 = vpop.f32.mrb[0].mxu0
    %v2291 = vadd.f32 %v2165, %v2290
    %v2292 = vpop.f32.mrb[0].mxu0
    %v2293 = vadd.f32 %v2169, %v2292
    %2294 = vdwg.mxu0
    %2295 = vmatprep.subr.mxu0 %v2098
    %2296 = vmatpush1.msra.mxu0 %v2097
    %2297 = vmatprep.subr.mxu0 %v2102
    %2298 = vmatpush1.msra.mxu0 %v2101
    %2299 = vmatprep.subr.mxu0 %v2106
    %2300 = vmatpush1.msra.mxu0 %v2105
    %2301 = vmatprep.subr.mxu0 %v2110
    %2302 = vmatpush1.msra.mxu0 %v2109
    %2303 = vmatprep.subr.mxu0 %v2114
    %2304 = vmatpush1.msra.mxu0 %v2113
    %2305 = vmatprep.subr.mxu0 %v2118
    %2306 = vmatpush1.msra.mxu0 %v2117
    %2307 = vmatprep.subr.mxu0 %v2122
    %2308 = vmatpush1.msra.mxu0 %v2121
    %2309 = vmatprep.subr.mxu0 %v2126
    %2310 = vmatpush1.msra.mxu0 %v2125
    %2311 = vmatprep.subr.mxu0 %v2130
    %2312 = vmatpush1.msra.mxu0 %v2129
    %2313 = vmatprep.subr.mxu0 %v2134
    %2314 = vmatpush1.msra.mxu0 %v2133
    %2315 = vmatprep.subr.mxu0 %v2138
    %2316 = vmatpush1.msra.mxu0 %v2137
    %2317 = vmatprep.subr.mxu0 %v2142
    %2318 = vmatpush1.msra.mxu0 %v2141
    %2319 = vmatprep.subr.mxu0 %v2146
    %2320 = vmatpush1.msra.mxu0 %v2145
    %2321 = vmatprep.subr.mxu0 %v2150
    %2322 = vmatpush1.msra.mxu0 %v2149
    %2323 = vmatprep.subr.mxu0 %v2154
    %2324 = vmatpush1.msra.mxu0 %v2153
    %2325 = vmatprep.subr.mxu0 %v2158
    %2326 = vmatpush1.msra.mxu0 %v2157
    %2327 = vmatprep.subr.mxu0 0.0
    %2328 = vmatpush1.msra.mxu0 0.0
    %2329 = vmatprep.subr.mxu0 0.0
    %2330 = vmatpush1.msra.mxu0 0.0
    %2331 = vmatprep.subr.mxu0 0.0
    %2332 = vmatpush1.msra.mxu0 0.0
    %2333 = vmatprep.subr.mxu0 0.0
    %2334 = vmatpush1.msra.mxu0 0.0
    %2335 = vmatprep.subr.mxu0 0.0
    %2336 = vmatpush1.msra.mxu0 0.0
    %2337 = vmatprep.subr.mxu0 0.0
    %2338 = vmatpush1.msra.mxu0 0.0
    %2339 = vmatprep.subr.mxu0 0.0
    %2340 = vmatpush1.msra.mxu0 0.0
    %2341 = vmatprep.subr.mxu0 0.0
    %2342 = vmatpush1.msra.mxu0 0.0
    %2343 = vmatprep.subr.mxu0 0.0
    %2344 = vmatpush1.msra.mxu0 0.0
    %2345 = vmatprep.subr.mxu0 0.0
    %2346 = vmatpush1.msra.mxu0 0.0
    %2347 = vmatprep.subr.mxu0 0.0
    %2348 = vmatpush1.msra.mxu0 0.0
    %2349 = vmatprep.subr.mxu0 0.0
    %2350 = vmatpush1.msra.mxu0 0.0
    %2351 = vmatprep.subr.mxu0 0.0
    %2352 = vmatpush1.msra.mxu0 0.0
    %2353 = vmatprep.subr.mxu0 0.0
    %2354 = vmatpush1.msra.mxu0 0.0
    %2355 = vmatprep.subr.mxu0 0.0
    %2356 = vmatpush1.msra.mxu0 0.0
    %2357 = vmatprep.subr.mxu0 0.0
    %2358 = vmatpush1.msra.mxu0 0.0
    %2359 = vmatprep.mubr.f32.mxu0 0.0
    %2360 = vmatmul.mubr.f32.gmra.mrb[0].mxu0 %v2086
    %v2361 = vpop.f32.mrb[0].mxu0
    %v2362 = vadd.f32 %v2173, %v2361
    %v2363 = vpop.f32.mrb[0].mxu0
    %v2364 = vadd.f32 %v2177, %v2363
    %2365 = vmatprep.mubr.f32.mxu0 0.0
    %2366 = vmatmul.mubr.f32.gmra.mrb[0].mxu0 %v2087
    %v2367 = vpop.f32.mrb[0].mxu0
    %v2368 = vadd.f32 %v2173, %v2367
    %v2369 = vpop.f32.mrb[0].mxu0
    %v2370 = vadd.f32 %v2177, %v2369
    %2371 = vmatprep.mubr.f32.mxu0 0.0
    %2372 = vmatmul.mubr.f32.gmra.mrb[0].mxu0 %v2088
    %v2373 = vpop.f32.mrb[0].mxu0
    %v2374 = vadd.f32 %v2173, %v2373
    %v2375 = vpop.f32.mrb[0].mxu0
    %v2376 = vadd.f32 %v2177, %v2375
    %2377 = vmatprep.mubr.f32.mxu0 0.0
    %2378 = vmatmul.mubr.f32.gmra.mrb[0].mxu0 %v2089
    %v2379 = vpop.f32.mrb[0].mxu0
    %v2380 = vadd.f32 %v2173, %v2379
    %v2381 = vpop.f32.mrb[0].mxu0
    %v2382 = vadd.f32 %v2177, %v2381
    %2383 = vmatprep.mubr.f32.mxu0 0.0
    %2384 = vmatmul.mubr.f32.gmra.mrb[0].mxu0 %v2090
    %v2385 = vpop.f32.mrb[0].mxu0
    %v2386 = vadd.f32 %v2173, %v2385
    %v2387 = vpop.f32.mrb[0].mxu0
    %v2388 = vadd.f32 %v2177, %v2387
    %2389 = vmatprep.mubr.f32.mxu0 0.0
    %2390 = vmatmul.mubr.f32.gmra.mrb[0].mxu0 %v2091
    %v2391 = vpop.f32.mrb[0].mxu0
    %v2392 = vadd.f32 %v2173, %v2391
    %v2393 = vpop.f32.mrb[0].mxu0
    %v2394 = vadd.f32 %v2177, %v2393
    %2395 = vmatprep.mubr.f32.mxu0 0.0
    %2396 = vmatmul.mubr.f32.gmra.mrb[0].mxu0 %v2092
    %v2397 = vpop.f32.mrb[0].mxu0
    %v2398 = vadd.f32 %v2173, %v2397
    %v2399 = vpop.f32.mrb[0].mxu0
    %v2400 = vadd.f32 %v2177, %v2399
    %2401 = vmatprep.mubr.f32.mxu0 0.0
    %2402 = vmatmul.mubr.f32.gmra.mrb[0].mxu0 %v2093
    %v2403 = vpop.f32.mrb[0].mxu0
    %v2404 = vadd.f32 %v2173, %v2403
    %v2405 = vpop.f32.mrb[0].mxu0
    %v2406 = vadd.f32 %v2177, %v2405
    %2407 = vdwg.mxu0
    %2408 = vst [vmem:[#allocation3] sm:$0xff] %v2249
    %2409 = vst [vmem:[#allocation3 + $0x8] sm:$0xff] %v2251
    %2410 = vst [vmem:[#allocation3 + $0x10] sm:$0xff] %v2362
    %2411 = vst [vmem:[#allocation3 + $0x18] sm:$0xff] %v2364
    %2412 = vst [vmem:[#allocation3 + $0x20] sm:$0xff] %v2255
    %2413 = vst [vmem:[#allocation3 + $0x28] sm:$0xff] %v2257
    %2414 = vst [vmem:[#allocation3 + $0x30] sm:$0xff] %v2368
    %2415 = vst [vmem:[#allocation3 + $0x38] sm:$0xff] %v2370
    %2416 = vst [vmem:[#allocation3 + $0x40] sm:$0xff] %v2261
    %2417 = vst [vmem:[#allocation3 + $0x48] sm:$0xff] %v2263
    %2418 = vst [vmem:[#allocation3 + $0x50] sm:$0xff] %v2374
    %2419 = vst [vmem:[#allocation3 + $0x58] sm:$0xff] %v2376
    %2420 = vst [vmem:[#allocation3 + $0x60] sm:$0xff] %v2267
    %2421 = vst [vmem:[#allocation3 + $0x68] sm:$0xff] %v2269
    %2422 = vst [vmem:[#allocation3 + $0x70] sm:$0xff] %v2380
    %2423 = vst [vmem:[#allocation3 + $0x78] sm:$0xff] %v2382
    %2424 = vst [vmem:[#allocation3 + $0x80] sm:$0xff] %v2273
    %2425 = vst [vmem:[#allocation3 + $0x88] sm:$0xff] %v2275
    %2426 = vst [vmem:[#allocation3 + $0x90] sm:$0xff] %v2386
    %2427 = vst [vmem:[#allocation3 + $0x98] sm:$0xff] %v2388
    %2428 = vst [vmem:[#allocation3 + $0xa0] sm:$0xff] %v2279
    %2429 = vst [vmem:[#allocation3 + $0xa8] sm:$0xff] %v2281
    %2430 = vst [vmem:[#allocation3 + $0xb0] sm:$0xff] %v2392
    %2431 = vst [vmem:[#allocation3 + $0xb8] sm:$0xff] %v2394
    %2432 = vst [vmem:[#allocation3 + $0xc0] sm:$0xff] %v2285
    %2433 = vst [vmem:[#allocation3 + $0xc8] sm:$0xff] %v2287
    %2434 = vst [vmem:[#allocation3 + $0xd0] sm:$0xff] %v2398
    %2435 = vst [vmem:[#allocation3 + $0xd8] sm:$0xff] %v2400
    %2436 = vst [vmem:[#allocation3 + $0xe0] sm:$0xff] %v2291
    %2437 = vst [vmem:[#allocation3 + $0xe8] sm:$0xff] %v2293
    %2438 = vst [vmem:[#allocation3 + $0xf0] sm:$0xff] %v2404
    %2439 = vst [vmem:[#allocation3 + $0xf8] sm:$0xff] %v2406
    %s2440 = scalar_lea.vmem [#allocation10], 512
    %v2441 = vld [vmem:[%s2440] sm:$0xff]
    %v2442 = vld [vmem:[%s2440 + $0x8] sm:$0xff]
    %v2443 = vld [vmem:[%s2440 + $0x10] sm:$0xff]
    %v2444 = vld [vmem:[%s2440 + $0x18] sm:$0xff]
    %v2445 = vld [vmem:[%s2440 + $0x20] sm:$0xff]
    %v2446 = vld [vmem:[%s2440 + $0x28] sm:$0xff]
    %v2447 = vld [vmem:[%s2440 + $0x30] sm:$0xff]
    %v2448 = vld [vmem:[%s2440 + $0x38] sm:$0xff]
    %v2449 = vld [vmem:[%s2440 + $0x40] sm:$0xff]
    %v2450 = vld [vmem:[%s2440 + $0x48] sm:$0xff]
    %v2451 = vld [vmem:[%s2440 + $0x50] sm:$0xff]
    %v2452 = vld [vmem:[%s2440 + $0x58] sm:$0xff]
    %v2453 = vld [vmem:[%s2440 + $0x60] sm:$0xff]
    %v2454 = vld [vmem:[%s2440 + $0x68] sm:$0xff]
    %v2455 = vld [vmem:[%s2440 + $0x70] sm:$0xff]
    %v2456 = vld [vmem:[%s2440 + $0x78] sm:$0xff]
    %v2457 = vld [vmem:[%s2440 + $0x80] sm:$0xff]
    %v2458 = vld [vmem:[%s2440 + $0x88] sm:$0xff]
    %v2459 = vld [vmem:[%s2440 + $0x90] sm:$0xff]
    %v2460 = vld [vmem:[%s2440 + $0x98] sm:$0xff]
    %v2461 = vld [vmem:[%s2440 + $0xa0] sm:$0xff]
    %v2462 = vld [vmem:[%s2440 + $0xa8] sm:$0xff]
    %v2463 = vld [vmem:[%s2440 + $0xb0] sm:$0xff]
    %v2464 = vld [vmem:[%s2440 + $0xb8] sm:$0xff]
    %v2465 = vld [vmem:[%s2440 + $0xc0] sm:$0xff]
    %v2466 = vld [vmem:[%s2440 + $0xc8] sm:$0xff]
    %v2467 = vld [vmem:[%s2440 + $0xd0] sm:$0xff]
    %v2468 = vld [vmem:[%s2440 + $0xd8] sm:$0xff]
    %v2469 = vld [vmem:[%s2440 + $0xe0] sm:$0xff]
    %v2470 = vld [vmem:[%s2440 + $0xe8] sm:$0xff]
    %v2471 = vld [vmem:[%s2440 + $0xf0] sm:$0xff]
    %v2472 = vld [vmem:[%s2440 + $0xf8] sm:$0xff]
    %v2473 = vld [vmem:[%s2440 + $0x100] sm:$0xff]
    %v2474 = vld [vmem:[%s2440 + $0x108] sm:$0xff]
    %v2475 = vld [vmem:[%s2440 + $0x110] sm:$0xff]
    %v2476 = vld [vmem:[%s2440 + $0x118] sm:$0xff]
    %v2477 = vld [vmem:[%s2440 + $0x120] sm:$0xff]
    %v2478 = vld [vmem:[%s2440 + $0x128] sm:$0xff]
    %v2479 = vld [vmem:[%s2440 + $0x130] sm:$0xff]
    %v2480 = vld [vmem:[%s2440 + $0x138] sm:$0xff]
    %v2481 = vld [vmem:[%s2440 + $0x140] sm:$0xff]
    %v2482 = vld [vmem:[%s2440 + $0x148] sm:$0xff]
    %v2483 = vld [vmem:[%s2440 + $0x150] sm:$0xff]
    %v2484 = vld [vmem:[%s2440 + $0x158] sm:$0xff]
    %v2485 = vld [vmem:[%s2440 + $0x160] sm:$0xff]
    %v2486 = vld [vmem:[%s2440 + $0x168] sm:$0xff]
    %v2487 = vld [vmem:[%s2440 + $0x170] sm:$0xff]
    %v2488 = vld [vmem:[%s2440 + $0x178] sm:$0xff]
    %v2489 = vld [vmem:[%s2440 + $0x180] sm:$0xff]
    %v2490 = vld [vmem:[%s2440 + $0x188] sm:$0xff]
    %v2491 = vld [vmem:[%s2440 + $0x190] sm:$0xff]
    %v2492 = vld [vmem:[%s2440 + $0x198] sm:$0xff]
    %v2493 = vld [vmem:[%s2440 + $0x1a0] sm:$0xff]
    %v2494 = vld [vmem:[%s2440 + $0x1a8] sm:$0xff]
    %v2495 = vld [vmem:[%s2440 + $0x1b0] sm:$0xff]
    %v2496 = vld [vmem:[%s2440 + $0x1b8] sm:$0xff]
    %v2497 = vld [vmem:[%s2440 + $0x1c0] sm:$0xff]
    %v2498 = vld [vmem:[%s2440 + $0x1c8] sm:$0xff]
    %v2499 = vld [vmem:[%s2440 + $0x1d0] sm:$0xff]
    %v2500 = vld [vmem:[%s2440 + $0x1d8] sm:$0xff]
    %v2501 = vld [vmem:[%s2440 + $0x1e0] sm:$0xff]
    %v2502 = vld [vmem:[%s2440 + $0x1e8] sm:$0xff]
    %v2503 = vld [vmem:[%s2440 + $0x1f0] sm:$0xff]
    %v2504 = vld [vmem:[%s2440 + $0x1f8] sm:$0xff]
    %s2505 = scalar_lea.vmem %s8, 8
    %v2506 = vld [vmem:[%s2505] sm:$0xff]
    %s2507 = scalar_lea.vmem %s9, 8
    %v2508 = vld [vmem:[%s2507] sm:$0xff]
    %v2509 = vld [vmem:[#allocation3] sm:$0xff]
    %v2510 = vld [vmem:[#allocation3 + $0x8] sm:$0xff]
    %v2511 = vld [vmem:[#allocation3 + $0x10] sm:$0xff]
    %v2512 = vld [vmem:[#allocation3 + $0x18] sm:$0xff]
    %2513 = vmatprep.subr.mxu0 %v2442
    %2514 = vmatpush1.msra.mxu0 %v2441
    %2515 = vmatprep.subr.mxu0 %v2446
    %2516 = vmatpush1.msra.mxu0 %v2445
    %2517 = vmatprep.subr.mxu0 %v2450
    %2518 = vmatpush1.msra.mxu0 %v2449
    %2519 = vmatprep.subr.mxu0 %v2454
    %2520 = vmatpush1.msra.mxu0 %v2453
    %2521 = vmatprep.subr.mxu0 %v2458
    %2522 = vmatpush1.msra.mxu0 %v2457
    %2523 = vmatprep.subr.mxu0 %v2462
    %2524 = vmatpush1.msra.mxu0 %v2461
    %2525 = vmatprep.subr.mxu0 %v2466
    %2526 = vmatpush1.msra.mxu0 %v2465
    %2527 = vmatprep.subr.mxu0 %v2470
    %2528 = vmatpush1.msra.mxu0 %v2469
    %2529 = vmatprep.subr.mxu0 %v2474
    %2530 = vmatpush1.msra.mxu0 %v2473
    %2531 = vmatprep.subr.mxu0 %v2478
    %2532 = vmatpush1.msra.mxu0 %v2477
    %2533 = vmatprep.subr.mxu0 %v2482
    %2534 = vmatpush1.msra.mxu0 %v2481
    %2535 = vmatprep.subr.mxu0 %v2486
    %2536 = vmatpush1.msra.mxu0 %v2485
    %2537 = vmatprep.subr.mxu0 %v2490
    %2538 = vmatpush1.msra.mxu0 %v2489
    %2539 = vmatprep.subr.mxu0 %v2494
    %2540 = vmatpush1.msra.mxu0 %v2493
    %2541 = vmatprep.subr.mxu0 %v2498
    %2542 = vmatpush1.msra.mxu0 %v2497
    %2543 = vmatprep.subr.mxu0 %v2502
    %2544 = vmatpush1.msra.mxu0 %v2501
    %2545 = vmatprep.subr.mxu0 0.0
    %2546 = vmatpush1.msra.mxu0 0.0
    %2547 = vmatprep.subr.mxu0 0.0
    %2548 = vmatpush1.msra.mxu0 0.0
    %2549 = vmatprep.subr.mxu0 0.0
    %2550 = vmatpush1.msra.mxu0 0.0
    %2551 = vmatprep.subr.mxu0 0.0
    %2552 = vmatpush1.msra.mxu0 0.0
    %2553 = vmatprep.subr.mxu0 0.0
    %2554 = vmatpush1.msra.mxu0 0.0
    %2555 = vmatprep.subr.mxu0 0.0
    %2556 = vmatpush1.msra.mxu0 0.0
    %2557 = vmatprep.subr.mxu0 0.0
    %2558 = vmatpush1.msra.mxu0 0.0
    %2559 = vmatprep.subr.mxu0 0.0
    %2560 = vmatpush1.msra.mxu0 0.0
    %2561 = vmatprep.subr.mxu0 0.0
    %2562 = vmatpush1.msra.mxu0 0.0
    %2563 = vmatprep.subr.mxu0 0.0
    %2564 = vmatpush1.msra.mxu0 0.0
    %2565 = vmatprep.subr.mxu0 0.0
    %2566 = vmatpush1.msra.mxu0 0.0
    %2567 = vmatprep.subr.mxu0 0.0
    %2568 = vmatpush1.msra.mxu0 0.0
    %2569 = vmatprep.subr.mxu0 0.0
    %2570 = vmatpush1.msra.mxu0 0.0
    %2571 = vmatprep.subr.mxu0 0.0
    %2572 = vmatpush1.msra.mxu0 0.0
    %2573 = vmatprep.subr.mxu0 0.0
    %2574 = vmatpush1.msra.mxu0 0.0
    %2575 = vmatprep.subr.mxu0 0.0
    %2576 = vmatpush1.msra.mxu0 0.0
    %2577 = vmatprep.mubr.f32.mxu0 0.0
    %2578 = vmatmul.mubr.f32.gmra.mrb[0].mxu0 %v2506
    %v2579 = vpop.f32.mrb[0].mxu0
    %v2580 = vadd.f32 0.0, %v2579
    %v2581 = vpop.f32.mrb[0].mxu0
    %v2582 = vadd.f32 0.0, %v2581
    %2583 = vdwg.mxu0
    %2584 = vmatprep.subr.mxu0 %v2444
    %2585 = vmatpush1.msra.mxu0 %v2443
    %2586 = vmatprep.subr.mxu0 %v2448
    %2587 = vmatpush1.msra.mxu0 %v2447
    %2588 = vmatprep.subr.mxu0 %v2452
    %2589 = vmatpush1.msra.mxu0 %v2451
    %2590 = vmatprep.subr.mxu0 %v2456
    %2591 = vmatpush1.msra.mxu0 %v2455
    %2592 = vmatprep.subr.mxu0 %v2460
    %2593 = vmatpush1.msra.mxu0 %v2459
    %2594 = vmatprep.subr.mxu0 %v2464
    %2595 = vmatpush1.msra.mxu0 %v2463
    %2596 = vmatprep.subr.mxu0 %v2468
    %2597 = vmatpush1.msra.mxu0 %v2467
    %2598 = vmatprep.subr.mxu0 %v2472
    %2599 = vmatpush1.msra.mxu0 %v2471
    %2600 = vmatprep.subr.mxu0 %v2476
    %2601 = vmatpush1.msra.mxu0 %v2475
    %2602 = vmatprep.subr.mxu0 %v2480
    %2603 = vmatpush1.msra.mxu0 %v2479
    %2604 = vmatprep.subr.mxu0 %v2484
    %2605 = vmatpush1.msra.mxu0 %v2483
    %2606 = vmatprep.subr.mxu0 %v2488
    %2607 = vmatpush1.msra.mxu0 %v2487
    %2608 = vmatprep.subr.mxu0 %v2492
    %2609 = vmatpush1.msra.mxu0 %v2491
    %2610 = vmatprep.subr.mxu0 %v2496
    %2611 = vmatpush1.msra.mxu0 %v2495
    %2612 = vmatprep.subr.mxu0 %v2500
    %2613 = vmatpush1.msra.mxu0 %v2499
    %2614 = vmatprep.subr.mxu0 %v2504
    %2615 = vmatpush1.msra.mxu0 %v2503
    %2616 = vmatprep.subr.mxu0 0.0
    %2617 = vmatpush1.msra.mxu0 0.0
    %2618 = vmatprep.subr.mxu0 0.0
    %2619 = vmatpush1.msra.mxu0 0.0
    %2620 = vmatprep.subr.mxu0 0.0
    %2621 = vmatpush1.msra.mxu0 0.0
    %2622 = vmatprep.subr.mxu0 0.0
    %2623 = vmatpush1.msra.mxu0 0.0
    %2624 = vmatprep.subr.mxu0 0.0
    %2625 = vmatpush1.msra.mxu0 0.0
    %2626 = vmatprep.subr.mxu0 0.0
    %2627 = vmatpush1.msra.mxu0 0.0
    %2628 = vmatprep.subr.mxu0 0.0
    %2629 = vmatpush1.msra.mxu0 0.0
    %2630 = vmatprep.subr.mxu0 0.0
    %2631 = vmatpush1.msra.mxu0 0.0
    %2632 = vmatprep.subr.mxu0 0.0
    %2633 = vmatpush1.msra.mxu0 0.0
    %2634 = vmatprep.subr.mxu0 0.0
    %2635 = vmatpush1.msra.mxu0 0.0
    %2636 = vmatprep.subr.mxu0 0.0
    %2637 = vmatpush1.msra.mxu0 0.0
    %2638 = vmatprep.subr.mxu0 0.0
    %2639 = vmatpush1.msra.mxu0 0.0
    %2640 = vmatprep.subr.mxu0 0.0
    %2641 = vmatpush1.msra.mxu0 0.0
    %2642 = vmatprep.subr.mxu0 0.0
    %2643 = vmatpush1.msra.mxu0 0.0
    %2644 = vmatprep.subr.mxu0 0.0
    %2645 = vmatpush1.msra.mxu0 0.0
    %2646 = vmatprep.subr.mxu0 0.0
    %2647 = vmatpush1.msra.mxu0 0.0
    %2648 = vmatprep.mubr.f32.mxu0 0.0
    %2649 = vmatmul.mubr.f32.gmra.mrb[0].mxu0 %v2506
    %v2650 = vpop.f32.mrb[0].mxu0
    %v2651 = vadd.f32 0.0, %v2650
    %v2652 = vpop.f32.mrb[0].mxu0
    %v2653 = vadd.f32 0.0, %v2652
    %2654 = vdwg.mxu0
    %v2655 = vadd.f32 %v2509, %v2580
    %v2656 = vadd.f32 %v2510, %v2582
    %v2657 = vadd.f32 %v2511, %v2651
    %v2658 = vadd.f32 %v2512, %v2653
    %v2659 = vxor.u32 %v2655, 2147483648
    %v2660 = vmul.f32 %v2659, 1.442695
    %v2661 = vpow.pop %v2660
    %v2662 = vadd.f32 %v2661, 1.0
    %v2663 = vrcp.pop %v2662
    %v2664 = vmul.f32 1.0, %v2663
    %v2665 = vxor.u32 %v2656, 2147483648
    %v2666 = vmul.f32 %v2665, 1.442695
    %v2667 = vpow.pop %v2666
    %v2668 = vadd.f32 %v2667, 1.0
    %v2669 = vrcp.pop %v2668
    %v2670 = vmul.f32 1.0, %v2669
    %v2671 = vtanh.pop %v2657
    %v2672 = vxor.u32 %v2658, 2147483648
    %v2673 = vmul.f32 %v2672, 1.442695
    %v2674 = vpow.pop %v2673
    %v2675 = vadd.f32 %v2674, 1.0
    %v2676 = vrcp.pop %v2675
    %v2677 = vmul.f32 1.0, %v2676
    %v2678 = vmul.f32 %v2670, %v2508
    %v2679 = vmul.f32 %v2664, %v2671
    %v2680 = vadd.f32 %v2678, %v2679
    %v2681 = vtanh.pop %v2680
    %v2682 = vmul.f32 %v2677, %v2681
    %2683 = vst [vmem:[#allocation2] sm:$0xff] %v2682
    %v2684 = vld [vmem:[#allocation3 + $0x20] sm:$0xff]
    %v2685 = vld [vmem:[#allocation3 + $0x28] sm:$0xff]
    %v2686 = vld [vmem:[#allocation3 + $0x30] sm:$0xff]
    %v2687 = vld [vmem:[#allocation3 + $0x38] sm:$0xff]
    %2688 = vmatprep.subr.mxu0 %v2442
    %2689 = vmatpush1.msra.mxu0 %v2441
    %2690 = vmatprep.subr.mxu0 %v2446
    %2691 = vmatpush1.msra.mxu0 %v2445
    %2692 = vmatprep.subr.mxu0 %v2450
    %2693 = vmatpush1.msra.mxu0 %v2449
    %2694 = vmatprep.subr.mxu0 %v2454
    %2695 = vmatpush1.msra.mxu0 %v2453
    %2696 = vmatprep.subr.mxu0 %v2458
    %2697 = vmatpush1.msra.mxu0 %v2457
    %2698 = vmatprep.subr.mxu0 %v2462
    %2699 = vmatpush1.msra.mxu0 %v2461
    %2700 = vmatprep.subr.mxu0 %v2466
    %2701 = vmatpush1.msra.mxu0 %v2465
    %2702 = vmatprep.subr.mxu0 %v2470
    %2703 = vmatpush1.msra.mxu0 %v2469
    %2704 = vmatprep.subr.mxu0 %v2474
    %2705 = vmatpush1.msra.mxu0 %v2473
    %2706 = vmatprep.subr.mxu0 %v2478
    %2707 = vmatpush1.msra.mxu0 %v2477
    %2708 = vmatprep.subr.mxu0 %v2482
    %2709 = vmatpush1.msra.mxu0 %v2481
    %2710 = vmatprep.subr.mxu0 %v2486
    %2711 = vmatpush1.msra.mxu0 %v2485
    %2712 = vmatprep.subr.mxu0 %v2490
    %2713 = vmatpush1.msra.mxu0 %v2489
    %2714 = vmatprep.subr.mxu0 %v2494
    %2715 = vmatpush1.msra.mxu0 %v2493
    %2716 = vmatprep.subr.mxu0 %v2498
    %2717 = vmatpush1.msra.mxu0 %v2497
    %2718 = vmatprep.subr.mxu0 %v2502
    %2719 = vmatpush1.msra.mxu0 %v2501
    %2720 = vmatprep.subr.mxu0 0.0
    %2721 = vmatpush1.msra.mxu0 0.0
    %2722 = vmatprep.subr.mxu0 0.0
    %2723 = vmatpush1.msra.mxu0 0.0
    %2724 = vmatprep.subr.mxu0 0.0
    %2725 = vmatpush1.msra.mxu0 0.0
    %2726 = vmatprep.subr.mxu0 0.0
    %2727 = vmatpush1.msra.mxu0 0.0
    %2728 = vmatprep.subr.mxu0 0.0
    %2729 = vmatpush1.msra.mxu0 0.0
    %2730 = vmatprep.subr.mxu0 0.0
    %2731 = vmatpush1.msra.mxu0 0.0
    %2732 = vmatprep.subr.mxu0 0.0
    %2733 = vmatpush1.msra.mxu0 0.0
    %2734 = vmatprep.subr.mxu0 0.0
    %2735 = vmatpush1.msra.mxu0 0.0
    %2736 = vmatprep.subr.mxu0 0.0
    %2737 = vmatpush1.msra.mxu0 0.0
    %2738 = vmatprep.subr.mxu0 0.0
    %2739 = vmatpush1.msra.mxu0 0.0
    %2740 = vmatprep.subr.mxu0 0.0
    %2741 = vmatpush1.msra.mxu0 0.0
    %2742 = vmatprep.subr.mxu0 0.0
    %2743 = vmatpush1.msra.mxu0 0.0
    %2744 = vmatprep.subr.mxu0 0.0
    %2745 = vmatpush1.msra.mxu0 0.0
    %2746 = vmatprep.subr.mxu0 0.0
    %2747 = vmatpush1.msra.mxu0 0.0
    %2748 = vmatprep.subr.mxu0 0.0
    %2749 = vmatpush1.msra.mxu0 0.0
    %2750 = vmatprep.subr.mxu0 0.0
    %2751 = vmatpush1.msra.mxu0 0.0
    %2752 = vmatprep.mubr.f32.mxu0 0.0
    %2753 = vmatmul.mubr.f32.gmra.mrb[0].mxu0 %v2682
    %v2754 = vpop.f32.mrb[0].mxu0
    %v2755 = vadd.f32 0.0, %v2754
    %v2756 = vpop.f32.mrb[0].mxu0
    %v2757 = vadd.f32 0.0, %v2756
    %2758 = vdwg.mxu0
    %2759 = vmatprep.subr.mxu0 %v2444
    %2760 = vmatpush1.msra.mxu0 %v2443
    %2761 = vmatprep.subr.mxu0 %v2448
    %2762 = vmatpush1.msra.mxu0 %v2447
    %2763 = vmatprep.subr.mxu0 %v2452
    %2764 = vmatpush1.msra.mxu0 %v2451
    %2765 = vmatprep.subr.mxu0 %v2456
    %2766 = vmatpush1.msra.mxu0 %v2455
    %2767 = vmatprep.subr.mxu0 %v2460
    %2768 = vmatpush1.msra.mxu0 %v2459
    %2769 = vmatprep.subr.mxu0 %v2464
    %2770 = vmatpush1.msra.mxu0 %v2463
    %2771 = vmatprep.subr.mxu0 %v2468
    %2772 = vmatpush1.msra.mxu0 %v2467
    %2773 = vmatprep.subr.mxu0 %v2472
    %2774 = vmatpush1.msra.mxu0 %v2471
    %2775 = vmatprep.subr.mxu0 %v2476
    %2776 = vmatpush1.msra.mxu0 %v2475
    %2777 = vmatprep.subr.mxu0 %v2480
    %2778 = vmatpush1.msra.mxu0 %v2479
    %2779 = vmatprep.subr.mxu0 %v2484
    %2780 = vmatpush1.msra.mxu0 %v2483
    %2781 = vmatprep.subr.mxu0 %v2488
    %2782 = vmatpush1.msra.mxu0 %v2487
    %2783 = vmatprep.subr.mxu0 %v2492
    %2784 = vmatpush1.msra.mxu0 %v2491
    %2785 = vmatprep.subr.mxu0 %v2496
    %2786 = vmatpush1.msra.mxu0 %v2495
    %2787 = vmatprep.subr.mxu0 %v2500
    %2788 = vmatpush1.msra.mxu0 %v2499
    %2789 = vmatprep.subr.mxu0 %v2504
    %2790 = vmatpush1.msra.mxu0 %v2503
    %2791 = vmatprep.subr.mxu0 0.0
    %2792 = vmatpush1.msra.mxu0 0.0
    %2793 = vmatprep.subr.mxu0 0.0
    %2794 = vmatpush1.msra.mxu0 0.0
    %2795 = vmatprep.subr.mxu0 0.0
    %2796 = vmatpush1.msra.mxu0 0.0
    %2797 = vmatprep.subr.mxu0 0.0
    %2798 = vmatpush1.msra.mxu0 0.0
    %2799 = vmatprep.subr.mxu0 0.0
    %2800 = vmatpush1.msra.mxu0 0.0
    %2801 = vmatprep.subr.mxu0 0.0
    %2802 = vmatpush1.msra.mxu0 0.0
    %2803 = vmatprep.subr.mxu0 0.0
    %2804 = vmatpush1.msra.mxu0 0.0
    %2805 = vmatprep.subr.mxu0 0.0
    %2806 = vmatpush1.msra.mxu0 0.0
    %2807 = vmatprep.subr.mxu0 0.0
    %2808 = vmatpush1.msra.mxu0 0.0
    %2809 = vmatprep.subr.mxu0 0.0
    %2810 = vmatpush1.msra.mxu0 0.0
    %2811 = vmatprep.subr.mxu0 0.0
    %2812 = vmatpush1.msra.mxu0 0.0
    %2813 = vmatprep.subr.mxu0 0.0
    %2814 = vmatpush1.msra.mxu0 0.0
    %2815 = vmatprep.subr.mxu0 0.0
    %2816 = vmatpush1.msra.mxu0 0.0
    %2817 = vmatprep.subr.mxu0 0.0
    %2818 = vmatpush1.msra.mxu0 0.0
    %2819 = vmatprep.subr.mxu0 0.0
    %2820 = vmatpush1.msra.mxu0 0.0
    %2821 = vmatprep.subr.mxu0 0.0
    %2822 = vmatpush1.msra.mxu0 0.0
    %2823 = vmatprep.mubr.f32.mxu0 0.0
    %2824 = vmatmul.mubr.f32.gmra.mrb[0].mxu0 %v2682
    %v2825 = vpop.f32.mrb[0].mxu0
    %v2826 = vadd.f32 0.0, %v2825
    %v2827 = vpop.f32.mrb[0].mxu0
    %v2828 = vadd.f32 0.0, %v2827
    %2829 = vdwg.mxu0
    %v2830 = vadd.f32 %v2684, %v2755
    %v2831 = vadd.f32 %v2685, %v2757
    %v2832 = vadd.f32 %v2686, %v2826
    %v2833 = vadd.f32 %v2687, %v2828
    %v2834 = vxor.u32 %v2830, 2147483648
    %v2835 = vmul.f32 %v2834, 1.442695
    %v2836 = vpow.pop %v2835
    %v2837 = vadd.f32 %v2836, 1.0
    %v2838 = vrcp.pop %v2837
    %v2839 = vmul.f32 1.0, %v2838
    %v2840 = vxor.u32 %v2831, 2147483648
    %v2841 = vmul.f32 %v2840, 1.442695
    %v2842 = vpow.pop %v2841
    %v2843 = vadd.f32 %v2842, 1.0
    %v2844 = vrcp.pop %v2843
    %v2845 = vmul.f32 1.0, %v2844
    %v2846 = vtanh.pop %v2832
    %v2847 = vxor.u32 %v2833, 2147483648
    %v2848 = vmul.f32 %v2847, 1.442695
    %v2849 = vpow.pop %v2848
    %v2850 = vadd.f32 %v2849, 1.0
    %v2851 = vrcp.pop %v2850
    %v2852 = vmul.f32 1.0, %v2851
    %v2853 = vmul.f32 %v2845, %v2680
    %v2854 = vmul.f32 %v2839, %v2846
    %v2855 = vadd.f32 %v2853, %v2854
    %v2856 = vtanh.pop %v2855
    %v2857 = vmul.f32 %v2852, %v2856
    %2858 = vst [vmem:[#allocation2 + $0x8] sm:$0xff] %v2857
    %v2859 = vld [vmem:[#allocation3 + $0x40] sm:$0xff]
    %v2860 = vld [vmem:[#allocation3 + $0x48] sm:$0xff]
    %v2861 = vld [vmem:[#allocation3 + $0x50] sm:$0xff]
    %v2862 = vld [vmem:[#allocation3 + $0x58] sm:$0xff]
    %2863 = vmatprep.subr.mxu0 %v2442
    %2864 = vmatpush1.msra.mxu0 %v2441
    %2865 = vmatprep.subr.mxu0 %v2446
    %2866 = vmatpush1.msra.mxu0 %v2445
    %2867 = vmatprep.subr.mxu0 %v2450
    %2868 = vmatpush1.msra.mxu0 %v2449
    %2869 = vmatprep.subr.mxu0 %v2454
    %2870 = vmatpush1.msra.mxu0 %v2453
    %2871 = vmatprep.subr.mxu0 %v2458
    %2872 = vmatpush1.msra.mxu0 %v2457
    %2873 = vmatprep.subr.mxu0 %v2462
    %2874 = vmatpush1.msra.mxu0 %v2461
    %2875 = vmatprep.subr.mxu0 %v2466
    %2876 = vmatpush1.msra.mxu0 %v2465
    %2877 = vmatprep.subr.mxu0 %v2470
    %2878 = vmatpush1.msra.mxu0 %v2469
    %2879 = vmatprep.subr.mxu0 %v2474
    %2880 = vmatpush1.msra.mxu0 %v2473
    %2881 = vmatprep.subr.mxu0 %v2478
    %2882 = vmatpush1.msra.mxu0 %v2477
    %2883 = vmatprep.subr.mxu0 %v2482
    %2884 = vmatpush1.msra.mxu0 %v2481
    %2885 = vmatprep.subr.mxu0 %v2486
    %2886 = vmatpush1.msra.mxu0 %v2485
    %2887 = vmatprep.subr.mxu0 %v2490
    %2888 = vmatpush1.msra.mxu0 %v2489
    %2889 = vmatprep.subr.mxu0 %v2494
    %2890 = vmatpush1.msra.mxu0 %v2493
    %2891 = vmatprep.subr.mxu0 %v2498
    %2892 = vmatpush1.msra.mxu0 %v2497
    %2893 = vmatprep.subr.mxu0 %v2502
    %2894 = vmatpush1.msra.mxu0 %v2501
    %2895 = vmatprep.subr.mxu0 0.0
    %2896 = vmatpush1.msra.mxu0 0.0
    %2897 = vmatprep.subr.mxu0 0.0
    %2898 = vmatpush1.msra.mxu0 0.0
    %2899 = vmatprep.subr.mxu0 0.0
    %2900 = vmatpush1.msra.mxu0 0.0
    %2901 = vmatprep.subr.mxu0 0.0
    %2902 = vmatpush1.msra.mxu0 0.0
    %2903 = vmatprep.subr.mxu0 0.0
    %2904 = vmatpush1.msra.mxu0 0.0
    %2905 = vmatprep.subr.mxu0 0.0
    %2906 = vmatpush1.msra.mxu0 0.0
    %2907 = vmatprep.subr.mxu0 0.0
    %2908 = vmatpush1.msra.mxu0 0.0
    %2909 = vmatprep.subr.mxu0 0.0
    %2910 = vmatpush1.msra.mxu0 0.0
    %2911 = vmatprep.subr.mxu0 0.0
    %2912 = vmatpush1.msra.mxu0 0.0
    %2913 = vmatprep.subr.mxu0 0.0
    %2914 = vmatpush1.msra.mxu0 0.0
    %2915 = vmatprep.subr.mxu0 0.0
    %2916 = vmatpush1.msra.mxu0 0.0
    %2917 = vmatprep.subr.mxu0 0.0
    %2918 = vmatpush1.msra.mxu0 0.0
    %2919 = vmatprep.subr.mxu0 0.0
    %2920 = vmatpush1.msra.mxu0 0.0
    %2921 = vmatprep.subr.mxu0 0.0
    %2922 = vmatpush1.msra.mxu0 0.0
    %2923 = vmatprep.subr.mxu0 0.0
    %2924 = vmatpush1.msra.mxu0 0.0
    %2925 = vmatprep.subr.mxu0 0.0
    %2926 = vmatpush1.msra.mxu0 0.0
    %2927 = vmatprep.mubr.f32.mxu0 0.0
    %2928 = vmatmul.mubr.f32.gmra.mrb[0].mxu0 %v2857
    %v2929 = vpop.f32.mrb[0].mxu0
    %v2930 = vadd.f32 0.0, %v2929
    %v2931 = vpop.f32.mrb[0].mxu0
    %v2932 = vadd.f32 0.0, %v2931
    %2933 = vdwg.mxu0
    %2934 = vmatprep.subr.mxu0 %v2444
    %2935 = vmatpush1.msra.mxu0 %v2443
    %2936 = vmatprep.subr.mxu0 %v2448
    %2937 = vmatpush1.msra.mxu0 %v2447
    %2938 = vmatprep.subr.mxu0 %v2452
    %2939 = vmatpush1.msra.mxu0 %v2451
    %2940 = vmatprep.subr.mxu0 %v2456
    %2941 = vmatpush1.msra.mxu0 %v2455
    %2942 = vmatprep.subr.mxu0 %v2460
    %2943 = vmatpush1.msra.mxu0 %v2459
    %2944 = vmatprep.subr.mxu0 %v2464
    %2945 = vmatpush1.msra.mxu0 %v2463
    %2946 = vmatprep.subr.mxu0 %v2468
    %2947 = vmatpush1.msra.mxu0 %v2467
    %2948 = vmatprep.subr.mxu0 %v2472
    %2949 = vmatpush1.msra.mxu0 %v2471
    %2950 = vmatprep.subr.mxu0 %v2476
    %2951 = vmatpush1.msra.mxu0 %v2475
    %2952 = vmatprep.subr.mxu0 %v2480
    %2953 = vmatpush1.msra.mxu0 %v2479
    %2954 = vmatprep.subr.mxu0 %v2484
    %2955 = vmatpush1.msra.mxu0 %v2483
    %2956 = vmatprep.subr.mxu0 %v2488
    %2957 = vmatpush1.msra.mxu0 %v2487
    %2958 = vmatprep.subr.mxu0 %v2492
    %2959 = vmatpush1.msra.mxu0 %v2491
    %2960 = vmatprep.subr.mxu0 %v2496
    %2961 = vmatpush1.msra.mxu0 %v2495
    %2962 = vmatprep.subr.mxu0 %v2500
    %2963 = vmatpush1.msra.mxu0 %v2499
    %2964 = vmatprep.subr.mxu0 %v2504
    %2965 = vmatpush1.msra.mxu0 %v2503
    %2966 = vmatprep.subr.mxu0 0.0
    %2967 = vmatpush1.msra.mxu0 0.0
    %2968 = vmatprep.subr.mxu0 0.0
    %2969 = vmatpush1.msra.mxu0 0.0
    %2970 = vmatprep.subr.mxu0 0.0
    %2971 = vmatpush1.msra.mxu0 0.0
    %2972 = vmatprep.subr.mxu0 0.0
    %2973 = vmatpush1.msra.mxu0 0.0
    %2974 = vmatprep.subr.mxu0 0.0
    %2975 = vmatpush1.msra.mxu0 0.0
    %2976 = vmatprep.subr.mxu0 0.0
    %2977 = vmatpush1.msra.mxu0 0.0
    %2978 = vmatprep.subr.mxu0 0.0
    %2979 = vmatpush1.msra.mxu0 0.0
    %2980 = vmatprep.subr.mxu0 0.0
    %2981 = vmatpush1.msra.mxu0 0.0
    %2982 = vmatprep.subr.mxu0 0.0
    %2983 = vmatpush1.msra.mxu0 0.0
    %2984 = vmatprep.subr.mxu0 0.0
    %2985 = vmatpush1.msra.mxu0 0.0
    %2986 = vmatprep.subr.mxu0 0.0
    %2987 = vmatpush1.msra.mxu0 0.0
    %2988 = vmatprep.subr.mxu0 0.0
    %2989 = vmatpush1.msra.mxu0 0.0
    %2990 = vmatprep.subr.mxu0 0.0
    %2991 = vmatpush1.msra.mxu0 0.0
    %2992 = vmatprep.subr.mxu0 0.0
    %2993 = vmatpush1.msra.mxu0 0.0
    %2994 = vmatprep.subr.mxu0 0.0
    %2995 = vmatpush1.msra.mxu0 0.0
    %2996 = vmatprep.subr.mxu0 0.0
    %2997 = vmatpush1.msra.mxu0 0.0
    %2998 = vmatprep.mubr.f32.mxu0 0.0
    %2999 = vmatmul.mubr.f32.gmra.mrb[0].mxu0 %v2857
    %v3000 = vpop.f32.mrb[0].mxu0
    %v3001 = vadd.f32 0.0, %v3000
    %v3002 = vpop.f32.mrb[0].mxu0
    %v3003 = vadd.f32 0.0, %v3002
    %3004 = vdwg.mxu0
    %v3005 = vadd.f32 %v2859, %v2930
    %v3006 = vadd.f32 %v2860, %v2932
    %v3007 = vadd.f32 %v2861, %v3001
    %v3008 = vadd.f32 %v2862, %v3003
    %v3009 = vxor.u32 %v3005, 2147483648
    %v3010 = vmul.f32 %v3009, 1.442695
    %v3011 = vpow.pop %v3010
    %v3012 = vadd.f32 %v3011, 1.0
    %v3013 = vrcp.pop %v3012
    %v3014 = vmul.f32 1.0, %v3013
    %v3015 = vxor.u32 %v3006, 2147483648
    %v3016 = vmul.f32 %v3015, 1.442695
    %v3017 = vpow.pop %v3016
    %v3018 = vadd.f32 %v3017, 1.0
    %v3019 = vrcp.pop %v3018
    %v3020 = vmul.f32 1.0, %v3019
    %v3021 = vtanh.pop %v3007
    %v3022 = vxor.u32 %v3008, 2147483648
    %v3023 = vmul.f32 %v3022, 1.442695
    %v3024 = vpow.pop %v3023
    %v3025 = vadd.f32 %v3024, 1.0
    %v3026 = vrcp.pop %v3025
    %v3027 = vmul.f32 1.0, %v3026
    %v3028 = vmul.f32 %v3020, %v2855
    %v3029 = vmul.f32 %v3014, %v3021
    %v3030 = vadd.f32 %v3028, %v3029
    %v3031 = vtanh.pop %v3030
    %v3032 = vmul.f32 %v3027, %v3031
    %3033 = vst [vmem:[#allocation2 + $0x10] sm:$0xff] %v3032
    %v3034 = vld [vmem:[#allocation3 + $0x60] sm:$0xff]
    %v3035 = vld [vmem:[#allocation3 + $0x68] sm:$0xff]
    %v3036 = vld [vmem:[#allocation3 + $0x70] sm:$0xff]
    %v3037 = vld [vmem:[#allocation3 + $0x78] sm:$0xff]
    %3038 = vmatprep.subr.mxu0 %v2442
    %3039 = vmatpush1.msra.mxu0 %v2441
    %3040 = vmatprep.subr.mxu0 %v2446
    %3041 = vmatpush1.msra.mxu0 %v2445
    %3042 = vmatprep.subr.mxu0 %v2450
    %3043 = vmatpush1.msra.mxu0 %v2449
    %3044 = vmatprep.subr.mxu0 %v2454
    %3045 = vmatpush1.msra.mxu0 %v2453
    %3046 = vmatprep.subr.mxu0 %v2458
    %3047 = vmatpush1.msra.mxu0 %v2457
    %3048 = vmatprep.subr.mxu0 %v2462
    %3049 = vmatpush1.msra.mxu0 %v2461
    %3050 = vmatprep.subr.mxu0 %v2466
    %3051 = vmatpush1.msra.mxu0 %v2465
    %3052 = vmatprep.subr.mxu0 %v2470
    %3053 = vmatpush1.msra.mxu0 %v2469
    %3054 = vmatprep.subr.mxu0 %v2474
    %3055 = vmatpush1.msra.mxu0 %v2473
    %3056 = vmatprep.subr.mxu0 %v2478
    %3057 = vmatpush1.msra.mxu0 %v2477
    %3058 = vmatprep.subr.mxu0 %v2482
    %3059 = vmatpush1.msra.mxu0 %v2481
    %3060 = vmatprep.subr.mxu0 %v2486
    %3061 = vmatpush1.msra.mxu0 %v2485
    %3062 = vmatprep.subr.mxu0 %v2490
    %3063 = vmatpush1.msra.mxu0 %v2489
    %3064 = vmatprep.subr.mxu0 %v2494
    %3065 = vmatpush1.msra.mxu0 %v2493
    %3066 = vmatprep.subr.mxu0 %v2498
    %3067 = vmatpush1.msra.mxu0 %v2497
    %3068 = vmatprep.subr.mxu0 %v2502
    %3069 = vmatpush1.msra.mxu0 %v2501
    %3070 = vmatprep.subr.mxu0 0.0
    %3071 = vmatpush1.msra.mxu0 0.0
    %3072 = vmatprep.subr.mxu0 0.0
    %3073 = vmatpush1.msra.mxu0 0.0
    %3074 = vmatprep.subr.mxu0 0.0
    %3075 = vmatpush1.msra.mxu0 0.0
    %3076 = vmatprep.subr.mxu0 0.0
    %3077 = vmatpush1.msra.mxu0 0.0
    %3078 = vmatprep.subr.mxu0 0.0
    %3079 = vmatpush1.msra.mxu0 0.0
    %3080 = vmatprep.subr.mxu0 0.0
    %3081 = vmatpush1.msra.mxu0 0.0
    %3082 = vmatprep.subr.mxu0 0.0
    %3083 = vmatpush1.msra.mxu0 0.0
    %3084 = vmatprep.subr.mxu0 0.0
    %3085 = vmatpush1.msra.mxu0 0.0
    %3086 = vmatprep.subr.mxu0 0.0
    %3087 = vmatpush1.msra.mxu0 0.0
    %3088 = vmatprep.subr.mxu0 0.0
    %3089 = vmatpush1.msra.mxu0 0.0
    %3090 = vmatprep.subr.mxu0 0.0
    %3091 = vmatpush1.msra.mxu0 0.0
    %3092 = vmatprep.subr.mxu0 0.0
    %3093 = vmatpush1.msra.mxu0 0.0
    %3094 = vmatprep.subr.mxu0 0.0
    %3095 = vmatpush1.msra.mxu0 0.0
    %3096 = vmatprep.subr.mxu0 0.0
    %3097 = vmatpush1.msra.mxu0 0.0
    %3098 = vmatprep.subr.mxu0 0.0
    %3099 = vmatpush1.msra.mxu0 0.0
    %3100 = vmatprep.subr.mxu0 0.0
    %3101 = vmatpush1.msra.mxu0 0.0
    %3102 = vmatprep.mubr.f32.mxu0 0.0
    %3103 = vmatmul.mubr.f32.gmra.mrb[0].mxu0 %v3032
    %v3104 = vpop.f32.mrb[0].mxu0
    %v3105 = vadd.f32 0.0, %v3104
    %v3106 = vpop.f32.mrb[0].mxu0
    %v3107 = vadd.f32 0.0, %v3106
    %3108 = vdwg.mxu0
    %3109 = vmatprep.subr.mxu0 %v2444
    %3110 = vmatpush1.msra.mxu0 %v2443
    %3111 = vmatprep.subr.mxu0 %v2448
    %3112 = vmatpush1.msra.mxu0 %v2447
    %3113 = vmatprep.subr.mxu0 %v2452
    %3114 = vmatpush1.msra.mxu0 %v2451
    %3115 = vmatprep.subr.mxu0 %v2456
    %3116 = vmatpush1.msra.mxu0 %v2455
    %3117 = vmatprep.subr.mxu0 %v2460
    %3118 = vmatpush1.msra.mxu0 %v2459
    %3119 = vmatprep.subr.mxu0 %v2464
    %3120 = vmatpush1.msra.mxu0 %v2463
    %3121 = vmatprep.subr.mxu0 %v2468
    %3122 = vmatpush1.msra.mxu0 %v2467
    %3123 = vmatprep.subr.mxu0 %v2472
    %3124 = vmatpush1.msra.mxu0 %v2471
    %3125 = vmatprep.subr.mxu0 %v2476
    %3126 = vmatpush1.msra.mxu0 %v2475
    %3127 = vmatprep.subr.mxu0 %v2480
    %3128 = vmatpush1.msra.mxu0 %v2479
    %3129 = vmatprep.subr.mxu0 %v2484
    %3130 = vmatpush1.msra.mxu0 %v2483
    %3131 = vmatprep.subr.mxu0 %v2488
    %3132 = vmatpush1.msra.mxu0 %v2487
    %3133 = vmatprep.subr.mxu0 %v2492
    %3134 = vmatpush1.msra.mxu0 %v2491
    %3135 = vmatprep.subr.mxu0 %v2496
    %3136 = vmatpush1.msra.mxu0 %v2495
    %3137 = vmatprep.subr.mxu0 %v2500
    %3138 = vmatpush1.msra.mxu0 %v2499
    %3139 = vmatprep.subr.mxu0 %v2504
    %3140 = vmatpush1.msra.mxu0 %v2503
    %3141 = vmatprep.subr.mxu0 0.0
    %3142 = vmatpush1.msra.mxu0 0.0
    %3143 = vmatprep.subr.mxu0 0.0
    %3144 = vmatpush1.msra.mxu0 0.0
    %3145 = vmatprep.subr.mxu0 0.0
    %3146 = vmatpush1.msra.mxu0 0.0
    %3147 = vmatprep.subr.mxu0 0.0
    %3148 = vmatpush1.msra.mxu0 0.0
    %3149 = vmatprep.subr.mxu0 0.0
    %3150 = vmatpush1.msra.mxu0 0.0
    %3151 = vmatprep.subr.mxu0 0.0
    %3152 = vmatpush1.msra.mxu0 0.0
    %3153 = vmatprep.subr.mxu0 0.0
    %3154 = vmatpush1.msra.mxu0 0.0
    %3155 = vmatprep.subr.mxu0 0.0
    %3156 = vmatpush1.msra.mxu0 0.0
    %3157 = vmatprep.subr.mxu0 0.0
    %3158 = vmatpush1.msra.mxu0 0.0
    %3159 = vmatprep.subr.mxu0 0.0
    %3160 = vmatpush1.msra.mxu0 0.0
    %3161 = vmatprep.subr.mxu0 0.0
    %3162 = vmatpush1.msra.mxu0 0.0
    %3163 = vmatprep.subr.mxu0 0.0
    %3164 = vmatpush1.msra.mxu0 0.0
    %3165 = vmatprep.subr.mxu0 0.0
    %3166 = vmatpush1.msra.mxu0 0.0
    %3167 = vmatprep.subr.mxu0 0.0
    %3168 = vmatpush1.msra.mxu0 0.0
    %3169 = vmatprep.subr.mxu0 0.0
    %3170 = vmatpush1.msra.mxu0 0.0
    %3171 = vmatprep.subr.mxu0 0.0
    %3172 = vmatpush1.msra.mxu0 0.0
    %3173 = vmatprep.mubr.f32.mxu0 0.0
    %3174 = vmatmul.mubr.f32.gmra.mrb[0].mxu0 %v3032
    %v3175 = vpop.f32.mrb[0].mxu0
    %v3176 = vadd.f32 0.0, %v3175
    %v3177 = vpop.f32.mrb[0].mxu0
    %v3178 = vadd.f32 0.0, %v3177
    %3179 = vdwg.mxu0
    %v3180 = vadd.f32 %v3034, %v3105
    %v3181 = vadd.f32 %v3035, %v3107
    %v3182 = vadd.f32 %v3036, %v3176
    %v3183 = vadd.f32 %v3037, %v3178
    %v3184 = vxor.u32 %v3180, 2147483648
    %v3185 = vmul.f32 %v3184, 1.442695
    %v3186 = vpow.pop %v3185
    %v3187 = vadd.f32 %v3186, 1.0
    %v3188 = vrcp.pop %v3187
    %v3189 = vmul.f32 1.0, %v3188
    %v3190 = vxor.u32 %v3181, 2147483648
    %v3191 = vmul.f32 %v3190, 1.442695
    %v3192 = vpow.pop %v3191
    %v3193 = vadd.f32 %v3192, 1.0
    %v3194 = vrcp.pop %v3193
    %v3195 = vmul.f32 1.0, %v3194
    %v3196 = vtanh.pop %v3182
    %v3197 = vxor.u32 %v3183, 2147483648
    %v3198 = vmul.f32 %v3197, 1.442695
    %v3199 = vpow.pop %v3198
    %v3200 = vadd.f32 %v3199, 1.0
    %v3201 = vrcp.pop %v3200
    %v3202 = vmul.f32 1.0, %v3201
    %v3203 = vmul.f32 %v3195, %v3030
    %v3204 = vmul.f32 %v3189, %v3196
    %v3205 = vadd.f32 %v3203, %v3204
    %v3206 = vtanh.pop %v3205
    %v3207 = vmul.f32 %v3202, %v3206
    %3208 = vst [vmem:[#allocation2 + $0x18] sm:$0xff] %v3207
    %v3209 = vld [vmem:[#allocation3 + $0x80] sm:$0xff]
    %v3210 = vld [vmem:[#allocation3 + $0x88] sm:$0xff]
    %v3211 = vld [vmem:[#allocation3 + $0x90] sm:$0xff]
    %v3212 = vld [vmem:[#allocation3 + $0x98] sm:$0xff]
    %3213 = vmatprep.subr.mxu0 %v2442
    %3214 = vmatpush1.msra.mxu0 %v2441
    %3215 = vmatprep.subr.mxu0 %v2446
    %3216 = vmatpush1.msra.mxu0 %v2445
    %3217 = vmatprep.subr.mxu0 %v2450
    %3218 = vmatpush1.msra.mxu0 %v2449
    %3219 = vmatprep.subr.mxu0 %v2454
    %3220 = vmatpush1.msra.mxu0 %v2453
    %3221 = vmatprep.subr.mxu0 %v2458
    %3222 = vmatpush1.msra.mxu0 %v2457
    %3223 = vmatprep.subr.mxu0 %v2462
    %3224 = vmatpush1.msra.mxu0 %v2461
    %3225 = vmatprep.subr.mxu0 %v2466
    %3226 = vmatpush1.msra.mxu0 %v2465
    %3227 = vmatprep.subr.mxu0 %v2470
    %3228 = vmatpush1.msra.mxu0 %v2469
    %3229 = vmatprep.subr.mxu0 %v2474
    %3230 = vmatpush1.msra.mxu0 %v2473
    %3231 = vmatprep.subr.mxu0 %v2478
    %3232 = vmatpush1.msra.mxu0 %v2477
    %3233 = vmatprep.subr.mxu0 %v2482
    %3234 = vmatpush1.msra.mxu0 %v2481
    %3235 = vmatprep.subr.mxu0 %v2486
    %3236 = vmatpush1.msra.mxu0 %v2485
    %3237 = vmatprep.subr.mxu0 %v2490
    %3238 = vmatpush1.msra.mxu0 %v2489
    %3239 = vmatprep.subr.mxu0 %v2494
    %3240 = vmatpush1.msra.mxu0 %v2493
    %3241 = vmatprep.subr.mxu0 %v2498
    %3242 = vmatpush1.msra.mxu0 %v2497
    %3243 = vmatprep.subr.mxu0 %v2502
    %3244 = vmatpush1.msra.mxu0 %v2501
    %3245 = vmatprep.subr.mxu0 0.0
    %3246 = vmatpush1.msra.mxu0 0.0
    %3247 = vmatprep.subr.mxu0 0.0
    %3248 = vmatpush1.msra.mxu0 0.0
    %3249 = vmatprep.subr.mxu0 0.0
    %3250 = vmatpush1.msra.mxu0 0.0
    %3251 = vmatprep.subr.mxu0 0.0
    %3252 = vmatpush1.msra.mxu0 0.0
    %3253 = vmatprep.subr.mxu0 0.0
    %3254 = vmatpush1.msra.mxu0 0.0
    %3255 = vmatprep.subr.mxu0 0.0
    %3256 = vmatpush1.msra.mxu0 0.0
    %3257 = vmatprep.subr.mxu0 0.0
    %3258 = vmatpush1.msra.mxu0 0.0
    %3259 = vmatprep.subr.mxu0 0.0
    %3260 = vmatpush1.msra.mxu0 0.0
    %3261 = vmatprep.subr.mxu0 0.0
    %3262 = vmatpush1.msra.mxu0 0.0
    %3263 = vmatprep.subr.mxu0 0.0
    %3264 = vmatpush1.msra.mxu0 0.0
    %3265 = vmatprep.subr.mxu0 0.0
    %3266 = vmatpush1.msra.mxu0 0.0
    %3267 = vmatprep.subr.mxu0 0.0
    %3268 = vmatpush1.msra.mxu0 0.0
    %3269 = vmatprep.subr.mxu0 0.0
    %3270 = vmatpush1.msra.mxu0 0.0
    %3271 = vmatprep.subr.mxu0 0.0
    %3272 = vmatpush1.msra.mxu0 0.0
    %3273 = vmatprep.subr.mxu0 0.0
    %3274 = vmatpush1.msra.mxu0 0.0
    %3275 = vmatprep.subr.mxu0 0.0
    %3276 = vmatpush1.msra.mxu0 0.0
    %3277 = vmatprep.mubr.f32.mxu0 0.0
    %3278 = vmatmul.mubr.f32.gmra.mrb[0].mxu0 %v3207
    %v3279 = vpop.f32.mrb[0].mxu0
    %v3280 = vadd.f32 0.0, %v3279
    %v3281 = vpop.f32.mrb[0].mxu0
    %v3282 = vadd.f32 0.0, %v3281
    %3283 = vdwg.mxu0
    %3284 = vmatprep.subr.mxu0 %v2444
    %3285 = vmatpush1.msra.mxu0 %v2443
    %3286 = vmatprep.subr.mxu0 %v2448
    %3287 = vmatpush1.msra.mxu0 %v2447
    %3288 = vmatprep.subr.mxu0 %v2452
    %3289 = vmatpush1.msra.mxu0 %v2451
    %3290 = vmatprep.subr.mxu0 %v2456
    %3291 = vmatpush1.msra.mxu0 %v2455
    %3292 = vmatprep.subr.mxu0 %v2460
    %3293 = vmatpush1.msra.mxu0 %v2459
    %3294 = vmatprep.subr.mxu0 %v2464
    %3295 = vmatpush1.msra.mxu0 %v2463
    %3296 = vmatprep.subr.mxu0 %v2468
    %3297 = vmatpush1.msra.mxu0 %v2467
    %3298 = vmatprep.subr.mxu0 %v2472
    %3299 = vmatpush1.msra.mxu0 %v2471
    %3300 = vmatprep.subr.mxu0 %v2476
    %3301 = vmatpush1.msra.mxu0 %v2475
    %3302 = vmatprep.subr.mxu0 %v2480
    %3303 = vmatpush1.msra.mxu0 %v2479
    %3304 = vmatprep.subr.mxu0 %v2484
    %3305 = vmatpush1.msra.mxu0 %v2483
    %3306 = vmatprep.subr.mxu0 %v2488
    %3307 = vmatpush1.msra.mxu0 %v2487
    %3308 = vmatprep.subr.mxu0 %v2492
    %3309 = vmatpush1.msra.mxu0 %v2491
    %3310 = vmatprep.subr.mxu0 %v2496
    %3311 = vmatpush1.msra.mxu0 %v2495
    %3312 = vmatprep.subr.mxu0 %v2500
    %3313 = vmatpush1.msra.mxu0 %v2499
    %3314 = vmatprep.subr.mxu0 %v2504
    %3315 = vmatpush1.msra.mxu0 %v2503
    %3316 = vmatprep.subr.mxu0 0.0
    %3317 = vmatpush1.msra.mxu0 0.0
    %3318 = vmatprep.subr.mxu0 0.0
    %3319 = vmatpush1.msra.mxu0 0.0
    %3320 = vmatprep.subr.mxu0 0.0
    %3321 = vmatpush1.msra.mxu0 0.0
    %3322 = vmatprep.subr.mxu0 0.0
    %3323 = vmatpush1.msra.mxu0 0.0
    %3324 = vmatprep.subr.mxu0 0.0
    %3325 = vmatpush1.msra.mxu0 0.0
    %3326 = vmatprep.subr.mxu0 0.0
    %3327 = vmatpush1.msra.mxu0 0.0
    %3328 = vmatprep.subr.mxu0 0.0
    %3329 = vmatpush1.msra.mxu0 0.0
    %3330 = vmatprep.subr.mxu0 0.0
    %3331 = vmatpush1.msra.mxu0 0.0
    %3332 = vmatprep.subr.mxu0 0.0
    %3333 = vmatpush1.msra.mxu0 0.0
    %3334 = vmatprep.subr.mxu0 0.0
    %3335 = vmatpush1.msra.mxu0 0.0
    %3336 = vmatprep.subr.mxu0 0.0
    %3337 = vmatpush1.msra.mxu0 0.0
    %3338 = vmatprep.subr.mxu0 0.0
    %3339 = vmatpush1.msra.mxu0 0.0
    %3340 = vmatprep.subr.mxu0 0.0
    %3341 = vmatpush1.msra.mxu0 0.0
    %3342 = vmatprep.subr.mxu0 0.0
    %3343 = vmatpush1.msra.mxu0 0.0
    %3344 = vmatprep.subr.mxu0 0.0
    %3345 = vmatpush1.msra.mxu0 0.0
    %3346 = vmatprep.subr.mxu0 0.0
    %3347 = vmatpush1.msra.mxu0 0.0
    %3348 = vmatprep.mubr.f32.mxu0 0.0
    %3349 = vmatmul.mubr.f32.gmra.mrb[0].mxu0 %v3207
    %v3350 = vpop.f32.mrb[0].mxu0
    %v3351 = vadd.f32 0.0, %v3350
    %v3352 = vpop.f32.mrb[0].mxu0
    %v3353 = vadd.f32 0.0, %v3352
    %3354 = vdwg.mxu0
    %v3355 = vadd.f32 %v3209, %v3280
    %v3356 = vadd.f32 %v3210, %v3282
    %v3357 = vadd.f32 %v3211, %v3351
    %v3358 = vadd.f32 %v3212, %v3353
    %v3359 = vxor.u32 %v3355, 2147483648
    %v3360 = vmul.f32 %v3359, 1.442695
    %v3361 = vpow.pop %v3360
    %v3362 = vadd.f32 %v3361, 1.0
    %v3363 = vrcp.pop %v3362
    %v3364 = vmul.f32 1.0, %v3363
    %v3365 = vxor.u32 %v3356, 2147483648
    %v3366 = vmul.f32 %v3365, 1.442695
    %v3367 = vpow.pop %v3366
    %v3368 = vadd.f32 %v3367, 1.0
    %v3369 = vrcp.pop %v3368
    %v3370 = vmul.f32 1.0, %v3369
    %v3371 = vtanh.pop %v3357
    %v3372 = vxor.u32 %v3358, 2147483648
    %v3373 = vmul.f32 %v3372, 1.442695
    %v3374 = vpow.pop %v3373
    %v3375 = vadd.f32 %v3374, 1.0
    %v3376 = vrcp.pop %v3375
    %v3377 = vmul.f32 1.0, %v3376
    %v3378 = vmul.f32 %v3370, %v3205
    %v3379 = vmul.f32 %v3364, %v3371
    %v3380 = vadd.f32 %v3378, %v3379
    %v3381 = vtanh.pop %v3380
    %v3382 = vmul.f32 %v3377, %v3381
    %3383 = vst [vmem:[#allocation2 + $0x20] sm:$0xff] %v3382
    %v3384 = vld [vmem:[#allocation3 + $0xa0] sm:$0xff]
    %v3385 = vld [vmem:[#allocation3 + $0xa8] sm:$0xff]
    %v3386 = vld [vmem:[#allocation3 + $0xb0] sm:$0xff]
    %v3387 = vld [vmem:[#allocation3 + $0xb8] sm:$0xff]
    %3388 = vmatprep.subr.mxu0 %v2442
    %3389 = vmatpush1.msra.mxu0 %v2441
    %3390 = vmatprep.subr.mxu0 %v2446
    %3391 = vmatpush1.msra.mxu0 %v2445
    %3392 = vmatprep.subr.mxu0 %v2450
    %3393 = vmatpush1.msra.mxu0 %v2449
    %3394 = vmatprep.subr.mxu0 %v2454
    %3395 = vmatpush1.msra.mxu0 %v2453
    %3396 = vmatprep.subr.mxu0 %v2458
    %3397 = vmatpush1.msra.mxu0 %v2457
    %3398 = vmatprep.subr.mxu0 %v2462
    %3399 = vmatpush1.msra.mxu0 %v2461
    %3400 = vmatprep.subr.mxu0 %v2466
    %3401 = vmatpush1.msra.mxu0 %v2465
    %3402 = vmatprep.subr.mxu0 %v2470
    %3403 = vmatpush1.msra.mxu0 %v2469
    %3404 = vmatprep.subr.mxu0 %v2474
    %3405 = vmatpush1.msra.mxu0 %v2473
    %3406 = vmatprep.subr.mxu0 %v2478
    %3407 = vmatpush1.msra.mxu0 %v2477
    %3408 = vmatprep.subr.mxu0 %v2482
    %3409 = vmatpush1.msra.mxu0 %v2481
    %3410 = vmatprep.subr.mxu0 %v2486
    %3411 = vmatpush1.msra.mxu0 %v2485
    %3412 = vmatprep.subr.mxu0 %v2490
    %3413 = vmatpush1.msra.mxu0 %v2489
    %3414 = vmatprep.subr.mxu0 %v2494
    %3415 = vmatpush1.msra.mxu0 %v2493
    %3416 = vmatprep.subr.mxu0 %v2498
    %3417 = vmatpush1.msra.mxu0 %v2497
    %3418 = vmatprep.subr.mxu0 %v2502
    %3419 = vmatpush1.msra.mxu0 %v2501
    %3420 = vmatprep.subr.mxu0 0.0
    %3421 = vmatpush1.msra.mxu0 0.0
    %3422 = vmatprep.subr.mxu0 0.0
    %3423 = vmatpush1.msra.mxu0 0.0
    %3424 = vmatprep.subr.mxu0 0.0
    %3425 = vmatpush1.msra.mxu0 0.0
    %3426 = vmatprep.subr.mxu0 0.0
    %3427 = vmatpush1.msra.mxu0 0.0
    %3428 = vmatprep.subr.mxu0 0.0
    %3429 = vmatpush1.msra.mxu0 0.0
    %3430 = vmatprep.subr.mxu0 0.0
    %3431 = vmatpush1.msra.mxu0 0.0
    %3432 = vmatprep.subr.mxu0 0.0
    %3433 = vmatpush1.msra.mxu0 0.0
    %3434 = vmatprep.subr.mxu0 0.0
    %3435 = vmatpush1.msra.mxu0 0.0
    %3436 = vmatprep.subr.mxu0 0.0
    %3437 = vmatpush1.msra.mxu0 0.0
    %3438 = vmatprep.subr.mxu0 0.0
    %3439 = vmatpush1.msra.mxu0 0.0
    %3440 = vmatprep.subr.mxu0 0.0
    %3441 = vmatpush1.msra.mxu0 0.0
    %3442 = vmatprep.subr.mxu0 0.0
    %3443 = vmatpush1.msra.mxu0 0.0
    %3444 = vmatprep.subr.mxu0 0.0
    %3445 = vmatpush1.msra.mxu0 0.0
    %3446 = vmatprep.subr.mxu0 0.0
    %3447 = vmatpush1.msra.mxu0 0.0
    %3448 = vmatprep.subr.mxu0 0.0
    %3449 = vmatpush1.msra.mxu0 0.0
    %3450 = vmatprep.subr.mxu0 0.0
    %3451 = vmatpush1.msra.mxu0 0.0
    %3452 = vmatprep.mubr.f32.mxu0 0.0
    %3453 = vmatmul.mubr.f32.gmra.mrb[0].mxu0 %v3382
    %v3454 = vpop.f32.mrb[0].mxu0
    %v3455 = vadd.f32 0.0, %v3454
    %v3456 = vpop.f32.mrb[0].mxu0
    %v3457 = vadd.f32 0.0, %v3456
    %3458 = vdwg.mxu0
    %3459 = vmatprep.subr.mxu0 %v2444
    %3460 = vmatpush1.msra.mxu0 %v2443
    %3461 = vmatprep.subr.mxu0 %v2448
    %3462 = vmatpush1.msra.mxu0 %v2447
    %3463 = vmatprep.subr.mxu0 %v2452
    %3464 = vmatpush1.msra.mxu0 %v2451
    %3465 = vmatprep.subr.mxu0 %v2456
    %3466 = vmatpush1.msra.mxu0 %v2455
    %3467 = vmatprep.subr.mxu0 %v2460
    %3468 = vmatpush1.msra.mxu0 %v2459
    %3469 = vmatprep.subr.mxu0 %v2464
    %3470 = vmatpush1.msra.mxu0 %v2463
    %3471 = vmatprep.subr.mxu0 %v2468
    %3472 = vmatpush1.msra.mxu0 %v2467
    %3473 = vmatprep.subr.mxu0 %v2472
    %3474 = vmatpush1.msra.mxu0 %v2471
    %3475 = vmatprep.subr.mxu0 %v2476
    %3476 = vmatpush1.msra.mxu0 %v2475
    %3477 = vmatprep.subr.mxu0 %v2480
    %3478 = vmatpush1.msra.mxu0 %v2479
    %3479 = vmatprep.subr.mxu0 %v2484
    %3480 = vmatpush1.msra.mxu0 %v2483
    %3481 = vmatprep.subr.mxu0 %v2488
    %3482 = vmatpush1.msra.mxu0 %v2487
    %3483 = vmatprep.subr.mxu0 %v2492
    %3484 = vmatpush1.msra.mxu0 %v2491
    %3485 = vmatprep.subr.mxu0 %v2496
    %3486 = vmatpush1.msra.mxu0 %v2495
    %3487 = vmatprep.subr.mxu0 %v2500
    %3488 = vmatpush1.msra.mxu0 %v2499
    %3489 = vmatprep.subr.mxu0 %v2504
    %3490 = vmatpush1.msra.mxu0 %v2503
    %3491 = vmatprep.subr.mxu0 0.0
    %3492 = vmatpush1.msra.mxu0 0.0
    %3493 = vmatprep.subr.mxu0 0.0
    %3494 = vmatpush1.msra.mxu0 0.0
    %3495 = vmatprep.subr.mxu0 0.0
    %3496 = vmatpush1.msra.mxu0 0.0
    %3497 = vmatprep.subr.mxu0 0.0
    %3498 = vmatpush1.msra.mxu0 0.0
    %3499 = vmatprep.subr.mxu0 0.0
    %3500 = vmatpush1.msra.mxu0 0.0
    %3501 = vmatprep.subr.mxu0 0.0
    %3502 = vmatpush1.msra.mxu0 0.0
    %3503 = vmatprep.subr.mxu0 0.0
    %3504 = vmatpush1.msra.mxu0 0.0
    %3505 = vmatprep.subr.mxu0 0.0
    %3506 = vmatpush1.msra.mxu0 0.0
    %3507 = vmatprep.subr.mxu0 0.0
    %3508 = vmatpush1.msra.mxu0 0.0
    %3509 = vmatprep.subr.mxu0 0.0
    %3510 = vmatpush1.msra.mxu0 0.0
    %3511 = vmatprep.subr.mxu0 0.0
    %3512 = vmatpush1.msra.mxu0 0.0
    %3513 = vmatprep.subr.mxu0 0.0
    %3514 = vmatpush1.msra.mxu0 0.0
    %3515 = vmatprep.subr.mxu0 0.0
    %3516 = vmatpush1.msra.mxu0 0.0
    %3517 = vmatprep.subr.mxu0 0.0
    %3518 = vmatpush1.msra.mxu0 0.0
    %3519 = vmatprep.subr.mxu0 0.0
    %3520 = vmatpush1.msra.mxu0 0.0
    %3521 = vmatprep.subr.mxu0 0.0
    %3522 = vmatpush1.msra.mxu0 0.0
    %3523 = vmatprep.mubr.f32.mxu0 0.0
    %3524 = vmatmul.mubr.f32.gmra.mrb[0].mxu0 %v3382
    %v3525 = vpop.f32.mrb[0].mxu0
    %v3526 = vadd.f32 0.0, %v3525
    %v3527 = vpop.f32.mrb[0].mxu0
    %v3528 = vadd.f32 0.0, %v3527
    %3529 = vdwg.mxu0
    %v3530 = vadd.f32 %v3384, %v3455
    %v3531 = vadd.f32 %v3385, %v3457
    %v3532 = vadd.f32 %v3386, %v3526
    %v3533 = vadd.f32 %v3387, %v3528
    %v3534 = vxor.u32 %v3530, 2147483648
    %v3535 = vmul.f32 %v3534, 1.442695
    %v3536 = vpow.pop %v3535
    %v3537 = vadd.f32 %v3536, 1.0
    %v3538 = vrcp.pop %v3537
    %v3539 = vmul.f32 1.0, %v3538
    %v3540 = vxor.u32 %v3531, 2147483648
    %v3541 = vmul.f32 %v3540, 1.442695
    %v3542 = vpow.pop %v3541
    %v3543 = vadd.f32 %v3542, 1.0
    %v3544 = vrcp.pop %v3543
    %v3545 = vmul.f32 1.0, %v3544
    %v3546 = vtanh.pop %v3532
    %v3547 = vxor.u32 %v3533, 2147483648
    %v3548 = vmul.f32 %v3547, 1.442695
    %v3549 = vpow.pop %v3548
    %v3550 = vadd.f32 %v3549, 1.0
    %v3551 = vrcp.pop %v3550
    %v3552 = vmul.f32 1.0, %v3551
    %v3553 = vmul.f32 %v3545, %v3380
    %v3554 = vmul.f32 %v3539, %v3546
    %v3555 = vadd.f32 %v3553, %v3554
    %v3556 = vtanh.pop %v3555
    %v3557 = vmul.f32 %v3552, %v3556
    %3558 = vst [vmem:[#allocation2 + $0x28] sm:$0xff] %v3557
    %v3559 = vld [vmem:[#allocation3 + $0xc0] sm:$0xff]
    %v3560 = vld [vmem:[#allocation3 + $0xc8] sm:$0xff]
    %v3561 = vld [vmem:[#allocation3 + $0xd0] sm:$0xff]
    %v3562 = vld [vmem:[#allocation3 + $0xd8] sm:$0xff]
    %3563 = vmatprep.subr.mxu0 %v2442
    %3564 = vmatpush1.msra.mxu0 %v2441
    %3565 = vmatprep.subr.mxu0 %v2446
    %3566 = vmatpush1.msra.mxu0 %v2445
    %3567 = vmatprep.subr.mxu0 %v2450
    %3568 = vmatpush1.msra.mxu0 %v2449
    %3569 = vmatprep.subr.mxu0 %v2454
    %3570 = vmatpush1.msra.mxu0 %v2453
    %3571 = vmatprep.subr.mxu0 %v2458
    %3572 = vmatpush1.msra.mxu0 %v2457
    %3573 = vmatprep.subr.mxu0 %v2462
    %3574 = vmatpush1.msra.mxu0 %v2461
    %3575 = vmatprep.subr.mxu0 %v2466
    %3576 = vmatpush1.msra.mxu0 %v2465
    %3577 = vmatprep.subr.mxu0 %v2470
    %3578 = vmatpush1.msra.mxu0 %v2469
    %3579 = vmatprep.subr.mxu0 %v2474
    %3580 = vmatpush1.msra.mxu0 %v2473
    %3581 = vmatprep.subr.mxu0 %v2478
    %3582 = vmatpush1.msra.mxu0 %v2477
    %3583 = vmatprep.subr.mxu0 %v2482
    %3584 = vmatpush1.msra.mxu0 %v2481
    %3585 = vmatprep.subr.mxu0 %v2486
    %3586 = vmatpush1.msra.mxu0 %v2485
    %3587 = vmatprep.subr.mxu0 %v2490
    %3588 = vmatpush1.msra.mxu0 %v2489
    %3589 = vmatprep.subr.mxu0 %v2494
    %3590 = vmatpush1.msra.mxu0 %v2493
    %3591 = vmatprep.subr.mxu0 %v2498
    %3592 = vmatpush1.msra.mxu0 %v2497
    %3593 = vmatprep.subr.mxu0 %v2502
    %3594 = vmatpush1.msra.mxu0 %v2501
    %3595 = vmatprep.subr.mxu0 0.0
    %3596 = vmatpush1.msra.mxu0 0.0
    %3597 = vmatprep.subr.mxu0 0.0
    %3598 = vmatpush1.msra.mxu0 0.0
    %3599 = vmatprep.subr.mxu0 0.0
    %3600 = vmatpush1.msra.mxu0 0.0
    %3601 = vmatprep.subr.mxu0 0.0
    %3602 = vmatpush1.msra.mxu0 0.0
    %3603 = vmatprep.subr.mxu0 0.0
    %3604 = vmatpush1.msra.mxu0 0.0
    %3605 = vmatprep.subr.mxu0 0.0
    %3606 = vmatpush1.msra.mxu0 0.0
    %3607 = vmatprep.subr.mxu0 0.0
    %3608 = vmatpush1.msra.mxu0 0.0
    %3609 = vmatprep.subr.mxu0 0.0
    %3610 = vmatpush1.msra.mxu0 0.0
    %3611 = vmatprep.subr.mxu0 0.0
    %3612 = vmatpush1.msra.mxu0 0.0
    %3613 = vmatprep.subr.mxu0 0.0
    %3614 = vmatpush1.msra.mxu0 0.0
    %3615 = vmatprep.subr.mxu0 0.0
    %3616 = vmatpush1.msra.mxu0 0.0
    %3617 = vmatprep.subr.mxu0 0.0
    %3618 = vmatpush1.msra.mxu0 0.0
    %3619 = vmatprep.subr.mxu0 0.0
    %3620 = vmatpush1.msra.mxu0 0.0
    %3621 = vmatprep.subr.mxu0 0.0
    %3622 = vmatpush1.msra.mxu0 0.0
    %3623 = vmatprep.subr.mxu0 0.0
    %3624 = vmatpush1.msra.mxu0 0.0
    %3625 = vmatprep.subr.mxu0 0.0
    %3626 = vmatpush1.msra.mxu0 0.0
    %3627 = vmatprep.mubr.f32.mxu0 0.0
    %3628 = vmatmul.mubr.f32.gmra.mrb[0].mxu0 %v3557
    %v3629 = vpop.f32.mrb[0].mxu0
    %v3630 = vadd.f32 0.0, %v3629
    %v3631 = vpop.f32.mrb[0].mxu0
    %v3632 = vadd.f32 0.0, %v3631
    %3633 = vdwg.mxu0
    %3634 = vmatprep.subr.mxu0 %v2444
    %3635 = vmatpush1.msra.mxu0 %v2443
    %3636 = vmatprep.subr.mxu0 %v2448
    %3637 = vmatpush1.msra.mxu0 %v2447
    %3638 = vmatprep.subr.mxu0 %v2452
    %3639 = vmatpush1.msra.mxu0 %v2451
    %3640 = vmatprep.subr.mxu0 %v2456
    %3641 = vmatpush1.msra.mxu0 %v2455
    %3642 = vmatprep.subr.mxu0 %v2460
    %3643 = vmatpush1.msra.mxu0 %v2459
    %3644 = vmatprep.subr.mxu0 %v2464
    %3645 = vmatpush1.msra.mxu0 %v2463
    %3646 = vmatprep.subr.mxu0 %v2468
    %3647 = vmatpush1.msra.mxu0 %v2467
    %3648 = vmatprep.subr.mxu0 %v2472
    %3649 = vmatpush1.msra.mxu0 %v2471
    %3650 = vmatprep.subr.mxu0 %v2476
    %3651 = vmatpush1.msra.mxu0 %v2475
    %3652 = vmatprep.subr.mxu0 %v2480
    %3653 = vmatpush1.msra.mxu0 %v2479
    %3654 = vmatprep.subr.mxu0 %v2484
    %3655 = vmatpush1.msra.mxu0 %v2483
    %3656 = vmatprep.subr.mxu0 %v2488
    %3657 = vmatpush1.msra.mxu0 %v2487
    %3658 = vmatprep.subr.mxu0 %v2492
    %3659 = vmatpush1.msra.mxu0 %v2491
    %3660 = vmatprep.subr.mxu0 %v2496
    %3661 = vmatpush1.msra.mxu0 %v2495
    %3662 = vmatprep.subr.mxu0 %v2500
    %3663 = vmatpush1.msra.mxu0 %v2499
    %3664 = vmatprep.subr.mxu0 %v2504
    %3665 = vmatpush1.msra.mxu0 %v2503
    %3666 = vmatprep.subr.mxu0 0.0
    %3667 = vmatpush1.msra.mxu0 0.0
    %3668 = vmatprep.subr.mxu0 0.0
    %3669 = vmatpush1.msra.mxu0 0.0
    %3670 = vmatprep.subr.mxu0 0.0
    %3671 = vmatpush1.msra.mxu0 0.0
    %3672 = vmatprep.subr.mxu0 0.0
    %3673 = vmatpush1.msra.mxu0 0.0
    %3674 = vmatprep.subr.mxu0 0.0
    %3675 = vmatpush1.msra.mxu0 0.0
    %3676 = vmatprep.subr.mxu0 0.0
    %3677 = vmatpush1.msra.mxu0 0.0
    %3678 = vmatprep.subr.mxu0 0.0
    %3679 = vmatpush1.msra.mxu0 0.0
    %3680 = vmatprep.subr.mxu0 0.0
    %3681 = vmatpush1.msra.mxu0 0.0
    %3682 = vmatprep.subr.mxu0 0.0
    %3683 = vmatpush1.msra.mxu0 0.0
    %3684 = vmatprep.subr.mxu0 0.0
    %3685 = vmatpush1.msra.mxu0 0.0
    %3686 = vmatprep.subr.mxu0 0.0
    %3687 = vmatpush1.msra.mxu0 0.0
    %3688 = vmatprep.subr.mxu0 0.0
    %3689 = vmatpush1.msra.mxu0 0.0
    %3690 = vmatprep.subr.mxu0 0.0
    %3691 = vmatpush1.msra.mxu0 0.0
    %3692 = vmatprep.subr.mxu0 0.0
    %3693 = vmatpush1.msra.mxu0 0.0
    %3694 = vmatprep.subr.mxu0 0.0
    %3695 = vmatpush1.msra.mxu0 0.0
    %3696 = vmatprep.subr.mxu0 0.0
    %3697 = vmatpush1.msra.mxu0 0.0
    %3698 = vmatprep.mubr.f32.mxu0 0.0
    %3699 = vmatmul.mubr.f32.gmra.mrb[0].mxu0 %v3557
    %v3700 = vpop.f32.mrb[0].mxu0
    %v3701 = vadd.f32 0.0, %v3700
    %v3702 = vpop.f32.mrb[0].mxu0
    %v3703 = vadd.f32 0.0, %v3702
    %3704 = vdwg.mxu0
    %v3705 = vadd.f32 %v3559, %v3630
    %v3706 = vadd.f32 %v3560, %v3632
    %v3707 = vadd.f32 %v3561, %v3701
    %v3708 = vadd.f32 %v3562, %v3703
    %v3709 = vxor.u32 %v3705, 2147483648
    %v3710 = vmul.f32 %v3709, 1.442695
    %v3711 = vpow.pop %v3710
    %v3712 = vadd.f32 %v3711, 1.0
    %v3713 = vrcp.pop %v3712
    %v3714 = vmul.f32 1.0, %v3713
    %v3715 = vxor.u32 %v3706, 2147483648
    %v3716 = vmul.f32 %v3715, 1.442695
    %v3717 = vpow.pop %v3716
    %v3718 = vadd.f32 %v3717, 1.0
    %v3719 = vrcp.pop %v3718
    %v3720 = vmul.f32 1.0, %v3719
    %v3721 = vtanh.pop %v3707
    %v3722 = vxor.u32 %v3708, 2147483648
    %v3723 = vmul.f32 %v3722, 1.442695
    %v3724 = vpow.pop %v3723
    %v3725 = vadd.f32 %v3724, 1.0
    %v3726 = vrcp.pop %v3725
    %v3727 = vmul.f32 1.0, %v3726
    %v3728 = vmul.f32 %v3720, %v3555
    %v3729 = vmul.f32 %v3714, %v3721
    %v3730 = vadd.f32 %v3728, %v3729
    %v3731 = vtanh.pop %v3730
    %v3732 = vmul.f32 %v3727, %v3731
    %3733 = vst [vmem:[#allocation2 + $0x30] sm:$0xff] %v3732
    %v3734 = vld [vmem:[#allocation3 + $0xe0] sm:$0xff]
    %v3735 = vld [vmem:[#allocation3 + $0xe8] sm:$0xff]
    %v3736 = vld [vmem:[#allocation3 + $0xf0] sm:$0xff]
    %v3737 = vld [vmem:[#allocation3 + $0xf8] sm:$0xff]
    %3738 = vmatprep.subr.mxu0 %v2442
    %3739 = vmatpush1.msra.mxu0 %v2441
    %3740 = vmatprep.subr.mxu0 %v2446
    %3741 = vmatpush1.msra.mxu0 %v2445
    %3742 = vmatprep.subr.mxu0 %v2450
    %3743 = vmatpush1.msra.mxu0 %v2449
    %3744 = vmatprep.subr.mxu0 %v2454
    %3745 = vmatpush1.msra.mxu0 %v2453
    %3746 = vmatprep.subr.mxu0 %v2458
    %3747 = vmatpush1.msra.mxu0 %v2457
    %3748 = vmatprep.subr.mxu0 %v2462
    %3749 = vmatpush1.msra.mxu0 %v2461
    %3750 = vmatprep.subr.mxu0 %v2466
    %3751 = vmatpush1.msra.mxu0 %v2465
    %3752 = vmatprep.subr.mxu0 %v2470
    %3753 = vmatpush1.msra.mxu0 %v2469
    %3754 = vmatprep.subr.mxu0 %v2474
    %3755 = vmatpush1.msra.mxu0 %v2473
    %3756 = vmatprep.subr.mxu0 %v2478
    %3757 = vmatpush1.msra.mxu0 %v2477
    %3758 = vmatprep.subr.mxu0 %v2482
    %3759 = vmatpush1.msra.mxu0 %v2481
    %3760 = vmatprep.subr.mxu0 %v2486
    %3761 = vmatpush1.msra.mxu0 %v2485
    %3762 = vmatprep.subr.mxu0 %v2490
    %3763 = vmatpush1.msra.mxu0 %v2489
    %3764 = vmatprep.subr.mxu0 %v2494
    %3765 = vmatpush1.msra.mxu0 %v2493
    %3766 = vmatprep.subr.mxu0 %v2498
    %3767 = vmatpush1.msra.mxu0 %v2497
    %3768 = vmatprep.subr.mxu0 %v2502
    %3769 = vmatpush1.msra.mxu0 %v2501
    %3770 = vmatprep.subr.mxu0 0.0
    %3771 = vmatpush1.msra.mxu0 0.0
    %3772 = vmatprep.subr.mxu0 0.0
    %3773 = vmatpush1.msra.mxu0 0.0
    %3774 = vmatprep.subr.mxu0 0.0
    %3775 = vmatpush1.msra.mxu0 0.0
    %3776 = vmatprep.subr.mxu0 0.0
    %3777 = vmatpush1.msra.mxu0 0.0
    %3778 = vmatprep.subr.mxu0 0.0
    %3779 = vmatpush1.msra.mxu0 0.0
    %3780 = vmatprep.subr.mxu0 0.0
    %3781 = vmatpush1.msra.mxu0 0.0
    %3782 = vmatprep.subr.mxu0 0.0
    %3783 = vmatpush1.msra.mxu0 0.0
    %3784 = vmatprep.subr.mxu0 0.0
    %3785 = vmatpush1.msra.mxu0 0.0
    %3786 = vmatprep.subr.mxu0 0.0
    %3787 = vmatpush1.msra.mxu0 0.0
    %3788 = vmatprep.subr.mxu0 0.0
    %3789 = vmatpush1.msra.mxu0 0.0
    %3790 = vmatprep.subr.mxu0 0.0
    %3791 = vmatpush1.msra.mxu0 0.0
    %3792 = vmatprep.subr.mxu0 0.0
    %3793 = vmatpush1.msra.mxu0 0.0
    %3794 = vmatprep.subr.mxu0 0.0
    %3795 = vmatpush1.msra.mxu0 0.0
    %3796 = vmatprep.subr.mxu0 0.0
    %3797 = vmatpush1.msra.mxu0 0.0
    %3798 = vmatprep.subr.mxu0 0.0
    %3799 = vmatpush1.msra.mxu0 0.0
    %3800 = vmatprep.subr.mxu0 0.0
    %3801 = vmatpush1.msra.mxu0 0.0
    %3802 = vmatprep.mubr.f32.mxu0 0.0
    %3803 = vmatmul.mubr.f32.gmra.mrb[0].mxu0 %v3732
    %v3804 = vpop.f32.mrb[0].mxu0
    %v3805 = vadd.f32 0.0, %v3804
    %v3806 = vpop.f32.mrb[0].mxu0
    %v3807 = vadd.f32 0.0, %v3806
    %3808 = vdwg.mxu0
    %3809 = vmatprep.subr.mxu0 %v2444
    %3810 = vmatpush1.msra.mxu0 %v2443
    %3811 = vmatprep.subr.mxu0 %v2448
    %3812 = vmatpush1.msra.mxu0 %v2447
    %3813 = vmatprep.subr.mxu0 %v2452
    %3814 = vmatpush1.msra.mxu0 %v2451
    %3815 = vmatprep.subr.mxu0 %v2456
    %3816 = vmatpush1.msra.mxu0 %v2455
    %3817 = vmatprep.subr.mxu0 %v2460
    %3818 = vmatpush1.msra.mxu0 %v2459
    %3819 = vmatprep.subr.mxu0 %v2464
    %3820 = vmatpush1.msra.mxu0 %v2463
    %3821 = vmatprep.subr.mxu0 %v2468
    %3822 = vmatpush1.msra.mxu0 %v2467
    %3823 = vmatprep.subr.mxu0 %v2472
    %3824 = vmatpush1.msra.mxu0 %v2471
    %3825 = vmatprep.subr.mxu0 %v2476
    %3826 = vmatpush1.msra.mxu0 %v2475
    %3827 = vmatprep.subr.mxu0 %v2480
    %3828 = vmatpush1.msra.mxu0 %v2479
    %3829 = vmatprep.subr.mxu0 %v2484
    %3830 = vmatpush1.msra.mxu0 %v2483
    %3831 = vmatprep.subr.mxu0 %v2488
    %3832 = vmatpush1.msra.mxu0 %v2487
    %3833 = vmatprep.subr.mxu0 %v2492
    %3834 = vmatpush1.msra.mxu0 %v2491
    %3835 = vmatprep.subr.mxu0 %v2496
    %3836 = vmatpush1.msra.mxu0 %v2495
    %3837 = vmatprep.subr.mxu0 %v2500
    %3838 = vmatpush1.msra.mxu0 %v2499
    %3839 = vmatprep.subr.mxu0 %v2504
    %3840 = vmatpush1.msra.mxu0 %v2503
    %3841 = vmatprep.subr.mxu0 0.0
    %3842 = vmatpush1.msra.mxu0 0.0
    %3843 = vmatprep.subr.mxu0 0.0
    %3844 = vmatpush1.msra.mxu0 0.0
    %3845 = vmatprep.subr.mxu0 0.0
    %3846 = vmatpush1.msra.mxu0 0.0
    %3847 = vmatprep.subr.mxu0 0.0
    %3848 = vmatpush1.msra.mxu0 0.0
    %3849 = vmatprep.subr.mxu0 0.0
    %3850 = vmatpush1.msra.mxu0 0.0
    %3851 = vmatprep.subr.mxu0 0.0
    %3852 = vmatpush1.msra.mxu0 0.0
    %3853 = vmatprep.subr.mxu0 0.0
    %3854 = vmatpush1.msra.mxu0 0.0
    %3855 = vmatprep.subr.mxu0 0.0
    %3856 = vmatpush1.msra.mxu0 0.0
    %3857 = vmatprep.subr.mxu0 0.0
    %3858 = vmatpush1.msra.mxu0 0.0
    %3859 = vmatprep.subr.mxu0 0.0
    %3860 = vmatpush1.msra.mxu0 0.0
    %3861 = vmatprep.subr.mxu0 0.0
    %3862 = vmatpush1.msra.mxu0 0.0
    %3863 = vmatprep.subr.mxu0 0.0
    %3864 = vmatpush1.msra.mxu0 0.0
    %3865 = vmatprep.subr.mxu0 0.0
    %3866 = vmatpush1.msra.mxu0 0.0
    %3867 = vmatprep.subr.mxu0 0.0
    %3868 = vmatpush1.msra.mxu0 0.0
    %3869 = vmatprep.subr.mxu0 0.0
    %3870 = vmatpush1.msra.mxu0 0.0
    %3871 = vmatprep.subr.mxu0 0.0
    %3872 = vmatpush1.msra.mxu0 0.0
    %3873 = vmatprep.mubr.f32.mxu0 0.0
    %3874 = vmatmul.mubr.f32.gmra.mrb[0].mxu0 %v3732
    %v3875 = vpop.f32.mrb[0].mxu0
    %v3876 = vadd.f32 0.0, %v3875
    %v3877 = vpop.f32.mrb[0].mxu0
    %v3878 = vadd.f32 0.0, %v3877
    %3879 = vdwg.mxu0
    %v3880 = vadd.f32 %v3734, %v3805
    %v3881 = vadd.f32 %v3735, %v3807
    %v3882 = vadd.f32 %v3736, %v3876
    %v3883 = vadd.f32 %v3737, %v3878
    %v3884 = vxor.u32 %v3880, 2147483648
    %v3885 = vmul.f32 %v3884, 1.442695
    %v3886 = vpow.pop %v3885
    %v3887 = vadd.f32 %v3886, 1.0
    %v3888 = vrcp.pop %v3887
    %v3889 = vmul.f32 1.0, %v3888
    %v3890 = vxor.u32 %v3881, 2147483648
    %v3891 = vmul.f32 %v3890, 1.442695
    %v3892 = vpow.pop %v3891
    %v3893 = vadd.f32 %v3892, 1.0
    %v3894 = vrcp.pop %v3893
    %v3895 = vmul.f32 1.0, %v3894
    %v3896 = vtanh.pop %v3882
    %v3897 = vxor.u32 %v3883, 2147483648
    %v3898 = vmul.f32 %v3897, 1.442695
    %v3899 = vpow.pop %v3898
    %v3900 = vadd.f32 %v3899, 1.0
    %v3901 = vrcp.pop %v3900
    %v3902 = vmul.f32 1.0, %v3901
    %v3903 = vmul.f32 %v3895, %v3730
    %v3904 = vmul.f32 %v3889, %v3896
    %v3905 = vadd.f32 %v3903, %v3904
    %v3906 = vtanh.pop %v3905
    %v3907 = vmul.f32 %v3902, %v3906
    %3908 = vst [vmem:[#allocation2 + $0x38] sm:$0xff] %v3907
    %s3909 = scalar_lea.vmem [#allocation16], 8
    %3910 = vst [vmem:[%s3909] sm:$0xff] %v3907
    %s3911 = scalar_lea.vmem [#allocation18], 8
    %3912 = vst [vmem:[%s3911] sm:$0xff] %v3905
    %v3913 = vld [vmem:[#allocation2] sm:$0xff]
    %v3914 = vld [vmem:[#allocation2 + $0x8] sm:$0xff]
    %v3915 = vld [vmem:[#allocation2 + $0x10] sm:$0xff]
    %v3916 = vld [vmem:[#allocation2 + $0x18] sm:$0xff]
    %v3917 = vld [vmem:[#allocation2 + $0x20] sm:$0xff]
    %v3918 = vld [vmem:[#allocation2 + $0x28] sm:$0xff]
    %v3919 = vld [vmem:[#allocation2 + $0x30] sm:$0xff]
    %v3920 = vld [vmem:[#allocation2 + $0x38] sm:$0xff]
    %v3921 = vld [vmem:[#allocation13] sm:$0xff]
    %v3922 = vld [vmem:[#allocation13 + $0x8] sm:$0xff]
    %v3923 = vld [vmem:[#allocation13 + $0x10] sm:$0xff]
    %v3924 = vld [vmem:[#allocation13 + $0x18] sm:$0xff]
    %v3925 = vld [vmem:[#allocation13 + $0x20] sm:$0xff]
    %v3926 = vld [vmem:[#allocation13 + $0x28] sm:$0xff]
    %v3927 = vld [vmem:[#allocation13 + $0x30] sm:$0xff]
    %v3928 = vld [vmem:[#allocation13 + $0x38] sm:$0xff]
    %v3929 = vld [vmem:[#allocation13 + $0x40] sm:$0xff]
    %v3930 = vld [vmem:[#allocation13 + $0x48] sm:$0xff]
    %v3931 = vld [vmem:[#allocation13 + $0x50] sm:$0xff]
    %v3932 = vld [vmem:[#allocation13 + $0x58] sm:$0xff]
    %v3933 = vld [vmem:[#allocation13 + $0x60] sm:$0xff]
    %v3934 = vld [vmem:[#allocation13 + $0x68] sm:$0xff]
    %v3935 = vld [vmem:[#allocation13 + $0x70] sm:$0xff]
    %v3936 = vld [vmem:[#allocation13 + $0x78] sm:$0xff]
    %v3937 = vld [vmem:[%s7] sm:$0x1]
    %v3939 = vlaneseq
    %v3940 = vshrl.u32 %v3939, 7
    %v3941 = vsub.s32 0, %v3940
    %v3942 = vrot.slane %v3937, %v3941
    %3944 = vmatprep.subr.mxu0 0.0
    %3945 = vmatpush1.msra.mxu0 %v3921
    %3946 = vmatprep.subr.mxu0 0.0
    %3947 = vmatpush1.msra.mxu0 %v3922
    %3948 = vmatprep.subr.mxu0 0.0
    %3949 = vmatpush1.msra.mxu0 %v3923
    %3950 = vmatprep.subr.mxu0 0.0
    %3951 = vmatpush1.msra.mxu0 %v3924
    %3952 = vmatprep.subr.mxu0 0.0
    %3953 = vmatpush1.msra.mxu0 %v3925
    %3954 = vmatprep.subr.mxu0 0.0
    %3955 = vmatpush1.msra.mxu0 %v3926
    %3956 = vmatprep.subr.mxu0 0.0
    %3957 = vmatpush1.msra.mxu0 %v3927
    %3958 = vmatprep.subr.mxu0 0.0
    %3959 = vmatpush1.msra.mxu0 %v3928
    %3960 = vmatprep.subr.mxu0 0.0
    %3961 = vmatpush1.msra.mxu0 %v3929
    %3962 = vmatprep.subr.mxu0 0.0
    %3963 = vmatpush1.msra.mxu0 %v3930
    %3964 = vmatprep.subr.mxu0 0.0
    %3965 = vmatpush1.msra.mxu0 %v3931
    %3966 = vmatprep.subr.mxu0 0.0
    %3967 = vmatpush1.msra.mxu0 %v3932
    %3968 = vmatprep.subr.mxu0 0.0
    %3969 = vmatpush1.msra.mxu0 %v3933
    %3970 = vmatprep.subr.mxu0 0.0
    %3971 = vmatpush1.msra.mxu0 %v3934
    %3972 = vmatprep.subr.mxu0 0.0
    %3973 = vmatpush1.msra.mxu0 %v3935
    %3974 = vmatprep.subr.mxu0 0.0
    %3975 = vmatpush1.msra.mxu0 %v3936
    %3976 = vmatprep.subr.mxu0 0.0
    %3977 = vmatpush1.msra.mxu0 0.0
    %3978 = vmatprep.subr.mxu0 0.0
    %3979 = vmatpush1.msra.mxu0 0.0
    %3980 = vmatprep.subr.mxu0 0.0
    %3981 = vmatpush1.msra.mxu0 0.0
    %3982 = vmatprep.subr.mxu0 0.0
    %3983 = vmatpush1.msra.mxu0 0.0
    %3984 = vmatprep.subr.mxu0 0.0
    %3985 = vmatpush1.msra.mxu0 0.0
    %3986 = vmatprep.subr.mxu0 0.0
    %3987 = vmatpush1.msra.mxu0 0.0
    %3988 = vmatprep.subr.mxu0 0.0
    %3989 = vmatpush1.msra.mxu0 0.0
    %3990 = vmatprep.subr.mxu0 0.0
    %3991 = vmatpush1.msra.mxu0 0.0
    %3992 = vmatprep.subr.mxu0 0.0
    %3993 = vmatpush1.msra.mxu0 0.0
    %3994 = vmatprep.subr.mxu0 0.0
    %3995 = vmatpush1.msra.mxu0 0.0
    %3996 = vmatprep.subr.mxu0 0.0
    %3997 = vmatpush1.msra.mxu0 0.0
    %3998 = vmatprep.subr.mxu0 0.0
    %3999 = vmatpush1.msra.mxu0 0.0
    %4000 = vmatprep.subr.mxu0 0.0
    %4001 = vmatpush1.msra.mxu0 0.0
    %4002 = vmatprep.subr.mxu0 0.0
    %4003 = vmatpush1.msra.mxu0 0.0
    %4004 = vmatprep.subr.mxu0 0.0
    %4005 = vmatpush1.msra.mxu0 0.0
    %4006 = vmatprep.subr.mxu0 0.0
    %4007 = vmatpush1.msra.mxu0 0.0
    %4008 = vmatprep.mubr.f32.mxu0 0.0
    %4009 = vmatmul.mubr.f32.gmra.mrb[0].mxu0 %v3913
    %v4010 = vpop.f32.mrb[0].mxu0
    %v4011 = vadd.f32 %v3942, %v4010
    %v4012 = vpop.f32.mrb[0].mxu0
    %4013 = vmatprep.mubr.f32.mxu0 0.0
    %4014 = vmatmul.mubr.f32.gmra.mrb[0].mxu0 %v3914
    %v4015 = vpop.f32.mrb[0].mxu0
    %v4016 = vadd.f32 %v3942, %v4015
    %v4017 = vpop.f32.mrb[0].mxu0
    %4018 = vmatprep.mubr.f32.mxu0 0.0
    %4019 = vmatmul.mubr.f32.gmra.mrb[0].mxu0 %v3915
    %v4020 = vpop.f32.mrb[0].mxu0
    %v4021 = vadd.f32 %v3942, %v4020
    %v4022 = vpop.f32.mrb[0].mxu0
    %4023 = vmatprep.mubr.f32.mxu0 0.0
    %4024 = vmatmul.mubr.f32.gmra.mrb[0].mxu0 %v3916
    %v4025 = vpop.f32.mrb[0].mxu0
    %v4026 = vadd.f32 %v3942, %v4025
    %v4027 = vpop.f32.mrb[0].mxu0
    %4028 = vmatprep.mubr.f32.mxu0 0.0
    %4029 = vmatmul.mubr.f32.gmra.mrb[0].mxu0 %v3917
    %v4030 = vpop.f32.mrb[0].mxu0
    %v4031 = vadd.f32 %v3942, %v4030
    %v4032 = vpop.f32.mrb[0].mxu0
    %4033 = vmatprep.mubr.f32.mxu0 0.0
    %4034 = vmatmul.mubr.f32.gmra.mrb[0].mxu0 %v3918
    %v4035 = vpop.f32.mrb[0].mxu0
    %v4036 = vadd.f32 %v3942, %v4035
    %v4037 = vpop.f32.mrb[0].mxu0
    %4038 = vmatprep.mubr.f32.mxu0 0.0
    %4039 = vmatmul.mubr.f32.gmra.mrb[0].mxu0 %v3919
    %v4040 = vpop.f32.mrb[0].mxu0
    %v4041 = vadd.f32 %v3942, %v4040
    %v4042 = vpop.f32.mrb[0].mxu0
    %4043 = vmatprep.mubr.f32.mxu0 0.0
    %4044 = vmatmul.mubr.f32.gmra.mrb[0].mxu0 %v3920
    %v4045 = vpop.f32.mrb[0].mxu0
    %v4046 = vadd.f32 %v3942, %v4045
    %v4047 = vpop.f32.mrb[0].mxu0
    %4048 = vdwg.mxu0
    %4049 = vst [vmem:[#allocation15] sm:$0xff] %v4011
    %4050 = vst [vmem:[#allocation15 + $0x8] sm:$0xff] %v4016
    %4051 = vst [vmem:[#allocation15 + $0x10] sm:$0xff] %v4021
    %4052 = vst [vmem:[#allocation15 + $0x18] sm:$0xff] %v4026
    %4053 = vst [vmem:[#allocation15 + $0x20] sm:$0xff] %v4031
    %4054 = vst [vmem:[#allocation15 + $0x28] sm:$0xff] %v4036
    %4055 = vst [vmem:[#allocation15 + $0x30] sm:$0xff] %v4041
    %4056 = vst [vmem:[#allocation15 + $0x38] sm:$0xff] %v4046
    // Predicated region
    $region66: #{tpu_custom_call.1} parent=1 // pred_check
      _
    $region67: #{tpu_custom_call.1} parent=1 // pred_check_branch
      %4058 = sbr.rel (0) target = $region69
    $region68: #{tpu_custom_call.1} parent=1 // pred_region
      %s4060 = ssub.s32 1024, 1024
      %4061 = vsyncadd [#allocation6], %s4060
      %s4062 = sshll.u32 [#allocation15], 4
      %s4063 = int_to_ptr.vmem [resolvable:$true] %s4062
      %4068 = dma.vmem_to_hbm [thread:$0]  %s4063, 1024, %s10, [#allocation6], 128, 128, 8
    $region69: #{tpu_custom_call.1} parent=1 // pred_fallthru
      _
    // Predicated region
    $region70: #{tpu_custom_call.1} parent=1 // pred_check
      _
    $region71: #{tpu_custom_call.1} parent=1 // pred_check_branch
      %4070 = sbr.rel (0) target = $region73
    $region72: #{tpu_custom_call.1} parent=1 // pred_region
      %s4072 = ssub.s32 256, 256
      %4073 = vsyncadd [#allocation17], %s4072
      %s4074 = sshll.u32 [#allocation16], 4
      %s4075 = int_to_ptr.vmem [resolvable:$true] %s4074
      %4080 = dma.vmem_to_hbm [thread:$0]  %s4075, 256, %s11, [#allocation17], 128, 128, 8
    $region73: #{tpu_custom_call.1} parent=1 // pred_fallthru
      _
    // Predicated region
    $region74: #{tpu_custom_call.1} parent=1 // pred_check
      _
    $region75: #{tpu_custom_call.1} parent=1 // pred_check_branch
      %4082 = sbr.rel (0) target = $region77
    $region76: #{tpu_custom_call.1} parent=1 // pred_region
      %s4084 = ssub.s32 256, 256
      %4085 = vsyncadd [#allocation17], %s4084
      %s4086 = sshll.u32 [#allocation18], 4
      %s4087 = int_to_ptr.vmem [resolvable:$true] %s4086
      %4092 = dma.vmem_to_hbm [thread:$0]  %s4087, 256, %s12, [#allocation17], 128, 128, 8
    $region77: #{tpu_custom_call.1} parent=1 // pred_fallthru
      _
    // Predicated region
    $region78: #{tpu_custom_call.1} parent=1 // pred_check
      _
    $region79: #{tpu_custom_call.1} parent=1 // pred_check_branch
      %4094 = sbr.rel (0) target = $region81
    $region80: #{tpu_custom_call.1} parent=1 // pred_region
      %4095 = dma.done [#allocation6], 1024
    $region81: #{tpu_custom_call.1} parent=1 // pred_fallthru
      _
    // Predicated region
    $region82: #{tpu_custom_call.1} parent=1 // pred_check
      _
    $region83: #{tpu_custom_call.1} parent=1 // pred_check_branch
      %4097 = sbr.rel (0) target = $region85
    $region84: #{tpu_custom_call.1} parent=1 // pred_region
      %4098 = dma.done [#allocation17], 256
    $region85: #{tpu_custom_call.1} parent=1 // pred_fallthru
      _
    // Predicated region
    $region86: #{tpu_custom_call.1} parent=1 // pred_check
      _
    $region87: #{tpu_custom_call.1} parent=1 // pred_check_branch
      %4100 = sbr.rel (0) target = $region89
    $region88: #{tpu_custom_call.1} parent=1 // pred_region
      %4101 = dma.done [#allocation17], 256
    $region89: #{tpu_custom_call.1} parent=1 // pred_fallthru
      _
    %4102 = vsyncpa [#allocation5], 1
    %4103 = vsyncpa [#allocation8], 1
    %4104 = vsyncpa [#allocation11], 1
    %4105 = vsyncpa [#allocation14], 1
    %4106 = vsyncpa [#allocation6], 1
    %4107 = vsyncpa [#allocation17], 1

</llo_original>
